<compile_context>
chip_gen: v5e
topology: v5e:2x2
jax: 0.10.0
libtpu: 0.0.40
codegen_flags: <defaults>
</compile_context>

<pallas_src>
import numpy as np

import jax
import jax.numpy as jnp
from jax.experimental import pallas as pl
from jax.experimental.pallas import tpu as pltpu


def _round_up(x, m):
    return (x + m - 1) // m * m


# ----------------------------------------------------------------------------
# Wrapper-side weight preprocessing (runs once per forward, plain XLA).
# ----------------------------------------------------------------------------
def _banded_conv_weights(w_oihw, win):
    """OIHW 3x3 conv weight -> (3, win*Cin, win*Cout) block-Toeplitz matrices.

    mats[dy][(w+dx)*Cin + ci, w*Cout + co] == w_oihw[co, ci, dy, dx+1] for
    dx in {-1, 0, 1} and 0 <= w+dx < win.  Out-of-range taps are dropped,
    which implements the horizontal zero padding of a pad-1 conv, so the
    activation buffers only need vertical halo rows.
    """
    cout, cin, kh, kw = w_oihw.shape
    assert (kh, kw) == (3, 3)
    taps = jnp.transpose(w_oihw, (2, 3, 1, 0)).astype(jnp.float32)  # (3,3,Cin,Cout)
    mats = []
    for dy in range(3):
        big = jnp.zeros((win * cin, win * cout), jnp.float32)
        for dx in (-1, 0, 1):
            t = taps[dy, dx + 1]                                    # (Cin, Cout)
            n = win - abs(dx)
            band = jnp.kron(jnp.eye(n, dtype=jnp.float32), t)       # (n*Cin, n*Cout)
            pad_r = cin if dx == 1 else 0
            pad_c = cout if dx == -1 else 0
            big = big + jnp.pad(
                band, ((pad_r, win * cin - n * cin - pad_r),
                       (pad_c, win * cout - n * cout - pad_c)))
        mats.append(big)
    return jnp.stack(mats)                                          # (3, K, Ncols)


def _pixel_shuffle_col_perm(W, nf):
    """Gather indices remapping upconv1's natural (w, co) column order to
    (row-parity i, HR column (2w+j)*nf + c) order, where co = c*4 + 2*i + j
    (PyTorch PixelShuffle(2) channel convention).  With this ordering, row h
    of the upconv output holds HR rows 2h and 2h+1 contiguously, so the
    PixelShuffle reduces to a plain reshape (H, 2*C_hr) -> (2H, C_hr)."""
    new = np.arange(4 * W * nf)
    i = new // (2 * W * nf)
    rem = new % (2 * W * nf)
    ww = rem // nf
    c = rem % nf
    w, j = ww // 2, ww % 2
    return w * (4 * nf) + (c * 4 + i * 2 + j)


# ----------------------------------------------------------------------------
# Fused kernel
# ----------------------------------------------------------------------------
def _make_fused_kernel(H, W, nf, num_res_blocks, batch_tile):
    HH = 2 * H
    C_lr = W * nf                 # LR row width (lanes)
    C_hr = 2 * W * nf             # HR row width (lanes)
    C_up = 2 * C_hr               # upconv1 row width (both HR row parities)
    C_out = 2 * W * 4             # conv_last row width (padded to 4 channels)
    SLAB_LR = _round_up(H + 2, 8)   # per-image LR slab (8-aligned for clean slices)
    SLAB_HR = _round_up(HH + 2, 8)  # per-image HR slab
    R_LR = batch_tile * SLAB_LR
    R_HR = batch_tile * SLAB_HR

    def kernel(feat_ref, m_ref, resw_ref, resb_ref, upw_ref, upb_ref, a1_ref,
               hrw_ref, hrb_ref, a2_ref, lww_ref, lwb_ref, out_ref,
               lr_x, lr_y, hr_buf):

        def conv3x3(src, n_rows, w_of_dy):
            # 3x3 pad-1 conv == 3 banded, lane-dense MXU matmuls over shifted
            # row windows of the halo-padded buffer.  Output rows at per-image
            # slab boundaries are garbage and are never read back.
            return (
                jnp.dot(src[0:n_rows - 2, :], w_of_dy(0),
                        preferred_element_type=jnp.float32)
                + jnp.dot(src[1:n_rows - 1, :], w_of_dy(1),
                          preferred_element_type=jnp.float32)
                + jnp.dot(src[2:n_rows, :], w_of_dy(2),
                          preferred_element_type=jnp.float32))

        def zero_halos(buf, slab, interior, width):
            # Only halo (and pad) rows need to be zero; interiors are fully
            # overwritten each step.  Done every step (not gated on
            # program_id==0) so it is correct under megacore grid splitting.
            for t in range(batch_tile):
                base = t * slab
                buf[base:base + 1, :] = jnp.zeros((1, width), jnp.float32)
                buf[base + interior + 1:base + slab, :] = jnp.zeros(
                    (slab - interior - 1, width), jnp.float32)

        zero_halos(lr_x, SLAB_LR, H, C_lr)
        zero_halos(lr_y, SLAB_LR, H, C_lr)
        zero_halos(hr_buf, SLAB_HR, HH, C_hr)

        # ---- load LR features into per-image halo slabs ---------------------
        for t in range(batch_tile):
            lr_x[t * SLAB_LR + 1:t * SLAB_LR + 1 + H, :] = feat_ref[t]

        # ---- reconstruction: residual blocks, VMEM-resident ------------------
        for b in range(num_res_blocks):
            l1, l2 = 2 * b, 2 * b + 1
            y = conv3x3(lr_x, R_LR, lambda dy: resw_ref[3 * l1 + dy]) + resb_ref[l1]
            y = jnp.maximum(y, 0.0)
            for t in range(batch_tile):
                lr_y[t * SLAB_LR + 1:t * SLAB_LR + 1 + H, :] = (
                    y[t * SLAB_LR:t * SLAB_LR + H, :])
            z = conv3x3(lr_y, R_LR, lambda dy: resw_ref[3 * l2 + dy]) + resb_ref[l2]
            for t in range(batch_tile):
                lr_x[t * SLAB_LR + 1:t * SLAB_LR + 1 + H, :] = (
                    lr_x[t * SLAB_LR + 1:t * SLAB_LR + 1 + H, :]
                    + z[t * SLAB_LR:t * SLAB_LR + H, :])          # identity skip

        # ---- upconv1 + PixelShuffle(2) + PReLU1 ------------------------------
        up = conv3x3(lr_x, R_LR, lambda dy: upw_ref[dy]) + upb_ref[...]  # (.., C_up)
        up = jnp.where(up >= 0, up, up * a1_ref[...])                    # PReLU1
        # Weight columns are pre-permuted so LR row h of `up` holds HR rows 2h
        # and 2h+1 contiguously: the shuffle is one reshape + one bulk store
        # per image (no per-row masked stores).
        for t in range(batch_tile):
            hr_buf[t * SLAB_HR + 1:t * SLAB_HR + 1 + HH, :] = (
                up[t * SLAB_LR:t * SLAB_LR + H, :].reshape(HH, C_hr))

        # ---- HRconv + PReLU2 --------------------------------------------------
        h2 = conv3x3(hr_buf, R_HR, lambda dy: hrw_ref[dy]) + hrb_ref[...]
        h2 = jnp.where(h2 >= 0, h2, h2 * a2_ref[...])                    # PReLU2
        for t in range(batch_tile):
            hr_buf[t * SLAB_HR + 1:t * SLAB_HR + 1 + HH, :] = (
                h2[t * SLAB_HR:t * SLAB_HR + HH, :])                     # reuse buffer

        # ---- conv_last (padded to 4 out channels) + m skip + clamp ------------
        o = conv3x3(hr_buf, R_HR, lambda dy: lww_ref[dy]) + lwb_ref[...]
        for t in range(batch_tile):
            out_ref[t] = jnp.clip(
                o[t * SLAB_HR:t * SLAB_HR + HH, :] + m_ref[t], 0.0, 1.0)

    return kernel


# ----------------------------------------------------------------------------
# Forward wrapper
# ----------------------------------------------------------------------------
def generator_forward(feat_nchw, m_nchw, params, batch_tile=None):
    N, nf, H, W = feat_nchw.shape
    num_res_blocks = len(params["res_blocks"])
    n_res = 2 * num_res_blocks
    HH, WW = 2 * H, 2 * W
    C_lr, C_hr, C_up = W * nf, WW * nf, 2 * WW * nf
    C_out = WW * 4                         # conv_last padded to 4 channels (lane-dense)

    if batch_tile is None:
        # Whole batch per grid step: best on 1-TC chips (v5e/v6e) and minimizes
        # per-step overhead.  On v7x choose batch_tile = N // (2*k) instead so
        # the "parallel" grid axis feeds both TensorCores.
        batch_tile = N
    assert N % batch_tile == 0
    n_steps = N // batch_tile
    SLAB_LR = _round_up(H + 2, 8)
    SLAB_HR = _round_up(HH + 2, 8)

    # Boundary layout glue: NCHW -> lane-dense row-flattened slabs.  m gets a
    # zero 4th channel so the final add/store is an unmasked 128-lane block.
    feat2d = jnp.transpose(feat_nchw, (0, 2, 3, 1)).reshape(N, H, C_lr)
    m2d = jnp.pad(jnp.transpose(m_nchw, (0, 2, 3, 1)),
                  ((0, 0), (0, 0), (0, 0), (0, 1))).reshape(N, HH, C_out)

    # Banded weights / tiled biases so each conv is 3 lane-dense MXU matmuls.
    res_pairs = []
    for (w1, b1, w2, b2) in params["res_blocks"]:
        res_pairs += [(w1, b1), (w2, b2)]
    res_w = jnp.concatenate([_banded_conv_weights(w, W) for w, _ in res_pairs],
                            axis=0)                                  # (3*n_res, C_lr, C_lr)
    res_b = jnp.stack([jnp.tile(b, W).reshape(1, C_lr) for _, b in res_pairs])

    perm = _pixel_shuffle_col_perm(W, nf)
    up_w = _banded_conv_weights(params["upconv1"][0], W)[:, :, perm]  # (3, C_lr, C_up)
    up_b = jnp.tile(params["upconv1"][1], W)[perm].reshape(1, C_up)
    a1 = jnp.tile(params["alpha1"], 2 * WW).reshape(1, C_up)

    hr_w = _banded_conv_weights(params["hrconv"][0], WW)              # (3, C_hr, C_hr)
    hr_b = jnp.tile(params["hrconv"][1], WW).reshape(1, C_hr)
    a2 = jnp.tile(params["alpha2"], WW).reshape(1, C_hr)

    # conv_last padded with a zero 4th output channel -> 128-lane output slab.
    lw_w_pad = jnp.pad(params["conv_last"][0], ((0, 1), (0, 0), (0, 0), (0, 0)))
    lw_b_pad = jnp.pad(params["conv_last"][1], (0, 1))
    lw_w = _banded_conv_weights(lw_w_pad, WW)                         # (3, C_hr, C_out)
    lw_b = jnp.tile(lw_b_pad, WW).reshape(1, C_out)

    kernel = _make_fused_kernel(H, W, nf, num_res_blocks, batch_tile)

    out2d = pl.pallas_call(
        kernel,
        out_shape=jax.ShapeDtypeStruct((N, HH, C_out), jnp.float32),
        grid=(n_steps,),
        in_specs=[
            pl.BlockSpec((batch_tile, H, C_lr), lambda g: (g, 0, 0)),    # feat
            pl.BlockSpec((batch_tile, HH, C_out), lambda g: (g, 0, 0)),  # m (padded)
            pl.BlockSpec((3 * n_res, C_lr, C_lr), lambda g: (0, 0, 0)),
            pl.BlockSpec((n_res, 1, C_lr), lambda g: (0, 0, 0)),
            pl.BlockSpec((3, C_lr, C_up), lambda g: (0, 0, 0)),
            pl.BlockSpec((1, C_up), lambda g: (0, 0)),
            pl.BlockSpec((1, C_up), lambda g: (0, 0)),
            pl.BlockSpec((3, C_hr, C_hr), lambda g: (0, 0, 0)),
            pl.BlockSpec((1, C_hr), lambda g: (0, 0)),
            pl.BlockSpec((1, C_hr), lambda g: (0, 0)),
            pl.BlockSpec((3, C_hr, C_out), lambda g: (0, 0, 0)),
            pl.BlockSpec((1, C_out), lambda g: (0, 0)),
        ],
        out_specs=pl.BlockSpec((batch_tile, HH, C_out), lambda g: (g, 0, 0)),
        scratch_shapes=[
            pltpu.VMEM((batch_tile * SLAB_LR, C_lr), jnp.float32),   # res trunk
            pltpu.VMEM((batch_tile * SLAB_LR, C_lr), jnp.float32),   # relu(conv1(x))
            pltpu.VMEM((batch_tile * SLAB_HR, C_hr), jnp.float32),   # HR activations
        ],
        compiler_params=pltpu.CompilerParams(
            dimension_semantics=("parallel",),     # shard steps across v7x TCs
            vmem_limit_bytes=32 * 1024 * 1024,
        ),
    )(feat2d, m2d, res_w, res_b, up_w, up_b, a1, hr_w, hr_b, a2, lw_w, lw_b)

    # (N, 2H, 2W*4) lane-dense slab -> drop dummy channel -> NCHW
    out = out2d.reshape(N, HH, WW, 4)[..., :3]
    return jnp.transpose(out, (0, 3, 1, 2))


# ----------------------------------------------------------------------------
# Parameter init + pure-JAX reference (mirrors the PyTorch module in NCHW)
# ----------------------------------------------------------------------------
def _conv_init(key, cout, cin):
    kw, kb = jax.random.split(key)
    w = 0.05 * jax.random.normal(kw, (cout, cin, 3, 3), jnp.float32)
    b = 0.05 * jax.random.normal(kb, (cout,), jnp.float32)
    return w, b


def init_params(key, nf, num_res_blocks):
    ks = jax.random.split(key, 2 * num_res_blocks + 3)
    it = iter(ks)
    res_blocks = []
    for _ in range(num_res_blocks):
        res_blocks.append(_conv_init(next(it), nf, nf) + _conv_init(next(it), nf, nf))
    upconv1 = _conv_init(next(it), 4 * nf, nf)
    hrconv = _conv_init(next(it), nf, nf)
    conv_last = _conv_init(next(it), 3, nf)
    return {
        "res_blocks": res_blocks,
        "upconv1": upconv1,
        # nn.PReLU default init is 0.25; vary per channel to exercise layout.
        "alpha1": 0.25 + 0.01 * jnp.arange(nf, dtype=jnp.float32),
        "hrconv": hrconv,
        "alpha2": 0.25 - 0.01 * jnp.arange(nf, dtype=jnp.float32),
        "conv_last": conv_last,
    }


def ref_forward(feat, m, params):
    def conv(x, w, b):
        y = jax.lax.conv_general_dilated(
            x, w, (1, 1), ((1, 1), (1, 1)),
            dimension_numbers=("NCHW", "OIHW", "NCHW"))
        return y + b.reshape(1, -1, 1, 1)

    def prelu(x, a):
        return jnp.where(x >= 0, x, x * a.reshape(1, -1, 1, 1))

    x = feat
    for (w1, b1, w2, b2) in params["res_blocks"]:
        x = x + conv(jnp.maximum(conv(x, w1, b1), 0.0), w2, b2)
    up = conv(x, *params["upconv1"])
    N, C, H, W = up.shape
    c = C // 4
    ps = up.reshape(N, c, 2, 2, H, W).transpose(0, 1, 4, 2, 5, 3).reshape(N, c, 2 * H, 2 * W)
    hr = prelu(ps, params["alpha1"])
    hr = prelu(conv(hr, *params["hrconv"]), params["alpha2"])
    out = conv(hr, *params["conv_last"]) + m
    return jnp.clip(out, 0.0, 1.0)


if __name__ == "__main__":
    nf, num_res_blocks = 8, 2
    N, H, W = 2, 16, 16

    key = jax.random.PRNGKey(0)
    k_feat, k_m, k_params = jax.random.split(key, 3)
    feat = jax.random.normal(k_feat, (N, nf, H, W), jnp.float32)
    m = jax.random.uniform(k_m, (N, 3, 2 * H, 2 * W), jnp.float32)
    params = init_params(k_params, nf, num_res_blocks)

    fwd = jax.jit(generator_forward)
    out = jax.block_until_ready(fwd(feat, m, params))
    assert out.shape == (N, 3, 2 * H, 2 * W), out.shape

    ref = jax.block_until_ready(ref_forward(feat, m, params))
    max_err = float(jnp.max(jnp.abs(out - ref)))
    assert max_err < 1e-4, max_err

    print("KERNEL_OK")
</pallas_src>

<mosaic_0001>
module attributes {stable_mosaic.version = 11 : i64} {
  func.func @kernel(%arg0: i32, %arg1: memref<2x16x128xf32, #tpu.memory_space<vmem>>, %arg2: memref<2x32x128xf32, #tpu.memory_space<vmem>>, %arg3: memref<12x128x128xf32, #tpu.memory_space<vmem>>, %arg4: memref<4x1x128xf32, #tpu.memory_space<vmem>>, %arg5: memref<3x128x512xf32, #tpu.memory_space<vmem>>, %arg6: memref<1x512xf32, #tpu.memory_space<vmem>>, %arg7: memref<1x512xf32, #tpu.memory_space<vmem>>, %arg8: memref<3x256x256xf32, #tpu.memory_space<vmem>>, %arg9: memref<1x256xf32, #tpu.memory_space<vmem>>, %arg10: memref<1x256xf32, #tpu.memory_space<vmem>>, %arg11: memref<3x256x128xf32, #tpu.memory_space<vmem>>, %arg12: memref<1x128xf32, #tpu.memory_space<vmem>>, %arg13: memref<2x32x128xf32, #tpu.memory_space<vmem>>, %arg14: memref<48x128xf32, #tpu.memory_space<vmem>>, %arg15: memref<48x128xf32, #tpu.memory_space<vmem>>, %arg16: memref<80x256xf32, #tpu.memory_space<vmem>>) attributes {dimension_semantics = [#tpu.dimension_semantics<parallel>], iteration_bounds = array<i64: 1>, scalar_prefetch = 0 : i64, scratch_operands = 3 : i64, tpu.core_type = #tpu.core_type<tc>, window_params = [{transform_indices = @transform_0, window_bounds = array<i64: 2, 16, 128>}, {transform_indices = @transform_1, window_bounds = array<i64: 2, 32, 128>}, {pipeline_mode = #tpu.pipeline_mode<synchronous>, transform_indices = @transform_2, window_bounds = array<i64: 12, 128, 128>}, {pipeline_mode = #tpu.pipeline_mode<synchronous>, transform_indices = @transform_3, window_bounds = array<i64: 4, 1, 128>}, {pipeline_mode = #tpu.pipeline_mode<synchronous>, transform_indices = @transform_4, window_bounds = array<i64: 3, 128, 512>}, {pipeline_mode = #tpu.pipeline_mode<synchronous>, transform_indices = @transform_5, window_bounds = array<i64: 1, 512>}, {pipeline_mode = #tpu.pipeline_mode<synchronous>, transform_indices = @transform_6, window_bounds = array<i64: 1, 512>}, {pipeline_mode = #tpu.pipeline_mode<synchronous>, transform_indices = @transform_7, window_bounds = array<i64: 3, 256, 256>}, {pipeline_mode = #tpu.pipeline_mode<synchronous>, transform_indices = @transform_8, window_bounds = array<i64: 1, 256>}, {pipeline_mode = #tpu.pipeline_mode<synchronous>, transform_indices = @transform_9, window_bounds = array<i64: 1, 256>}, {pipeline_mode = #tpu.pipeline_mode<synchronous>, transform_indices = @transform_10, window_bounds = array<i64: 3, 256, 128>}, {pipeline_mode = #tpu.pipeline_mode<synchronous>, transform_indices = @transform_11, window_bounds = array<i64: 1, 128>}, {transform_indices = @transform_12, window_bounds = array<i64: 2, 32, 128>}]} {
    %cst = arith.constant 0.000000e+00 : f32
    %0 = vector.broadcast %cst : f32 to vector<1x128xf32>
    %c0 = arith.constant 0 : index
    %c0_0 = arith.constant 0 : index
    %1 = vector.load %arg14[%c0, %c0_0] : memref<48x128xf32, #tpu.memory_space<vmem>>, vector<1x128xf32>
    tpu.vector_store %arg14[%c0, %c0_0], %0 {strides = array<i32>} : memref<48x128xf32, #tpu.memory_space<vmem>>, vector<1x128xf32>,
    %cst_1 = arith.constant 0.000000e+00 : f32
    %2 = vector.broadcast %cst_1 : f32 to vector<7x128xf32>
    %c17 = arith.constant 17 : index
    %c0_2 = arith.constant 0 : index
    %3 = vector.load %arg14[%c17, %c0_2] : memref<48x128xf32, #tpu.memory_space<vmem>>, vector<7x128xf32>
    tpu.vector_store %arg14[%c17, %c0_2], %2 {strides = array<i32>} : memref<48x128xf32, #tpu.memory_space<vmem>>, vector<7x128xf32>,
    %cst_3 = arith.constant 0.000000e+00 : f32
    %4 = vector.broadcast %cst_3 : f32 to vector<1x128xf32>
    %c24 = arith.constant 24 : index
    %c0_4 = arith.constant 0 : index
    %5 = vector.load %arg14[%c24, %c0_4] : memref<48x128xf32, #tpu.memory_space<vmem>>, vector<1x128xf32>
    tpu.vector_store %arg14[%c24, %c0_4], %4 {strides = array<i32>} : memref<48x128xf32, #tpu.memory_space<vmem>>, vector<1x128xf32>,
    %cst_5 = arith.constant 0.000000e+00 : f32
    %6 = vector.broadcast %cst_5 : f32 to vector<7x128xf32>
    %c41 = arith.constant 41 : index
    %c0_6 = arith.constant 0 : index
    %7 = vector.load %arg14[%c41, %c0_6] : memref<48x128xf32, #tpu.memory_space<vmem>>, vector<7x128xf32>
    tpu.vector_store %arg14[%c41, %c0_6], %6 {strides = array<i32>} : memref<48x128xf32, #tpu.memory_space<vmem>>, vector<7x128xf32>,
    %cst_7 = arith.constant 0.000000e+00 : f32
    %8 = vector.broadcast %cst_7 : f32 to vector<1x128xf32>
    %c0_8 = arith.constant 0 : index
    %c0_9 = arith.constant 0 : index
    %9 = vector.load %arg15[%c0_8, %c0_9] : memref<48x128xf32, #tpu.memory_space<vmem>>, vector<1x128xf32>
    tpu.vector_store %arg15[%c0_8, %c0_9], %8 {strides = array<i32>} : memref<48x128xf32, #tpu.memory_space<vmem>>, vector<1x128xf32>,
    %cst_10 = arith.constant 0.000000e+00 : f32
    %10 = vector.broadcast %cst_10 : f32 to vector<7x128xf32>
    %c17_11 = arith.constant 17 : index
    %c0_12 = arith.constant 0 : index
    %11 = vector.load %arg15[%c17_11, %c0_12] : memref<48x128xf32, #tpu.memory_space<vmem>>, vector<7x128xf32>
    tpu.vector_store %arg15[%c17_11, %c0_12], %10 {strides = array<i32>} : memref<48x128xf32, #tpu.memory_space<vmem>>, vector<7x128xf32>,
    %cst_13 = arith.constant 0.000000e+00 : f32
    %12 = vector.broadcast %cst_13 : f32 to vector<1x128xf32>
    %c24_14 = arith.constant 24 : index
    %c0_15 = arith.constant 0 : index
    %13 = vector.load %arg15[%c24_14, %c0_15] : memref<48x128xf32, #tpu.memory_space<vmem>>, vector<1x128xf32>
    tpu.vector_store %arg15[%c24_14, %c0_15], %12 {strides = array<i32>} : memref<48x128xf32, #tpu.memory_space<vmem>>, vector<1x128xf32>,
    %cst_16 = arith.constant 0.000000e+00 : f32
    %14 = vector.broadcast %cst_16 : f32 to vector<7x128xf32>
    %c41_17 = arith.constant 41 : index
    %c0_18 = arith.constant 0 : index
    %15 = vector.load %arg15[%c41_17, %c0_18] : memref<48x128xf32, #tpu.memory_space<vmem>>, vector<7x128xf32>
    tpu.vector_store %arg15[%c41_17, %c0_18], %14 {strides = array<i32>} : memref<48x128xf32, #tpu.memory_space<vmem>>, vector<7x128xf32>,
    %cst_19 = arith.constant 0.000000e+00 : f32
    %16 = vector.broadcast %cst_19 : f32 to vector<1x256xf32>
    %c0_20 = arith.constant 0 : index
    %c0_21 = arith.constant 0 : index
    %17 = vector.load %arg16[%c0_20, %c0_21] : memref<80x256xf32, #tpu.memory_space<vmem>>, vector<1x256xf32>
    tpu.vector_store %arg16[%c0_20, %c0_21], %16 {strides = array<i32>} : memref<80x256xf32, #tpu.memory_space<vmem>>, vector<1x256xf32>,
    %cst_22 = arith.constant 0.000000e+00 : f32
    %18 = vector.broadcast %cst_22 : f32 to vector<7x256xf32>
    %c33 = arith.constant 33 : index
    %c0_23 = arith.constant 0 : index
    %19 = vector.load %arg16[%c33, %c0_23] : memref<80x256xf32, #tpu.memory_space<vmem>>, vector<7x256xf32>
    tpu.vector_store %arg16[%c33, %c0_23], %18 {strides = array<i32>} : memref<80x256xf32, #tpu.memory_space<vmem>>, vector<7x256xf32>,
    %cst_24 = arith.constant 0.000000e+00 : f32
    %20 = vector.broadcast %cst_24 : f32 to vector<1x256xf32>
    %c40 = arith.constant 40 : index
    %c0_25 = arith.constant 0 : index
    %21 = vector.load %arg16[%c40, %c0_25] : memref<80x256xf32, #tpu.memory_space<vmem>>, vector<1x256xf32>
    tpu.vector_store %arg16[%c40, %c0_25], %20 {strides = array<i32>} : memref<80x256xf32, #tpu.memory_space<vmem>>, vector<1x256xf32>,
    %cst_26 = arith.constant 0.000000e+00 : f32
    %22 = vector.broadcast %cst_26 : f32 to vector<7x256xf32>
    %c73 = arith.constant 73 : index
    %c0_27 = arith.constant 0 : index
    %23 = vector.load %arg16[%c73, %c0_27] : memref<80x256xf32, #tpu.memory_space<vmem>>, vector<7x256xf32>
    tpu.vector_store %arg16[%c73, %c0_27], %22 {strides = array<i32>} : memref<80x256xf32, #tpu.memory_space<vmem>>, vector<7x256xf32>,
    %c0_28 = arith.constant 0 : index
    %c0_29 = arith.constant 0 : index
    %c0_30 = arith.constant 0 : index
    %24 = vector.load %arg1[%c0_28, %c0_29, %c0_30] : memref<2x16x128xf32, #tpu.memory_space<vmem>>, vector<1x16x128xf32>
    %25 = vector.shape_cast %24 : vector<1x16x128xf32> to vector<16x128xf32>
    %c1 = arith.constant 1 : index
    %c0_31 = arith.constant 0 : index
    %26 = vector.load %arg14[%c1, %c0_31] : memref<48x128xf32, #tpu.memory_space<vmem>>, vector<16x128xf32>
    tpu.vector_store %arg14[%c1, %c0_31], %25 {strides = array<i32>} : memref<48x128xf32, #tpu.memory_space<vmem>>, vector<16x128xf32>,
    %c1_32 = arith.constant 1 : index
    %c0_33 = arith.constant 0 : index
    %c0_34 = arith.constant 0 : index
    %27 = vector.load %arg1[%c1_32, %c0_33, %c0_34] : memref<2x16x128xf32, #tpu.memory_space<vmem>>, vector<1x16x128xf32>
    %28 = vector.shape_cast %27 : vector<1x16x128xf32> to vector<16x128xf32>
    %c25 = arith.constant 25 : index
    %c0_35 = arith.constant 0 : index
    %29 = vector.load %arg14[%c25, %c0_35] : memref<48x128xf32, #tpu.memory_space<vmem>>, vector<16x128xf32>
    tpu.vector_store %arg14[%c25, %c0_35], %28 {strides = array<i32>} : memref<48x128xf32, #tpu.memory_space<vmem>>, vector<16x128xf32>,
    %c0_36 = arith.constant 0 : index
    %c0_37 = arith.constant 0 : index
    %30 = vector.load %arg14[%c0_36, %c0_37] : memref<48x128xf32, #tpu.memory_space<vmem>>, vector<46x128xf32>
    %c0_38 = arith.constant 0 : index
    %c0_39 = arith.constant 0 : index
    %c0_40 = arith.constant 0 : index
    %31 = vector.load %arg3[%c0_38, %c0_39, %c0_40] : memref<12x128x128xf32, #tpu.memory_space<vmem>>, vector<1x128x128xf32>
    %32 = vector.shape_cast %31 : vector<1x128x128xf32> to vector<128x128xf32>
    %cst_41 = arith.constant dense<0.000000e+00> : vector<46x128xf32>
    %33 = tpu.matmul %30, %32, %cst_41 {dimension_numbers = #tpu.dot_dimension_numbers<[1], [0], [0], [1], [0, 0, 1, 1], [], []>} : vector<46x128xf32>, vector<128x128xf32>, vector<46x128xf32> -> vector<46x128xf32>
    %c1_42 = arith.constant 1 : index
    %c0_43 = arith.constant 0 : index
    %34 = vector.load %arg14[%c1_42, %c0_43] : memref<48x128xf32, #tpu.memory_space<vmem>>, vector<46x128xf32>
    %c1_44 = arith.constant 1 : index
    %c0_45 = arith.constant 0 : index
    %c0_46 = arith.constant 0 : index
    %35 = vector.load %arg3[%c1_44, %c0_45, %c0_46] : memref<12x128x128xf32, #tpu.memory_space<vmem>>, vector<1x128x128xf32>
    %36 = vector.shape_cast %35 : vector<1x128x128xf32> to vector<128x128xf32>
    %cst_47 = arith.constant dense<0.000000e+00> : vector<46x128xf32>
    %37 = tpu.matmul %34, %36, %cst_47 {dimension_numbers = #tpu.dot_dimension_numbers<[1], [0], [0], [1], [0, 0, 1, 1], [], []>} : vector<46x128xf32>, vector<128x128xf32>, vector<46x128xf32> -> vector<46x128xf32>
    %38 = arith.addf %33, %37 : vector<46x128xf32>
    %c2 = arith.constant 2 : index
    %c0_48 = arith.constant 0 : index
    %39 = vector.load %arg14[%c2, %c0_48] : memref<48x128xf32, #tpu.memory_space<vmem>>, vector<46x128xf32>
    %c2_49 = arith.constant 2 : index
    %c0_50 = arith.constant 0 : index
    %c0_51 = arith.constant 0 : index
    %40 = vector.load %arg3[%c2_49, %c0_50, %c0_51] : memref<12x128x128xf32, #tpu.memory_space<vmem>>, vector<1x128x128xf32>
    %41 = vector.shape_cast %40 : vector<1x128x128xf32> to vector<128x128xf32>
    %cst_52 = arith.constant dense<0.000000e+00> : vector<46x128xf32>
    %42 = tpu.matmul %39, %41, %cst_52 {dimension_numbers = #tpu.dot_dimension_numbers<[1], [0], [0], [1], [0, 0, 1, 1], [], []>} : vector<46x128xf32>, vector<128x128xf32>, vector<46x128xf32> -> vector<46x128xf32>
    %43 = arith.addf %38, %42 : vector<46x128xf32>
    %c0_53 = arith.constant 0 : index
    %c0_54 = arith.constant 0 : index
    %c0_55 = arith.constant 0 : index
    %44 = vector.load %arg4[%c0_53, %c0_54, %c0_55] : memref<4x1x128xf32, #tpu.memory_space<vmem>>, vector<1x1x128xf32>
    %45 = vector.shape_cast %44 : vector<1x1x128xf32> to vector<1x128xf32>
    %46 = vector.broadcast %45 : vector<1x128xf32> to vector<46x128xf32>
    %47 = arith.addf %43, %46 : vector<46x128xf32>
    %cst_56 = arith.constant 0.000000e+00 : f32
    %48 = vector.broadcast %cst_56 : f32 to vector<46x128xf32>
    %49 = arith.maximumf %47, %48 : vector<46x128xf32>
    %50 = vector.extract_strided_slice %49 {offsets = [0, 0], sizes = [16, 128], strides = [1, 1]} : vector<46x128xf32> to vector<16x128xf32>
    %c1_57 = arith.constant 1 : index
    %c0_58 = arith.constant 0 : index
    %51 = vector.load %arg15[%c1_57, %c0_58] : memref<48x128xf32, #tpu.memory_space<vmem>>, vector<16x128xf32>
    tpu.vector_store %arg15[%c1_57, %c0_58], %50 {strides = array<i32>} : memref<48x128xf32, #tpu.memory_space<vmem>>, vector<16x128xf32>,
    %52 = vector.extract_strided_slice %49 {offsets = [24, 0], sizes = [16, 128], strides = [1, 1]} : vector<46x128xf32> to vector<16x128xf32>
    %c25_59 = arith.constant 25 : index
    %c0_60 = arith.constant 0 : index
    %53 = vector.load %arg15[%c25_59, %c0_60] : memref<48x128xf32, #tpu.memory_space<vmem>>, vector<16x128xf32>
    tpu.vector_store %arg15[%c25_59, %c0_60], %52 {strides = array<i32>} : memref<48x128xf32, #tpu.memory_space<vmem>>, vector<16x128xf32>,
    %c0_61 = arith.constant 0 : index
    %c0_62 = arith.constant 0 : index
    %54 = vector.load %arg15[%c0_61, %c0_62] : memref<48x128xf32, #tpu.memory_space<vmem>>, vector<46x128xf32>
    %c3 = arith.constant 3 : index
    %c0_63 = arith.constant 0 : index
    %c0_64 = arith.constant 0 : index
    %55 = vector.load %arg3[%c3, %c0_63, %c0_64] : memref<12x128x128xf32, #tpu.memory_space<vmem>>, vector<1x128x128xf32>
    %56 = vector.shape_cast %55 : vector<1x128x128xf32> to vector<128x128xf32>
    %cst_65 = arith.constant dense<0.000000e+00> : vector<46x128xf32>
    %57 = tpu.matmul %54, %56, %cst_65 {dimension_numbers = #tpu.dot_dimension_numbers<[1], [0], [0], [1], [0, 0, 1, 1], [], []>} : vector<46x128xf32>, vector<128x128xf32>, vector<46x128xf32> -> vector<46x128xf32>
    %c1_66 = arith.constant 1 : index
    %c0_67 = arith.constant 0 : index
    %58 = vector.load %arg15[%c1_66, %c0_67] : memref<48x128xf32, #tpu.memory_space<vmem>>, vector<46x128xf32>
    %c4 = arith.constant 4 : index
    %c0_68 = arith.constant 0 : index
    %c0_69 = arith.constant 0 : index
    %59 = vector.load %arg3[%c4, %c0_68, %c0_69] : memref<12x128x128xf32, #tpu.memory_space<vmem>>, vector<1x128x128xf32>
    %60 = vector.shape_cast %59 : vector<1x128x128xf32> to vector<128x128xf32>
    %cst_70 = arith.constant dense<0.000000e+00> : vector<46x128xf32>
    %61 = tpu.matmul %58, %60, %cst_70 {dimension_numbers = #tpu.dot_dimension_numbers<[1], [0], [0], [1], [0, 0, 1, 1], [], []>} : vector<46x128xf32>, vector<128x128xf32>, vector<46x128xf32> -> vector<46x128xf32>
    %62 = arith.addf %57, %61 : vector<46x128xf32>
    %c2_71 = arith.constant 2 : index
    %c0_72 = arith.constant 0 : index
    %63 = vector.load %arg15[%c2_71, %c0_72] : memref<48x128xf32, #tpu.memory_space<vmem>>, vector<46x128xf32>
    %c5 = arith.constant 5 : index
    %c0_73 = arith.constant 0 : index
    %c0_74 = arith.constant 0 : index
    %64 = vector.load %arg3[%c5, %c0_73, %c0_74] : memref<12x128x128xf32, #tpu.memory_space<vmem>>, vector<1x128x128xf32>
    %65 = vector.shape_cast %64 : vector<1x128x128xf32> to vector<128x128xf32>
    %cst_75 = arith.constant dense<0.000000e+00> : vector<46x128xf32>
    %66 = tpu.matmul %63, %65, %cst_75 {dimension_numbers = #tpu.dot_dimension_numbers<[1], [0], [0], [1], [0, 0, 1, 1], [], []>} : vector<46x128xf32>, vector<128x128xf32>, vector<46x128xf32> -> vector<46x128xf32>
    %67 = arith.addf %62, %66 : vector<46x128xf32>
    %c1_76 = arith.constant 1 : index
    %c0_77 = arith.constant 0 : index
    %c0_78 = arith.constant 0 : index
    %68 = vector.load %arg4[%c1_76, %c0_77, %c0_78] : memref<4x1x128xf32, #tpu.memory_space<vmem>>, vector<1x1x128xf32>
    %69 = vector.shape_cast %68 : vector<1x1x128xf32> to vector<1x128xf32>
    %70 = vector.broadcast %69 : vector<1x128xf32> to vector<46x128xf32>
    %71 = arith.addf %67, %70 : vector<46x128xf32>
    %c1_79 = arith.constant 1 : index
    %c0_80 = arith.constant 0 : index
    %72 = vector.load %arg14[%c1_79, %c0_80] : memref<48x128xf32, #tpu.memory_space<vmem>>, vector<16x128xf32>
    %73 = vector.extract_strided_slice %71 {offsets = [0, 0], sizes = [16, 128], strides = [1, 1]} : vector<46x128xf32> to vector<16x128xf32>
    %74 = arith.addf %72, %73 : vector<16x128xf32>
    %c1_81 = arith.constant 1 : index
    %c0_82 = arith.constant 0 : index
    %75 = vector.load %arg14[%c1_81, %c0_82] : memref<48x128xf32, #tpu.memory_space<vmem>>, vector<16x128xf32>
    tpu.vector_store %arg14[%c1_81, %c0_82], %74 {strides = array<i32>} : memref<48x128xf32, #tpu.memory_space<vmem>>, vector<16x128xf32>,
    %c25_83 = arith.constant 25 : index
    %c0_84 = arith.constant 0 : index
    %76 = vector.load %arg14[%c25_83, %c0_84] : memref<48x128xf32, #tpu.memory_space<vmem>>, vector<16x128xf32>
    %77 = vector.extract_strided_slice %71 {offsets = [24, 0], sizes = [16, 128], strides = [1, 1]} : vector<46x128xf32> to vector<16x128xf32>
    %78 = arith.addf %76, %77 : vector<16x128xf32>
    %c25_85 = arith.constant 25 : index
    %c0_86 = arith.constant 0 : index
    %79 = vector.load %arg14[%c25_85, %c0_86] : memref<48x128xf32, #tpu.memory_space<vmem>>, vector<16x128xf32>
    tpu.vector_store %arg14[%c25_85, %c0_86], %78 {strides = array<i32>} : memref<48x128xf32, #tpu.memory_space<vmem>>, vector<16x128xf32>,
    %c0_87 = arith.constant 0 : index
    %c0_88 = arith.constant 0 : index
    %80 = vector.load %arg14[%c0_87, %c0_88] : memref<48x128xf32, #tpu.memory_space<vmem>>, vector<46x128xf32>
    %c6 = arith.constant 6 : index
    %c0_89 = arith.constant 0 : index
    %c0_90 = arith.constant 0 : index
    %81 = vector.load %arg3[%c6, %c0_89, %c0_90] : memref<12x128x128xf32, #tpu.memory_space<vmem>>, vector<1x128x128xf32>
    %82 = vector.shape_cast %81 : vector<1x128x128xf32> to vector<128x128xf32>
    %cst_91 = arith.constant dense<0.000000e+00> : vector<46x128xf32>
    %83 = tpu.matmul %80, %82, %cst_91 {dimension_numbers = #tpu.dot_dimension_numbers<[1], [0], [0], [1], [0, 0, 1, 1], [], []>} : vector<46x128xf32>, vector<128x128xf32>, vector<46x128xf32> -> vector<46x128xf32>
    %c1_92 = arith.constant 1 : index
    %c0_93 = arith.constant 0 : index
    %84 = vector.load %arg14[%c1_92, %c0_93] : memref<48x128xf32, #tpu.memory_space<vmem>>, vector<46x128xf32>
    %c7 = arith.constant 7 : index
    %c0_94 = arith.constant 0 : index
    %c0_95 = arith.constant 0 : index
    %85 = vector.load %arg3[%c7, %c0_94, %c0_95] : memref<12x128x128xf32, #tpu.memory_space<vmem>>, vector<1x128x128xf32>
    %86 = vector.shape_cast %85 : vector<1x128x128xf32> to vector<128x128xf32>
    %cst_96 = arith.constant dense<0.000000e+00> : vector<46x128xf32>
    %87 = tpu.matmul %84, %86, %cst_96 {dimension_numbers = #tpu.dot_dimension_numbers<[1], [0], [0], [1], [0, 0, 1, 1], [], []>} : vector<46x128xf32>, vector<128x128xf32>, vector<46x128xf32> -> vector<46x128xf32>
    %88 = arith.addf %83, %87 : vector<46x128xf32>
    %c2_97 = arith.constant 2 : index
    %c0_98 = arith.constant 0 : index
    %89 = vector.load %arg14[%c2_97, %c0_98] : memref<48x128xf32, #tpu.memory_space<vmem>>, vector<46x128xf32>
    %c8 = arith.constant 8 : index
    %c0_99 = arith.constant 0 : index
    %c0_100 = arith.constant 0 : index
    %90 = vector.load %arg3[%c8, %c0_99, %c0_100] : memref<12x128x128xf32, #tpu.memory_space<vmem>>, vector<1x128x128xf32>
    %91 = vector.shape_cast %90 : vector<1x128x128xf32> to vector<128x128xf32>
    %cst_101 = arith.constant dense<0.000000e+00> : vector<46x128xf32>
    %92 = tpu.matmul %89, %91, %cst_101 {dimension_numbers = #tpu.dot_dimension_numbers<[1], [0], [0], [1], [0, 0, 1, 1], [], []>} : vector<46x128xf32>, vector<128x128xf32>, vector<46x128xf32> -> vector<46x128xf32>
    %93 = arith.addf %88, %92 : vector<46x128xf32>
    %c2_102 = arith.constant 2 : index
    %c0_103 = arith.constant 0 : index
    %c0_104 = arith.constant 0 : index
    %94 = vector.load %arg4[%c2_102, %c0_103, %c0_104] : memref<4x1x128xf32, #tpu.memory_space<vmem>>, vector<1x1x128xf32>
    %95 = vector.shape_cast %94 : vector<1x1x128xf32> to vector<1x128xf32>
    %96 = vector.broadcast %95 : vector<1x128xf32> to vector<46x128xf32>
    %97 = arith.addf %93, %96 : vector<46x128xf32>
    %cst_105 = arith.constant 0.000000e+00 : f32
    %98 = vector.broadcast %cst_105 : f32 to vector<46x128xf32>
    %99 = arith.maximumf %97, %98 : vector<46x128xf32>
    %100 = vector.extract_strided_slice %99 {offsets = [0, 0], sizes = [16, 128], strides = [1, 1]} : vector<46x128xf32> to vector<16x128xf32>
    %c1_106 = arith.constant 1 : index
    %c0_107 = arith.constant 0 : index
    %101 = vector.load %arg15[%c1_106, %c0_107] : memref<48x128xf32, #tpu.memory_space<vmem>>, vector<16x128xf32>
    tpu.vector_store %arg15[%c1_106, %c0_107], %100 {strides = array<i32>} : memref<48x128xf32, #tpu.memory_space<vmem>>, vector<16x128xf32>,
    %102 = vector.extract_strided_slice %99 {offsets = [24, 0], sizes = [16, 128], strides = [1, 1]} : vector<46x128xf32> to vector<16x128xf32>
    %c25_108 = arith.constant 25 : index
    %c0_109 = arith.constant 0 : index
    %103 = vector.load %arg15[%c25_108, %c0_109] : memref<48x128xf32, #tpu.memory_space<vmem>>, vector<16x128xf32>
    tpu.vector_store %arg15[%c25_108, %c0_109], %102 {strides = array<i32>} : memref<48x128xf32, #tpu.memory_space<vmem>>, vector<16x128xf32>,
    %c0_110 = arith.constant 0 : index
    %c0_111 = arith.constant 0 : index
    %104 = vector.load %arg15[%c0_110, %c0_111] : memref<48x128xf32, #tpu.memory_space<vmem>>, vector<46x128xf32>
    %c9 = arith.constant 9 : index
    %c0_112 = arith.constant 0 : index
    %c0_113 = arith.constant 0 : index
    %105 = vector.load %arg3[%c9, %c0_112, %c0_113] : memref<12x128x128xf32, #tpu.memory_space<vmem>>, vector<1x128x128xf32>
    %106 = vector.shape_cast %105 : vector<1x128x128xf32> to vector<128x128xf32>
    %cst_114 = arith.constant dense<0.000000e+00> : vector<46x128xf32>
    %107 = tpu.matmul %104, %106, %cst_114 {dimension_numbers = #tpu.dot_dimension_numbers<[1], [0], [0], [1], [0, 0, 1, 1], [], []>} : vector<46x128xf32>, vector<128x128xf32>, vector<46x128xf32> -> vector<46x128xf32>
    %c1_115 = arith.constant 1 : index
    %c0_116 = arith.constant 0 : index
    %108 = vector.load %arg15[%c1_115, %c0_116] : memref<48x128xf32, #tpu.memory_space<vmem>>, vector<46x128xf32>
    %c10 = arith.constant 10 : index
    %c0_117 = arith.constant 0 : index
    %c0_118 = arith.constant 0 : index
    %109 = vector.load %arg3[%c10, %c0_117, %c0_118] : memref<12x128x128xf32, #tpu.memory_space<vmem>>, vector<1x128x128xf32>
    %110 = vector.shape_cast %109 : vector<1x128x128xf32> to vector<128x128xf32>
    %cst_119 = arith.constant dense<0.000000e+00> : vector<46x128xf32>
    %111 = tpu.matmul %108, %110, %cst_119 {dimension_numbers = #tpu.dot_dimension_numbers<[1], [0], [0], [1], [0, 0, 1, 1], [], []>} : vector<46x128xf32>, vector<128x128xf32>, vector<46x128xf32> -> vector<46x128xf32>
    %112 = arith.addf %107, %111 : vector<46x128xf32>
    %c2_120 = arith.constant 2 : index
    %c0_121 = arith.constant 0 : index
    %113 = vector.load %arg15[%c2_120, %c0_121] : memref<48x128xf32, #tpu.memory_space<vmem>>, vector<46x128xf32>
    %c11 = arith.constant 11 : index
    %c0_122 = arith.constant 0 : index
    %c0_123 = arith.constant 0 : index
    %114 = vector.load %arg3[%c11, %c0_122, %c0_123] : memref<12x128x128xf32, #tpu.memory_space<vmem>>, vector<1x128x128xf32>
    %115 = vector.shape_cast %114 : vector<1x128x128xf32> to vector<128x128xf32>
    %cst_124 = arith.constant dense<0.000000e+00> : vector<46x128xf32>
    %116 = tpu.matmul %113, %115, %cst_124 {dimension_numbers = #tpu.dot_dimension_numbers<[1], [0], [0], [1], [0, 0, 1, 1], [], []>} : vector<46x128xf32>, vector<128x128xf32>, vector<46x128xf32> -> vector<46x128xf32>
    %117 = arith.addf %112, %116 : vector<46x128xf32>
    %c3_125 = arith.constant 3 : index
    %c0_126 = arith.constant 0 : index
    %c0_127 = arith.constant 0 : index
    %118 = vector.load %arg4[%c3_125, %c0_126, %c0_127] : memref<4x1x128xf32, #tpu.memory_space<vmem>>, vector<1x1x128xf32>
    %119 = vector.shape_cast %118 : vector<1x1x128xf32> to vector<1x128xf32>
    %120 = vector.broadcast %119 : vector<1x128xf32> to vector<46x128xf32>
    %121 = arith.addf %117, %120 : vector<46x128xf32>
    %c1_128 = arith.constant 1 : index
    %c0_129 = arith.constant 0 : index
    %122 = vector.load %arg14[%c1_128, %c0_129] : memref<48x128xf32, #tpu.memory_space<vmem>>, vector<16x128xf32>
    %123 = vector.extract_strided_slice %121 {offsets = [0, 0], sizes = [16, 128], strides = [1, 1]} : vector<46x128xf32> to vector<16x128xf32>
    %124 = arith.addf %122, %123 : vector<16x128xf32>
    %c1_130 = arith.constant 1 : index
    %c0_131 = arith.constant 0 : index
    %125 = vector.load %arg14[%c1_130, %c0_131] : memref<48x128xf32, #tpu.memory_space<vmem>>, vector<16x128xf32>
    tpu.vector_store %arg14[%c1_130, %c0_131], %124 {strides = array<i32>} : memref<48x128xf32, #tpu.memory_space<vmem>>, vector<16x128xf32>,
    %c25_132 = arith.constant 25 : index
    %c0_133 = arith.constant 0 : index
    %126 = vector.load %arg14[%c25_132, %c0_133] : memref<48x128xf32, #tpu.memory_space<vmem>>, vector<16x128xf32>
    %127 = vector.extract_strided_slice %121 {offsets = [24, 0], sizes = [16, 128], strides = [1, 1]} : vector<46x128xf32> to vector<16x128xf32>
    %128 = arith.addf %126, %127 : vector<16x128xf32>
    %c25_134 = arith.constant 25 : index
    %c0_135 = arith.constant 0 : index
    %129 = vector.load %arg14[%c25_134, %c0_135] : memref<48x128xf32, #tpu.memory_space<vmem>>, vector<16x128xf32>
    tpu.vector_store %arg14[%c25_134, %c0_135], %128 {strides = array<i32>} : memref<48x128xf32, #tpu.memory_space<vmem>>, vector<16x128xf32>,
    %c0_136 = arith.constant 0 : index
    %c0_137 = arith.constant 0 : index
    %130 = vector.load %arg14[%c0_136, %c0_137] : memref<48x128xf32, #tpu.memory_space<vmem>>, vector<46x128xf32>
    %c0_138 = arith.constant 0 : index
    %c0_139 = arith.constant 0 : index
    %c0_140 = arith.constant 0 : index
    %131 = vector.load %arg5[%c0_138, %c0_139, %c0_140] : memref<3x128x512xf32, #tpu.memory_space<vmem>>, vector<1x128x512xf32>
    %132 = vector.shape_cast %131 : vector<1x128x512xf32> to vector<128x512xf32>
    %cst_141 = arith.constant dense<0.000000e+00> : vector<46x512xf32>
    %133 = tpu.matmul %130, %132, %cst_141 {dimension_numbers = #tpu.dot_dimension_numbers<[1], [0], [0], [1], [0, 0, 1, 1], [], []>} : vector<46x128xf32>, vector<128x512xf32>, vector<46x512xf32> -> vector<46x512xf32>
    %c1_142 = arith.constant 1 : index
    %c0_143 = arith.constant 0 : index
    %134 = vector.load %arg14[%c1_142, %c0_143] : memref<48x128xf32, #tpu.memory_space<vmem>>, vector<46x128xf32>
    %c1_144 = arith.constant 1 : index
    %c0_145 = arith.constant 0 : index
    %c0_146 = arith.constant 0 : index
    %135 = vector.load %arg5[%c1_144, %c0_145, %c0_146] : memref<3x128x512xf32, #tpu.memory_space<vmem>>, vector<1x128x512xf32>
    %136 = vector.shape_cast %135 : vector<1x128x512xf32> to vector<128x512xf32>
    %cst_147 = arith.constant dense<0.000000e+00> : vector<46x512xf32>
    %137 = tpu.matmul %134, %136, %cst_147 {dimension_numbers = #tpu.dot_dimension_numbers<[1], [0], [0], [1], [0, 0, 1, 1], [], []>} : vector<46x128xf32>, vector<128x512xf32>, vector<46x512xf32> -> vector<46x512xf32>
    %138 = arith.addf %133, %137 : vector<46x512xf32>
    %c2_148 = arith.constant 2 : index
    %c0_149 = arith.constant 0 : index
    %139 = vector.load %arg14[%c2_148, %c0_149] : memref<48x128xf32, #tpu.memory_space<vmem>>, vector<46x128xf32>
    %c2_150 = arith.constant 2 : index
    %c0_151 = arith.constant 0 : index
    %c0_152 = arith.constant 0 : index
    %140 = vector.load %arg5[%c2_150, %c0_151, %c0_152] : memref<3x128x512xf32, #tpu.memory_space<vmem>>, vector<1x128x512xf32>
    %141 = vector.shape_cast %140 : vector<1x128x512xf32> to vector<128x512xf32>
    %cst_153 = arith.constant dense<0.000000e+00> : vector<46x512xf32>
    %142 = tpu.matmul %139, %141, %cst_153 {dimension_numbers = #tpu.dot_dimension_numbers<[1], [0], [0], [1], [0, 0, 1, 1], [], []>} : vector<46x128xf32>, vector<128x512xf32>, vector<46x512xf32> -> vector<46x512xf32>
    %143 = arith.addf %138, %142 : vector<46x512xf32>
    %c0_154 = arith.constant 0 : index
    %c0_155 = arith.constant 0 : index
    %144 = vector.load %arg6[%c0_154, %c0_155] : memref<1x512xf32, #tpu.memory_space<vmem>>, vector<1x512xf32>
    %145 = vector.broadcast %144 : vector<1x512xf32> to vector<46x512xf32>
    %146 = arith.addf %143, %145 : vector<46x512xf32>
    %cst_156 = arith.constant 0.000000e+00 : f32
    %147 = vector.broadcast %cst_156 : f32 to vector<46x512xf32>
    %148 = arith.cmpf oge, %146, %147 : vector<46x512xf32>
    %c0_157 = arith.constant 0 : index
    %c0_158 = arith.constant 0 : index
    %149 = vector.load %arg7[%c0_157, %c0_158] : memref<1x512xf32, #tpu.memory_space<vmem>>, vector<1x512xf32>
    %150 = vector.broadcast %149 : vector<1x512xf32> to vector<46x512xf32>
    %151 = arith.mulf %146, %150 : vector<46x512xf32>
    %152 = arith.select %148, %146, %151 : vector<46x512xi1>, vector<46x512xf32>
    %153 = vector.extract_strided_slice %152 {offsets = [0, 0], sizes = [16, 512], strides = [1, 1]} : vector<46x512xf32> to vector<16x512xf32>
    %154 = vector.shape_cast %153 : vector<16x512xf32> to vector<32x256xf32>
    %c1_159 = arith.constant 1 : index
    %c0_160 = arith.constant 0 : index
    %155 = vector.load %arg16[%c1_159, %c0_160] : memref<80x256xf32, #tpu.memory_space<vmem>>, vector<32x256xf32>
    tpu.vector_store %arg16[%c1_159, %c0_160], %154 {strides = array<i32>} : memref<80x256xf32, #tpu.memory_space<vmem>>, vector<32x256xf32>,
    %156 = vector.extract_strided_slice %152 {offsets = [24, 0], sizes = [16, 512], strides = [1, 1]} : vector<46x512xf32> to vector<16x512xf32>
    %157 = vector.shape_cast %156 : vector<16x512xf32> to vector<32x256xf32>
    %c41_161 = arith.constant 41 : index
    %c0_162 = arith.constant 0 : index
    %158 = vector.load %arg16[%c41_161, %c0_162] : memref<80x256xf32, #tpu.memory_space<vmem>>, vector<32x256xf32>
    tpu.vector_store %arg16[%c41_161, %c0_162], %157 {strides = array<i32>} : memref<80x256xf32, #tpu.memory_space<vmem>>, vector<32x256xf32>,
    %c0_163 = arith.constant 0 : index
    %c0_164 = arith.constant 0 : index
    %159 = vector.load %arg16[%c0_163, %c0_164] : memref<80x256xf32, #tpu.memory_space<vmem>>, vector<78x256xf32>
    %c0_165 = arith.constant 0 : index
    %c0_166 = arith.constant 0 : index
    %c0_167 = arith.constant 0 : index
    %160 = vector.load %arg8[%c0_165, %c0_166, %c0_167] : memref<3x256x256xf32, #tpu.memory_space<vmem>>, vector<1x256x256xf32>
    %161 = vector.shape_cast %160 : vector<1x256x256xf32> to vector<256x256xf32>
    %cst_168 = arith.constant dense<0.000000e+00> : vector<78x256xf32>
    %162 = tpu.matmul %159, %161, %cst_168 {dimension_numbers = #tpu.dot_dimension_numbers<[1], [0], [0], [1], [0, 0, 1, 1], [], []>} : vector<78x256xf32>, vector<256x256xf32>, vector<78x256xf32> -> vector<78x256xf32>
    %c1_169 = arith.constant 1 : index
    %c0_170 = arith.constant 0 : index
    %163 = vector.load %arg16[%c1_169, %c0_170] : memref<80x256xf32, #tpu.memory_space<vmem>>, vector<78x256xf32>
    %c1_171 = arith.constant 1 : index
    %c0_172 = arith.constant 0 : index
    %c0_173 = arith.constant 0 : index
    %164 = vector.load %arg8[%c1_171, %c0_172, %c0_173] : memref<3x256x256xf32, #tpu.memory_space<vmem>>, vector<1x256x256xf32>
    %165 = vector.shape_cast %164 : vector<1x256x256xf32> to vector<256x256xf32>
    %cst_174 = arith.constant dense<0.000000e+00> : vector<78x256xf32>
    %166 = tpu.matmul %163, %165, %cst_174 {dimension_numbers = #tpu.dot_dimension_numbers<[1], [0], [0], [1], [0, 0, 1, 1], [], []>} : vector<78x256xf32>, vector<256x256xf32>, vector<78x256xf32> -> vector<78x256xf32>
    %167 = arith.addf %162, %166 : vector<78x256xf32>
    %c2_175 = arith.constant 2 : index
    %c0_176 = arith.constant 0 : index
    %168 = vector.load %arg16[%c2_175, %c0_176] : memref<80x256xf32, #tpu.memory_space<vmem>>, vector<78x256xf32>
    %c2_177 = arith.constant 2 : index
    %c0_178 = arith.constant 0 : index
    %c0_179 = arith.constant 0 : index
    %169 = vector.load %arg8[%c2_177, %c0_178, %c0_179] : memref<3x256x256xf32, #tpu.memory_space<vmem>>, vector<1x256x256xf32>
    %170 = vector.shape_cast %169 : vector<1x256x256xf32> to vector<256x256xf32>
    %cst_180 = arith.constant dense<0.000000e+00> : vector<78x256xf32>
    %171 = tpu.matmul %168, %170, %cst_180 {dimension_numbers = #tpu.dot_dimension_numbers<[1], [0], [0], [1], [0, 0, 1, 1], [], []>} : vector<78x256xf32>, vector<256x256xf32>, vector<78x256xf32> -> vector<78x256xf32>
    %172 = arith.addf %167, %171 : vector<78x256xf32>
    %c0_181 = arith.constant 0 : index
    %c0_182 = arith.constant 0 : index
    %173 = vector.load %arg9[%c0_181, %c0_182] : memref<1x256xf32, #tpu.memory_space<vmem>>, vector<1x256xf32>
    %174 = vector.broadcast %173 : vector<1x256xf32> to vector<78x256xf32>
    %175 = arith.addf %172, %174 : vector<78x256xf32>
    %cst_183 = arith.constant 0.000000e+00 : f32
    %176 = vector.broadcast %cst_183 : f32 to vector<78x256xf32>
    %177 = arith.cmpf oge, %175, %176 : vector<78x256xf32>
    %c0_184 = arith.constant 0 : index
    %c0_185 = arith.constant 0 : index
    %178 = vector.load %arg10[%c0_184, %c0_185] : memref<1x256xf32, #tpu.memory_space<vmem>>, vector<1x256xf32>
    %179 = vector.broadcast %178 : vector<1x256xf32> to vector<78x256xf32>
    %180 = arith.mulf %175, %179 : vector<78x256xf32>
    %181 = arith.select %177, %175, %180 : vector<78x256xi1>, vector<78x256xf32>
    %182 = vector.extract_strided_slice %181 {offsets = [0, 0], sizes = [32, 256], strides = [1, 1]} : vector<78x256xf32> to vector<32x256xf32>
    %c1_186 = arith.constant 1 : index
    %c0_187 = arith.constant 0 : index
    %183 = vector.load %arg16[%c1_186, %c0_187] : memref<80x256xf32, #tpu.memory_space<vmem>>, vector<32x256xf32>
    tpu.vector_store %arg16[%c1_186, %c0_187], %182 {strides = array<i32>} : memref<80x256xf32, #tpu.memory_space<vmem>>, vector<32x256xf32>,
    %184 = vector.extract_strided_slice %181 {offsets = [40, 0], sizes = [32, 256], strides = [1, 1]} : vector<78x256xf32> to vector<32x256xf32>
    %c41_188 = arith.constant 41 : index
    %c0_189 = arith.constant 0 : index
    %185 = vector.load %arg16[%c41_188, %c0_189] : memref<80x256xf32, #tpu.memory_space<vmem>>, vector<32x256xf32>
    tpu.vector_store %arg16[%c41_188, %c0_189], %184 {strides = array<i32>} : memref<80x256xf32, #tpu.memory_space<vmem>>, vector<32x256xf32>,
    %c0_190 = arith.constant 0 : index
    %c0_191 = arith.constant 0 : index
    %186 = vector.load %arg16[%c0_190, %c0_191] : memref<80x256xf32, #tpu.memory_space<vmem>>, vector<78x256xf32>
    %c0_192 = arith.constant 0 : index
    %c0_193 = arith.constant 0 : index
    %c0_194 = arith.constant 0 : index
    %187 = vector.load %arg11[%c0_192, %c0_193, %c0_194] : memref<3x256x128xf32, #tpu.memory_space<vmem>>, vector<1x256x128xf32>
    %188 = vector.shape_cast %187 : vector<1x256x128xf32> to vector<256x128xf32>
    %cst_195 = arith.constant dense<0.000000e+00> : vector<78x128xf32>
    %189 = tpu.matmul %186, %188, %cst_195 {dimension_numbers = #tpu.dot_dimension_numbers<[1], [0], [0], [1], [0, 0, 1, 1], [], []>} : vector<78x256xf32>, vector<256x128xf32>, vector<78x128xf32> -> vector<78x128xf32>
    %c1_196 = arith.constant 1 : index
    %c0_197 = arith.constant 0 : index
    %190 = vector.load %arg16[%c1_196, %c0_197] : memref<80x256xf32, #tpu.memory_space<vmem>>, vector<78x256xf32>
    %c1_198 = arith.constant 1 : index
    %c0_199 = arith.constant 0 : index
    %c0_200 = arith.constant 0 : index
    %191 = vector.load %arg11[%c1_198, %c0_199, %c0_200] : memref<3x256x128xf32, #tpu.memory_space<vmem>>, vector<1x256x128xf32>
    %192 = vector.shape_cast %191 : vector<1x256x128xf32> to vector<256x128xf32>
    %cst_201 = arith.constant dense<0.000000e+00> : vector<78x128xf32>
    %193 = tpu.matmul %190, %192, %cst_201 {dimension_numbers = #tpu.dot_dimension_numbers<[1], [0], [0], [1], [0, 0, 1, 1], [], []>} : vector<78x256xf32>, vector<256x128xf32>, vector<78x128xf32> -> vector<78x128xf32>
    %194 = arith.addf %189, %193 : vector<78x128xf32>
    %c2_202 = arith.constant 2 : index
    %c0_203 = arith.constant 0 : index
    %195 = vector.load %arg16[%c2_202, %c0_203] : memref<80x256xf32, #tpu.memory_space<vmem>>, vector<78x256xf32>
    %c2_204 = arith.constant 2 : index
    %c0_205 = arith.constant 0 : index
    %c0_206 = arith.constant 0 : index
    %196 = vector.load %arg11[%c2_204, %c0_205, %c0_206] : memref<3x256x128xf32, #tpu.memory_space<vmem>>, vector<1x256x128xf32>
    %197 = vector.shape_cast %196 : vector<1x256x128xf32> to vector<256x128xf32>
    %cst_207 = arith.constant dense<0.000000e+00> : vector<78x128xf32>
    %198 = tpu.matmul %195, %197, %cst_207 {dimension_numbers = #tpu.dot_dimension_numbers<[1], [0], [0], [1], [0, 0, 1, 1], [], []>} : vector<78x256xf32>, vector<256x128xf32>, vector<78x128xf32> -> vector<78x128xf32>
    %199 = arith.addf %194, %198 : vector<78x128xf32>
    %c0_208 = arith.constant 0 : index
    %c0_209 = arith.constant 0 : index
    %200 = vector.load %arg12[%c0_208, %c0_209] : memref<1x128xf32, #tpu.memory_space<vmem>>, vector<1x128xf32>
    %201 = vector.broadcast %200 : vector<1x128xf32> to vector<78x128xf32>
    %202 = arith.addf %199, %201 : vector<78x128xf32>
    %203 = vector.extract_strided_slice %202 {offsets = [0, 0], sizes = [32, 128], strides = [1, 1]} : vector<78x128xf32> to vector<32x128xf32>
    %c0_210 = arith.constant 0 : index
    %c0_211 = arith.constant 0 : index
    %c0_212 = arith.constant 0 : index
    %204 = vector.load %arg2[%c0_210, %c0_211, %c0_212] : memref<2x32x128xf32, #tpu.memory_space<vmem>>, vector<1x32x128xf32>
    %205 = vector.shape_cast %204 : vector<1x32x128xf32> to vector<32x128xf32>
    %206 = arith.addf %203, %205 : vector<32x128xf32>
    %cst_213 = arith.constant 0.000000e+00 : f32
    %cst_214 = arith.constant 1.000000e+00 : f32
    %207 = vector.broadcast %cst_213 : f32 to vector<32x128xf32>
    %208 = arith.maximumf %207, %206 : vector<32x128xf32>
    %209 = vector.broadcast %cst_214 : f32 to vector<32x128xf32>
    %210 = arith.minimumf %209, %208 : vector<32x128xf32>
    %c0_215 = arith.constant 0 : index
    %c0_216 = arith.constant 0 : index
    %c0_217 = arith.constant 0 : index
    %211 = vector.load %arg13[%c0_215, %c0_216, %c0_217] : memref<2x32x128xf32, #tpu.memory_space<vmem>>, vector<1x32x128xf32>
    %212 = vector.shape_cast %211 : vector<1x32x128xf32> to vector<32x128xf32>
    %213 = vector.shape_cast %210 : vector<32x128xf32> to vector<1x32x128xf32>
    tpu.vector_store %arg13[%c0_215, %c0_216, %c0_217], %213 {strides = array<i32>} : memref<2x32x128xf32, #tpu.memory_space<vmem>>, vector<1x32x128xf32>,
    %214 = vector.extract_strided_slice %202 {offsets = [40, 0], sizes = [32, 128], strides = [1, 1]} : vector<78x128xf32> to vector<32x128xf32>
    %c1_218 = arith.constant 1 : index
    %c0_219 = arith.constant 0 : index
    %c0_220 = arith.constant 0 : index
    %215 = vector.load %arg2[%c1_218, %c0_219, %c0_220] : memref<2x32x128xf32, #tpu.memory_space<vmem>>, vector<1x32x128xf32>
    %216 = vector.shape_cast %215 : vector<1x32x128xf32> to vector<32x128xf32>
    %217 = arith.addf %214, %216 : vector<32x128xf32>
    %cst_221 = arith.constant 0.000000e+00 : f32
    %cst_222 = arith.constant 1.000000e+00 : f32
    %218 = vector.broadcast %cst_221 : f32 to vector<32x128xf32>
    %219 = arith.maximumf %218, %217 : vector<32x128xf32>
    %220 = vector.broadcast %cst_222 : f32 to vector<32x128xf32>
    %221 = arith.minimumf %220, %219 : vector<32x128xf32>
    %c1_223 = arith.constant 1 : index
    %c0_224 = arith.constant 0 : index
    %c0_225 = arith.constant 0 : index
    %222 = vector.load %arg13[%c1_223, %c0_224, %c0_225] : memref<2x32x128xf32, #tpu.memory_space<vmem>>, vector<1x32x128xf32>
    %223 = vector.shape_cast %222 : vector<1x32x128xf32> to vector<32x128xf32>
    %224 = vector.shape_cast %221 : vector<32x128xf32> to vector<1x32x128xf32>
    tpu.vector_store %arg13[%c1_223, %c0_224, %c0_225], %224 {strides = array<i32>} : memref<2x32x128xf32, #tpu.memory_space<vmem>>, vector<1x32x128xf32>,
    return
  }
  func.func @transform_0(%arg0: i32) -> (i32, i32, i32) {
    %c0_i32 = arith.constant 0 : i32
    %c0_i32_0 = arith.constant 0 : i32
    %c0_i32_1 = arith.constant 0 : i32
    return %arg0, %c0_i32, %c0_i32_0 : i32, i32, i32
  }
  func.func @transform_1(%arg0: i32) -> (i32, i32, i32) {
    %c0_i32 = arith.constant 0 : i32
    %c0_i32_0 = arith.constant 0 : i32
    %c0_i32_1 = arith.constant 0 : i32
    return %arg0, %c0_i32, %c0_i32_0 : i32, i32, i32
  }
  func.func @transform_2(%arg0: i32) -> (i32, i32, i32) {
    %c0_i32 = arith.constant 0 : i32
    %c0_i32_0 = arith.constant 0 : i32
    %c0_i32_1 = arith.constant 0 : i32
    %c0_i32_2 = arith.constant 0 : i32
    return %c0_i32, %c0_i32_0, %c0_i32_1 : i32, i32, i32
  }
  func.func @transform_3(%arg0: i32) -> (i32, i32, i32) {
    %c0_i32 = arith.constant 0 : i32
    %c0_i32_0 = arith.constant 0 : i32
    %c0_i32_1 = arith.constant 0 : i32
    %c0_i32_2 = arith.constant 0 : i32
    return %c0_i32, %c0_i32_0, %c0_i32_1 : i32, i32, i32
  }
  func.func @transform_4(%arg0: i32) -> (i32, i32, i32) {
    %c0_i32 = arith.constant 0 : i32
    %c0_i32_0 = arith.constant 0 : i32
    %c0_i32_1 = arith.constant 0 : i32
    %c0_i32_2 = arith.constant 0 : i32
    return %c0_i32, %c0_i32_0, %c0_i32_1 : i32, i32, i32
  }
  func.func @transform_5(%arg0: i32) -> (i32, i32) {
    %c0_i32 = arith.constant 0 : i32
    %c0_i32_0 = arith.constant 0 : i32
    %c0_i32_1 = arith.constant 0 : i32
    return %c0_i32, %c0_i32_0 : i32, i32
  }
  func.func @transform_6(%arg0: i32) -> (i32, i32) {
    %c0_i32 = arith.constant 0 : i32
    %c0_i32_0 = arith.constant 0 : i32
    %c0_i32_1 = arith.constant 0 : i32
    return %c0_i32, %c0_i32_0 : i32, i32
  }
  func.func @transform_7(%arg0: i32) -> (i32, i32, i32) {
    %c0_i32 = arith.constant 0 : i32
    %c0_i32_0 = arith.constant 0 : i32
    %c0_i32_1 = arith.constant 0 : i32
    %c0_i32_2 = arith.constant 0 : i32
    return %c0_i32, %c0_i32_0, %c0_i32_1 : i32, i32, i32
  }
  func.func @transform_8(%arg0: i32) -> (i32, i32) {
    %c0_i32 = arith.constant 0 : i32
    %c0_i32_0 = arith.constant 0 : i32
    %c0_i32_1 = arith.constant 0 : i32
    return %c0_i32, %c0_i32_0 : i32, i32
  }
  func.func @transform_9(%arg0: i32) -> (i32, i32) {
    %c0_i32 = arith.constant 0 : i32
    %c0_i32_0 = arith.constant 0 : i32
    %c0_i32_1 = arith.constant 0 : i32
    return %c0_i32, %c0_i32_0 : i32, i32
  }
  func.func @transform_10(%arg0: i32) -> (i32, i32, i32) {
    %c0_i32 = arith.constant 0 : i32
    %c0_i32_0 = arith.constant 0 : i32
    %c0_i32_1 = arith.constant 0 : i32
    %c0_i32_2 = arith.constant 0 : i32
    return %c0_i32, %c0_i32_0, %c0_i32_1 : i32, i32, i32
  }
  func.func @transform_11(%arg0: i32) -> (i32, i32) {
    %c0_i32 = arith.constant 0 : i32
    %c0_i32_0 = arith.constant 0 : i32
    %c0_i32_1 = arith.constant 0 : i32
    return %c0_i32, %c0_i32_0 : i32, i32
  }
  func.func @transform_12(%arg0: i32) -> (i32, i32, i32) {
    %c0_i32 = arith.constant 0 : i32
    %c0_i32_0 = arith.constant 0 : i32
    %c0_i32_1 = arith.constant 0 : i32
    return %arg0, %c0_i32, %c0_i32_0 : i32, i32, i32
  }
}

</mosaic_0001>

<llo_original>
// kernel: tile.48
$region0: #{tile.48}
  #allocation2 [shape = 's32[1]{0}', space=sflag, size = 0x4, scoped, tag = 'scoped memory for tile.48']
  %s0 = inlined_call_operand.hbm [shape: f32[8], index: 0, kind: input, shape index: {}]
  %s1 = inlined_call_operand.vmem [shape: f32[16,8], index: 1, kind: output, shape index: {}]
  $region1: #{tile.48} parent=0
    #allocation0 [shape = 'u8[512]{0}', space=vmem, size = 0x400, scoped, tag = 'operand span for operand 0']
    #allocation1 [shape = 's32[1]{0}', space=sflag, size = 0x4, scoped, tag = 'scoped memory for tile.48']
    %2 = vsyncpa [#allocation1], 0
    // Predicated region
    $region2: #{tile.48} parent=1 // pred_check
      _
    $region3: #{tile.48} parent=1 // pred_check_branch
      %4 = sbr.rel (0) target = $region5
    $region4: #{tile.48} parent=1 // pred_region
      %6 = vsyncadd [#allocation1], 0
      %s8 = sshll.u32 %s0, 4
      %s9 = int_to_ptr.hbm [resolvable:$true] %s8
      %s10 = sshll.u32 [#allocation0], 4
      %s11 = int_to_ptr.vmem [resolvable:$true] %s10
      %13 = dma.hbm_to_vmem [thread:$0]  %s9, 16, %s11, [#allocation1]
    $region5: #{tile.48} parent=1 // pred_fallthru
      _
    // Predicated region
    $region6: #{tile.48} parent=1 // pred_check
      _
    $region7: #{tile.48} parent=1 // pred_check_branch
      %15 = sbr.rel (0) target = $region9
    $region8: #{tile.48} parent=1 // pred_region
      %17 = dma.done [#allocation1], 16
    $region9: #{tile.48} parent=1 // pred_fallthru
      _
    %v18 = vld [vmem:[#allocation0] ss:$0 sm:$0xff]
    %19 = vst [vmem:[%s1] sm:$0xff] %v18
    %s20 = scalar_lea.vmem %s1, 8
    %21 = vst [vmem:[%s20] sm:$0xff] %v18
    %22 = vsyncpa [#allocation1], 1

// kernel: tile.61
$region0: #{tile.61}
  %s0 = inlined_call_operand.vmem [shape: f32[16,8], index: 0, kind: input, shape index: {}]
  %s1 = inlined_call_operand.vmem [shape: f32[1,1,128], index: 1, kind: output, shape index: {}]
  $region1: #{tile.61} parent=0
    #allocation0 [shape = 'u8[4096]{0}', space=vmem, size = 0x1000, scoped, tag = 'scoped mem for output reshape']
    %v2 = vld [vmem:[%s0] sm:$0x1]
    %vm3 = vcmask 64512
    %4 = vst.msk [vmem:[#allocation0] sm:$0x1] %vm3, %v2
    %s5 = scalar_lea.vmem %s0, 15
    %v6 = vld [vmem:[%s5] sm:$0x1]
    %7 = vrot.lane.b32.xlu0 %v6, 120
    %v8 = vpop.permute.xlu0 %7
    %vm9 = vcmask 1048512
    %10 = vst.msk [vmem:[#allocation0] sm:$0x1] %vm9, %v8
    %s11 = scalar_lea.vmem %s0, 14
    %v12 = vld [vmem:[%s11] sm:$0x1]
    %13 = vrot.lane.b32.xlu0 %v12, 112
    %v14 = vpop.permute.xlu0 %13
    %vm15 = vcmask 982912
    %16 = vst.msk [vmem:[#allocation0] sm:$0x1] %vm15, %v14
    %s17 = scalar_lea.vmem %s0, 13
    %v18 = vld [vmem:[%s17] sm:$0x1]
    %19 = vrot.lane.b32.xlu0 %v18, 104
    %v20 = vpop.permute.xlu0 %19
    %vm21 = vcmask 917312
    %22 = vst.msk [vmem:[#allocation0] sm:$0x1] %vm21, %v20
    %s23 = scalar_lea.vmem %s0, 12
    %v24 = vld [vmem:[%s23] sm:$0x1]
    %25 = vrot.lane.b32.xlu0 %v24, 96
    %v26 = vpop.permute.xlu0 %25
    %vm27 = vcmask 851712
    %28 = vst.msk [vmem:[#allocation0] sm:$0x1] %vm27, %v26
    %s29 = scalar_lea.vmem %s0, 11
    %v30 = vld [vmem:[%s29] sm:$0x1]
    %31 = vrot.lane.b32.xlu0 %v30, 88
    %v32 = vpop.permute.xlu0 %31
    %vm33 = vcmask 786112
    %34 = vst.msk [vmem:[#allocation0] sm:$0x1] %vm33, %v32
    %s35 = scalar_lea.vmem %s0, 10
    %v36 = vld [vmem:[%s35] sm:$0x1]
    %37 = vrot.lane.b32.xlu0 %v36, 80
    %v38 = vpop.permute.xlu0 %37
    %vm39 = vcmask 720512
    %40 = vst.msk [vmem:[#allocation0] sm:$0x1] %vm39, %v38
    %s41 = scalar_lea.vmem %s0, 9
    %v42 = vld [vmem:[%s41] sm:$0x1]
    %43 = vrot.lane.b32.xlu0 %v42, 72
    %v44 = vpop.permute.xlu0 %43
    %vm45 = vcmask 654912
    %46 = vst.msk [vmem:[#allocation0] sm:$0x1] %vm45, %v44
    %s47 = scalar_lea.vmem %s0, 8
    %v48 = vld [vmem:[%s47] sm:$0x1]
    %49 = vrot.lane.b32.xlu0 %v48, 64
    %v50 = vpop.permute.xlu0 %49
    %vm51 = vcmask 589312
    %52 = vst.msk [vmem:[#allocation0] sm:$0x1] %vm51, %v50
    %s53 = scalar_lea.vmem %s0, 7
    %v54 = vld [vmem:[%s53] sm:$0x1]
    %55 = vrot.lane.b32.xlu0 %v54, 56
    %v56 = vpop.permute.xlu0 %55
    %vm57 = vcmask 523712
    %58 = vst.msk [vmem:[#allocation0] sm:$0x1] %vm57, %v56
    %s59 = scalar_lea.vmem %s0, 6
    %v60 = vld [vmem:[%s59] sm:$0x1]
    %61 = vrot.lane.b32.xlu0 %v60, 48
    %v62 = vpop.permute.xlu0 %61
    %vm63 = vcmask 458112
    %64 = vst.msk [vmem:[#allocation0] sm:$0x1] %vm63, %v62
    %s65 = scalar_lea.vmem %s0, 5
    %v66 = vld [vmem:[%s65] sm:$0x1]
    %67 = vrot.lane.b32.xlu0 %v66, 40
    %v68 = vpop.permute.xlu0 %67
    %vm69 = vcmask 392512
    %70 = vst.msk [vmem:[#allocation0] sm:$0x1] %vm69, %v68
    %s71 = scalar_lea.vmem %s0, 4
    %v72 = vld [vmem:[%s71] sm:$0x1]
    %73 = vrot.lane.b32.xlu0 %v72, 32
    %v74 = vpop.permute.xlu0 %73
    %vm75 = vcmask 326912
    %76 = vst.msk [vmem:[#allocation0] sm:$0x1] %vm75, %v74
    %s77 = scalar_lea.vmem %s0, 3
    %v78 = vld [vmem:[%s77] sm:$0x1]
    %79 = vrot.lane.b32.xlu0 %v78, 24
    %v80 = vpop.permute.xlu0 %79
    %vm81 = vcmask 261312
    %82 = vst.msk [vmem:[#allocation0] sm:$0x1] %vm81, %v80
    %s83 = scalar_lea.vmem %s0, 2
    %v84 = vld [vmem:[%s83] sm:$0x1]
    %85 = vrot.lane.b32.xlu0 %v84, 16
    %v86 = vpop.permute.xlu0 %85
    %vm87 = vcmask 195712
    %88 = vst.msk [vmem:[#allocation0] sm:$0x1] %vm87, %v86
    %s89 = scalar_lea.vmem %s0, 1
    %v90 = vld [vmem:[%s89] sm:$0x1]
    %91 = vrot.lane.b32.xlu0 %v90, 8
    %v92 = vpop.permute.xlu0 %91
    %vm93 = vcmask 130112
    %94 = vst.msk [vmem:[#allocation0] sm:$0x1] %vm93, %v92
    %s96 = ssub.s32 2, 1
    %v97 = vld [vmem:[#allocation0] sm:%s96]
    %s99 = ssub.s32 2, 1
    %100 = vst [vmem:[%s1] sm:%s99] %v97

// kernel: tile.68
$region0: #{tile.68}
  #allocation2 [shape = 's32[1]{0}', space=sflag, size = 0x4, scoped, tag = 'scoped memory for tile.68']
  %s0 = inlined_call_operand.hbm [shape: f32[32], index: 0, kind: input, shape index: {}]
  %s1 = inlined_call_operand.vmem [shape: f32[16,32], index: 1, kind: output, shape index: {}]
  $region1: #{tile.68} parent=0
    #allocation0 [shape = 'u8[512]{0}', space=vmem, size = 0x400, scoped, tag = 'operand span for operand 0']
    #allocation1 [shape = 's32[1]{0}', space=sflag, size = 0x4, scoped, tag = 'scoped memory for tile.68']
    %2 = vsyncpa [#allocation1], 0
    // Predicated region
    $region2: #{tile.68} parent=1 // pred_check
      _
    $region3: #{tile.68} parent=1 // pred_check_branch
      %4 = sbr.rel (0) target = $region5
    $region4: #{tile.68} parent=1 // pred_region
      %6 = vsyncadd [#allocation1], 0
      %s8 = sshll.u32 %s0, 4
      %s9 = int_to_ptr.hbm [resolvable:$true] %s8
      %s10 = sshll.u32 [#allocation0], 4
      %s11 = int_to_ptr.vmem [resolvable:$true] %s10
      %13 = dma.hbm_to_vmem [thread:$0]  %s9, 16, %s11, [#allocation1]
    $region5: #{tile.68} parent=1 // pred_fallthru
      _
    // Predicated region
    $region6: #{tile.68} parent=1 // pred_check
      _
    $region7: #{tile.68} parent=1 // pred_check_branch
      %15 = sbr.rel (0) target = $region9
    $region8: #{tile.68} parent=1 // pred_region
      %17 = dma.done [#allocation1], 16
    $region9: #{tile.68} parent=1 // pred_fallthru
      _
    %v18 = vld [vmem:[#allocation0] ss:$0 sm:$0xff]
    %19 = vst [vmem:[%s1] sm:$0xff] %v18
    %s20 = scalar_lea.vmem %s1, 8
    %21 = vst [vmem:[%s20] sm:$0xff] %v18
    %22 = vsyncpa [#allocation1], 1

// kernel: tile.69
$region0: #{tile.69}
  %s0 = inlined_call_operand.vmem [shape: f32[16,32], index: 0, kind: input, shape index: {}]
  %s1 = inlined_call_operand.vmem [shape: f32[512], index: 1, kind: output, shape index: {}]
  $region1: #{tile.69} parent=0
    #allocation0 [shape = 'u8[4096]{0}', space=vmem, size = 0x1000, scoped, tag = 'scoped mem for output reshape']
    %v2 = vld [vmem:[%s0] ss:$4 sm:$0xf]
    %vm3 = vcmask 261120
    %4 = vst.msk [vmem:[#allocation0] sm:$0xf] %vm3, %v2
    %s5 = scalar_lea.vmem %s0, 3
    %v6 = vld [vmem:[%s5] ss:$4 sm:$0xf]
    %7 = vrot.lane.b32.xlu0 %v6, 96
    %v8 = vpop.permute.xlu0 %7
    %vm9 = vcmask 1048320
    %10 = vst.msk [vmem:[#allocation0] sm:$0xf] %vm9, %v8
    %s11 = scalar_lea.vmem %s0, 2
    %v12 = vld [vmem:[%s11] ss:$4 sm:$0xf]
    %13 = vrot.lane.b32.xlu0 %v12, 64
    %v14 = vpop.permute.xlu0 %13
    %vm15 = vcmask 785920
    %16 = vst.msk [vmem:[#allocation0] sm:$0xf] %vm15, %v14
    %s17 = scalar_lea.vmem %s0, 1
    %v18 = vld [vmem:[%s17] ss:$4 sm:$0xf]
    %19 = vrot.lane.b32.xlu0 %v18, 32
    %v20 = vpop.permute.xlu0 %19
    %vm21 = vcmask 523520
    %22 = vst.msk [vmem:[#allocation0] sm:$0xf] %vm21, %v20
    %s24 = ssub.s32 16, 1
    %v25 = vld [vmem:[#allocation0] sm:%s24]
    %s27 = ssub.s32 16, 1
    %28 = vst [vmem:[%s1] sm:%s27] %v25

// kernel: tile.88
$region0: #{tile.88}
  #allocation0 [shape = 's32[1]{0}', space=sflag, size = 0x4, scoped, tag = 'scoped memory for tile.88']
  %s0 = inlined_call_operand.vmem [shape: f32[4], index: 0, kind: input, shape index: {}]
  %s1 = inlined_call_operand.vmem [shape: f32[32,4], index: 1, kind: output, shape index: {}]
  // Predicated region
  $region2: #{tile.88} parent=0 // pred_check
    _
  $region3: #{tile.88} parent=0 // pred_check_branch
    %3 = sbr.rel (0) target = $region5
  $region4: #{tile.88} parent=0 // pred_region
    _
  $region5: #{tile.88} parent=0 // pred_fallthru
    _
  %v4 = vld [vmem:[%s0] ss:$0 sm:$0xff]
  %5 = vst [vmem:[%s1] sm:$0xff] %v4
  %s6 = scalar_lea.vmem %s1, 8
  %7 = vst [vmem:[%s6] sm:$0xff] %v4
  %s8 = scalar_lea.vmem %s1, 16
  %9 = vst [vmem:[%s8] sm:$0xff] %v4
  %s10 = scalar_lea.vmem %s1, 24
  %11 = vst [vmem:[%s10] sm:$0xff] %v4

// kernel: tile.89
$region0: #{tile.89}
  %s0 = inlined_call_operand.vmem [shape: f32[32,4], index: 0, kind: input, shape index: {}]
  %s1 = inlined_call_operand.vmem [shape: f32[1,128], index: 1, kind: output, shape index: {}]
  $region1: #{tile.89} parent=0
    #allocation0 [shape = 'u8[4096]{0}', space=vmem, size = 0x1000, scoped, tag = 'scoped mem for output reshape']
    %v2 = vld [vmem:[%s0] sm:$0x1]
    %vm3 = vcmask 31744
    %4 = vst.msk [vmem:[#allocation0] sm:$0x1] %vm3, %v2
    %s5 = scalar_lea.vmem %s0, 31
    %v6 = vld [vmem:[%s5] sm:$0x1]
    %7 = vrot.lane.b32.xlu0 %v6, 124
    %v8 = vpop.permute.xlu0 %7
    %vm9 = vcmask 1048544
    %10 = vst.msk [vmem:[#allocation0] sm:$0x1] %vm9, %v8
    %s11 = scalar_lea.vmem %s0, 30
    %v12 = vld [vmem:[%s11] sm:$0x1]
    %13 = vrot.lane.b32.xlu0 %v12, 120
    %v14 = vpop.permute.xlu0 %13
    %vm15 = vcmask 1015744
    %16 = vst.msk [vmem:[#allocation0] sm:$0x1] %vm15, %v14
    %s17 = scalar_lea.vmem %s0, 29
    %v18 = vld [vmem:[%s17] sm:$0x1]
    %19 = vrot.lane.b32.xlu0 %v18, 116
    %v20 = vpop.permute.xlu0 %19
    %vm21 = vcmask 982944
    %22 = vst.msk [vmem:[#allocation0] sm:$0x1] %vm21, %v20
    %s23 = scalar_lea.vmem %s0, 28
    %v24 = vld [vmem:[%s23] sm:$0x1]
    %25 = vrot.lane.b32.xlu0 %v24, 112
    %v26 = vpop.permute.xlu0 %25
    %vm27 = vcmask 950144
    %28 = vst.msk [vmem:[#allocation0] sm:$0x1] %vm27, %v26
    %s29 = scalar_lea.vmem %s0, 27
    %v30 = vld [vmem:[%s29] sm:$0x1]
    %31 = vrot.lane.b32.xlu0 %v30, 108
    %v32 = vpop.permute.xlu0 %31
    %vm33 = vcmask 917344
    %34 = vst.msk [vmem:[#allocation0] sm:$0x1] %vm33, %v32
    %s35 = scalar_lea.vmem %s0, 26
    %v36 = vld [vmem:[%s35] sm:$0x1]
    %37 = vrot.lane.b32.xlu0 %v36, 104
    %v38 = vpop.permute.xlu0 %37
    %vm39 = vcmask 884544
    %40 = vst.msk [vmem:[#allocation0] sm:$0x1] %vm39, %v38
    %s41 = scalar_lea.vmem %s0, 25
    %v42 = vld [vmem:[%s41] sm:$0x1]
    %43 = vrot.lane.b32.xlu0 %v42, 100
    %v44 = vpop.permute.xlu0 %43
    %vm45 = vcmask 851744
    %46 = vst.msk [vmem:[#allocation0] sm:$0x1] %vm45, %v44
    %s47 = scalar_lea.vmem %s0, 24
    %v48 = vld [vmem:[%s47] sm:$0x1]
    %49 = vrot.lane.b32.xlu0 %v48, 96
    %v50 = vpop.permute.xlu0 %49
    %vm51 = vcmask 818944
    %52 = vst.msk [vmem:[#allocation0] sm:$0x1] %vm51, %v50
    %s53 = scalar_lea.vmem %s0, 23
    %v54 = vld [vmem:[%s53] sm:$0x1]
    %55 = vrot.lane.b32.xlu0 %v54, 92
    %v56 = vpop.permute.xlu0 %55
    %vm57 = vcmask 786144
    %58 = vst.msk [vmem:[#allocation0] sm:$0x1] %vm57, %v56
    %s59 = scalar_lea.vmem %s0, 22
    %v60 = vld [vmem:[%s59] sm:$0x1]
    %61 = vrot.lane.b32.xlu0 %v60, 88
    %v62 = vpop.permute.xlu0 %61
    %vm63 = vcmask 753344
    %64 = vst.msk [vmem:[#allocation0] sm:$0x1] %vm63, %v62
    %s65 = scalar_lea.vmem %s0, 21
    %v66 = vld [vmem:[%s65] sm:$0x1]
    %67 = vrot.lane.b32.xlu0 %v66, 84
    %v68 = vpop.permute.xlu0 %67
    %vm69 = vcmask 720544
    %70 = vst.msk [vmem:[#allocation0] sm:$0x1] %vm69, %v68
    %s71 = scalar_lea.vmem %s0, 20
    %v72 = vld [vmem:[%s71] sm:$0x1]
    %73 = vrot.lane.b32.xlu0 %v72, 80
    %v74 = vpop.permute.xlu0 %73
    %vm75 = vcmask 687744
    %76 = vst.msk [vmem:[#allocation0] sm:$0x1] %vm75, %v74
    %s77 = scalar_lea.vmem %s0, 19
    %v78 = vld [vmem:[%s77] sm:$0x1]
    %79 = vrot.lane.b32.xlu0 %v78, 76
    %v80 = vpop.permute.xlu0 %79
    %vm81 = vcmask 654944
    %82 = vst.msk [vmem:[#allocation0] sm:$0x1] %vm81, %v80
    %s83 = scalar_lea.vmem %s0, 18
    %v84 = vld [vmem:[%s83] sm:$0x1]
    %85 = vrot.lane.b32.xlu0 %v84, 72
    %v86 = vpop.permute.xlu0 %85
    %vm87 = vcmask 622144
    %88 = vst.msk [vmem:[#allocation0] sm:$0x1] %vm87, %v86
    %s89 = scalar_lea.vmem %s0, 17
    %v90 = vld [vmem:[%s89] sm:$0x1]
    %91 = vrot.lane.b32.xlu0 %v90, 68
    %v92 = vpop.permute.xlu0 %91
    %vm93 = vcmask 589344
    %94 = vst.msk [vmem:[#allocation0] sm:$0x1] %vm93, %v92
    %s95 = scalar_lea.vmem %s0, 16
    %v96 = vld [vmem:[%s95] sm:$0x1]
    %97 = vrot.lane.b32.xlu0 %v96, 64
    %v98 = vpop.permute.xlu0 %97
    %vm99 = vcmask 556544
    %100 = vst.msk [vmem:[#allocation0] sm:$0x1] %vm99, %v98
    %s101 = scalar_lea.vmem %s0, 15
    %v102 = vld [vmem:[%s101] sm:$0x1]
    %103 = vrot.lane.b32.xlu0 %v102, 60
    %v104 = vpop.permute.xlu0 %103
    %vm105 = vcmask 523744
    %106 = vst.msk [vmem:[#allocation0] sm:$0x1] %vm105, %v104
    %s107 = scalar_lea.vmem %s0, 14
    %v108 = vld [vmem:[%s107] sm:$0x1]
    %109 = vrot.lane.b32.xlu0 %v108, 56
    %v110 = vpop.permute.xlu0 %109
    %vm111 = vcmask 490944
    %112 = vst.msk [vmem:[#allocation0] sm:$0x1] %vm111, %v110
    %s113 = scalar_lea.vmem %s0, 13
    %v114 = vld [vmem:[%s113] sm:$0x1]
    %115 = vrot.lane.b32.xlu0 %v114, 52
    %v116 = vpop.permute.xlu0 %115
    %vm117 = vcmask 458144
    %118 = vst.msk [vmem:[#allocation0] sm:$0x1] %vm117, %v116
    %s119 = scalar_lea.vmem %s0, 12
    %v120 = vld [vmem:[%s119] sm:$0x1]
    %121 = vrot.lane.b32.xlu0 %v120, 48
    %v122 = vpop.permute.xlu0 %121
    %vm123 = vcmask 425344
    %124 = vst.msk [vmem:[#allocation0] sm:$0x1] %vm123, %v122
    %s125 = scalar_lea.vmem %s0, 11
    %v126 = vld [vmem:[%s125] sm:$0x1]
    %127 = vrot.lane.b32.xlu0 %v126, 44
    %v128 = vpop.permute.xlu0 %127
    %vm129 = vcmask 392544
    %130 = vst.msk [vmem:[#allocation0] sm:$0x1] %vm129, %v128
    %s131 = scalar_lea.vmem %s0, 10
    %v132 = vld [vmem:[%s131] sm:$0x1]
    %133 = vrot.lane.b32.xlu0 %v132, 40
    %v134 = vpop.permute.xlu0 %133
    %vm135 = vcmask 359744
    %136 = vst.msk [vmem:[#allocation0] sm:$0x1] %vm135, %v134
    %s137 = scalar_lea.vmem %s0, 9
    %v138 = vld [vmem:[%s137] sm:$0x1]
    %139 = vrot.lane.b32.xlu0 %v138, 36
    %v140 = vpop.permute.xlu0 %139
    %vm141 = vcmask 326944
    %142 = vst.msk [vmem:[#allocation0] sm:$0x1] %vm141, %v140
    %s143 = scalar_lea.vmem %s0, 8
    %v144 = vld [vmem:[%s143] sm:$0x1]
    %145 = vrot.lane.b32.xlu0 %v144, 32
    %v146 = vpop.permute.xlu0 %145
    %vm147 = vcmask 294144
    %148 = vst.msk [vmem:[#allocation0] sm:$0x1] %vm147, %v146
    %s149 = scalar_lea.vmem %s0, 7
    %v150 = vld [vmem:[%s149] sm:$0x1]
    %151 = vrot.lane.b32.xlu0 %v150, 28
    %v152 = vpop.permute.xlu0 %151
    %vm153 = vcmask 261344
    %154 = vst.msk [vmem:[#allocation0] sm:$0x1] %vm153, %v152
    %s155 = scalar_lea.vmem %s0, 6
    %v156 = vld [vmem:[%s155] sm:$0x1]
    %157 = vrot.lane.b32.xlu0 %v156, 24
    %v158 = vpop.permute.xlu0 %157
    %vm159 = vcmask 228544
    %160 = vst.msk [vmem:[#allocation0] sm:$0x1] %vm159, %v158
    %s161 = scalar_lea.vmem %s0, 5
    %v162 = vld [vmem:[%s161] sm:$0x1]
    %163 = vrot.lane.b32.xlu0 %v162, 20
    %v164 = vpop.permute.xlu0 %163
    %vm165 = vcmask 195744
    %166 = vst.msk [vmem:[#allocation0] sm:$0x1] %vm165, %v164
    %s167 = scalar_lea.vmem %s0, 4
    %v168 = vld [vmem:[%s167] sm:$0x1]
    %169 = vrot.lane.b32.xlu0 %v168, 16
    %v170 = vpop.permute.xlu0 %169
    %vm171 = vcmask 162944
    %172 = vst.msk [vmem:[#allocation0] sm:$0x1] %vm171, %v170
    %s173 = scalar_lea.vmem %s0, 3
    %v174 = vld [vmem:[%s173] sm:$0x1]
    %175 = vrot.lane.b32.xlu0 %v174, 12
    %v176 = vpop.permute.xlu0 %175
    %vm177 = vcmask 130144
    %178 = vst.msk [vmem:[#allocation0] sm:$0x1] %vm177, %v176
    %s179 = scalar_lea.vmem %s0, 2
    %v180 = vld [vmem:[%s179] sm:$0x1]
    %181 = vrot.lane.b32.xlu0 %v180, 8
    %v182 = vpop.permute.xlu0 %181
    %vm183 = vcmask 97344
    %184 = vst.msk [vmem:[#allocation0] sm:$0x1] %vm183, %v182
    %s185 = scalar_lea.vmem %s0, 1
    %v186 = vld [vmem:[%s185] sm:$0x1]
    %187 = vrot.lane.b32.xlu0 %v186, 4
    %v188 = vpop.permute.xlu0 %187
    %vm189 = vcmask 64544
    %190 = vst.msk [vmem:[#allocation0] sm:$0x1] %vm189, %v188
    %s192 = ssub.s32 2, 1
    %v193 = vld [vmem:[#allocation0] sm:%s192]
    %s195 = ssub.s32 2, 1
    %196 = vst [vmem:[%s1] sm:%s195] %v193

// kernel: tile.83
$region0: #{tile.83}
  #allocation2 [shape = 's32[1]{0}', space=sflag, size = 0x4, scoped, tag = 'scoped memory for tile.83']
  %s0 = inlined_call_operand.hbm [shape: f32[8], index: 0, kind: input, shape index: {}]
  %s1 = inlined_call_operand.vmem [shape: f32[32,8], index: 1, kind: output, shape index: {}]
  $region1: #{tile.83} parent=0
    #allocation0 [shape = 'u8[512]{0}', space=vmem, size = 0x400, scoped, tag = 'operand span for operand 0']
    #allocation1 [shape = 's32[1]{0}', space=sflag, size = 0x4, scoped, tag = 'scoped memory for tile.83']
    %2 = vsyncpa [#allocation1], 0
    // Predicated region
    $region2: #{tile.83} parent=1 // pred_check
      _
    $region3: #{tile.83} parent=1 // pred_check_branch
      %4 = sbr.rel (0) target = $region5
    $region4: #{tile.83} parent=1 // pred_region
      %6 = vsyncadd [#allocation1], 0
      %s8 = sshll.u32 %s0, 4
      %s9 = int_to_ptr.hbm [resolvable:$true] %s8
      %s10 = sshll.u32 [#allocation0], 4
      %s11 = int_to_ptr.vmem [resolvable:$true] %s10
      %13 = dma.hbm_to_vmem [thread:$0]  %s9, 16, %s11, [#allocation1]
    $region5: #{tile.83} parent=1 // pred_fallthru
      _
    // Predicated region
    $region6: #{tile.83} parent=1 // pred_check
      _
    $region7: #{tile.83} parent=1 // pred_check_branch
      %15 = sbr.rel (0) target = $region9
    $region8: #{tile.83} parent=1 // pred_region
      %17 = dma.done [#allocation1], 16
    $region9: #{tile.83} parent=1 // pred_fallthru
      _
    %v18 = vld [vmem:[#allocation0] ss:$0 sm:$0xff]
    %19 = vst [vmem:[%s1] sm:$0xff] %v18
    %s20 = scalar_lea.vmem %s1, 8
    %21 = vst [vmem:[%s20] sm:$0xff] %v18
    %s22 = scalar_lea.vmem %s1, 16
    %23 = vst [vmem:[%s22] sm:$0xff] %v18
    %s24 = scalar_lea.vmem %s1, 24
    %25 = vst [vmem:[%s24] sm:$0xff] %v18
    %26 = vsyncpa [#allocation1], 1

// kernel: tile.84
$region0: #{tile.84}
  %s0 = inlined_call_operand.vmem [shape: f32[32,8], index: 0, kind: input, shape index: {}]
  %s1 = inlined_call_operand.vmem [shape: f32[1,256], index: 1, kind: output, shape index: {}]
  $region1: #{tile.84} parent=0
    #allocation0 [shape = 'u8[8192]{0}', space=vmem, size = 0x2000, scoped, tag = 'scoped mem for output reshape']
    %s2 = smov 3
    %v3 = vld [vmem:[%s0] ss:$16 sm:%s2]
    %vm4 = vcmask 64512
    %5 = vst.msk [vmem:[#allocation0] ss:$8 sm:$0x3] %vm4, %v3
    %s6 = scalar_lea.vmem %s0, 15
    %s7 = smov 3
    %v8 = vld [vmem:[%s6] ss:$16 sm:%s7]
    %9 = vrot.lane.b32.xlu0 %v8, 120
    %v10 = vpop.permute.xlu0 %9
    %vm11 = vcmask 1048512
    %12 = vst.msk [vmem:[#allocation0] ss:$8 sm:$0x3] %vm11, %v10
    %s13 = scalar_lea.vmem %s0, 14
    %s14 = smov 3
    %v15 = vld [vmem:[%s13] ss:$16 sm:%s14]
    %16 = vrot.lane.b32.xlu0 %v15, 112
    %v17 = vpop.permute.xlu0 %16
    %vm18 = vcmask 982912
    %19 = vst.msk [vmem:[#allocation0] ss:$8 sm:$0x3] %vm18, %v17
    %s20 = scalar_lea.vmem %s0, 13
    %s21 = smov 3
    %v22 = vld [vmem:[%s20] ss:$16 sm:%s21]
    %23 = vrot.lane.b32.xlu0 %v22, 104
    %v24 = vpop.permute.xlu0 %23
    %vm25 = vcmask 917312
    %26 = vst.msk [vmem:[#allocation0] ss:$8 sm:$0x3] %vm25, %v24
    %s27 = scalar_lea.vmem %s0, 12
    %s28 = smov 3
    %v29 = vld [vmem:[%s27] ss:$16 sm:%s28]
    %30 = vrot.lane.b32.xlu0 %v29, 96
    %v31 = vpop.permute.xlu0 %30
    %vm32 = vcmask 851712
    %33 = vst.msk [vmem:[#allocation0] ss:$8 sm:$0x3] %vm32, %v31
    %s34 = scalar_lea.vmem %s0, 11
    %s35 = smov 3
    %v36 = vld [vmem:[%s34] ss:$16 sm:%s35]
    %37 = vrot.lane.b32.xlu0 %v36, 88
    %v38 = vpop.permute.xlu0 %37
    %vm39 = vcmask 786112
    %40 = vst.msk [vmem:[#allocation0] ss:$8 sm:$0x3] %vm39, %v38
    %s41 = scalar_lea.vmem %s0, 10
    %s42 = smov 3
    %v43 = vld [vmem:[%s41] ss:$16 sm:%s42]
    %44 = vrot.lane.b32.xlu0 %v43, 80
    %v45 = vpop.permute.xlu0 %44
    %vm46 = vcmask 720512
    %47 = vst.msk [vmem:[#allocation0] ss:$8 sm:$0x3] %vm46, %v45
    %s48 = scalar_lea.vmem %s0, 9
    %s49 = smov 3
    %v50 = vld [vmem:[%s48] ss:$16 sm:%s49]
    %51 = vrot.lane.b32.xlu0 %v50, 72
    %v52 = vpop.permute.xlu0 %51
    %vm53 = vcmask 654912
    %54 = vst.msk [vmem:[#allocation0] ss:$8 sm:$0x3] %vm53, %v52
    %s55 = scalar_lea.vmem %s0, 8
    %s56 = smov 3
    %v57 = vld [vmem:[%s55] ss:$16 sm:%s56]
    %58 = vrot.lane.b32.xlu0 %v57, 64
    %v59 = vpop.permute.xlu0 %58
    %vm60 = vcmask 589312
    %61 = vst.msk [vmem:[#allocation0] ss:$8 sm:$0x3] %vm60, %v59
    %s62 = scalar_lea.vmem %s0, 7
    %s63 = smov 3
    %v64 = vld [vmem:[%s62] ss:$16 sm:%s63]
    %65 = vrot.lane.b32.xlu0 %v64, 56
    %v66 = vpop.permute.xlu0 %65
    %vm67 = vcmask 523712
    %68 = vst.msk [vmem:[#allocation0] ss:$8 sm:$0x3] %vm67, %v66
    %s69 = scalar_lea.vmem %s0, 6
    %s70 = smov 3
    %v71 = vld [vmem:[%s69] ss:$16 sm:%s70]
    %72 = vrot.lane.b32.xlu0 %v71, 48
    %v73 = vpop.permute.xlu0 %72
    %vm74 = vcmask 458112
    %75 = vst.msk [vmem:[#allocation0] ss:$8 sm:$0x3] %vm74, %v73
    %s76 = scalar_lea.vmem %s0, 5
    %s77 = smov 3
    %v78 = vld [vmem:[%s76] ss:$16 sm:%s77]
    %79 = vrot.lane.b32.xlu0 %v78, 40
    %v80 = vpop.permute.xlu0 %79
    %vm81 = vcmask 392512
    %82 = vst.msk [vmem:[#allocation0] ss:$8 sm:$0x3] %vm81, %v80
    %s83 = scalar_lea.vmem %s0, 4
    %s84 = smov 3
    %v85 = vld [vmem:[%s83] ss:$16 sm:%s84]
    %86 = vrot.lane.b32.xlu0 %v85, 32
    %v87 = vpop.permute.xlu0 %86
    %vm88 = vcmask 326912
    %89 = vst.msk [vmem:[#allocation0] ss:$8 sm:$0x3] %vm88, %v87
    %s90 = scalar_lea.vmem %s0, 3
    %s91 = smov 3
    %v92 = vld [vmem:[%s90] ss:$16 sm:%s91]
    %93 = vrot.lane.b32.xlu0 %v92, 24
    %v94 = vpop.permute.xlu0 %93
    %vm95 = vcmask 261312
    %96 = vst.msk [vmem:[#allocation0] ss:$8 sm:$0x3] %vm95, %v94
    %s97 = scalar_lea.vmem %s0, 2
    %s98 = smov 3
    %v99 = vld [vmem:[%s97] ss:$16 sm:%s98]
    %100 = vrot.lane.b32.xlu0 %v99, 16
    %v101 = vpop.permute.xlu0 %100
    %vm102 = vcmask 195712
    %103 = vst.msk [vmem:[#allocation0] ss:$8 sm:$0x3] %vm102, %v101
    %s104 = scalar_lea.vmem %s0, 1
    %s105 = smov 3
    %v106 = vld [vmem:[%s104] ss:$16 sm:%s105]
    %107 = vrot.lane.b32.xlu0 %v106, 8
    %v108 = vpop.permute.xlu0 %107
    %vm109 = vcmask 130112
    %110 = vst.msk [vmem:[#allocation0] ss:$8 sm:$0x3] %vm109, %v108
    %s112 = ssub.s32 2, 1
    %v113 = vld [vmem:[#allocation0] sm:%s112]
    %s115 = ssub.s32 2, 1
    %116 = vst [vmem:[%s1] sm:%s115] %v113
    %s117 = scalar_lea.vmem [#allocation0], 8
    %v118 = vld [vmem:[%s117] sm:%s112]
    %s120 = ssub.s32 2, 1
    %s121 = scalar_lea.vmem %s1, 1
    %122 = vst [vmem:[%s121] sm:%s120] %v118

// kernel: tile.73
$region0: #{tile.73}
  #allocation2 [shape = 's32[1]{0}', space=sflag, size = 0x4, scoped, tag = 'scoped memory for tile.73']
  %s0 = inlined_call_operand.hbm [shape: f32[8], index: 0, kind: input, shape index: {}]
  %s1 = inlined_call_operand.vmem [shape: f32[64,8], index: 1, kind: output, shape index: {}]
  $region1: #{tile.73} parent=0
    #allocation0 [shape = 'u8[512]{0}', space=vmem, size = 0x400, scoped, tag = 'operand span for operand 0']
    #allocation1 [shape = 's32[1]{0}', space=sflag, size = 0x4, scoped, tag = 'scoped memory for tile.73']
    %2 = vsyncpa [#allocation1], 0
    // Predicated region
    $region2: #{tile.73} parent=1 // pred_check
      _
    $region3: #{tile.73} parent=1 // pred_check_branch
      %4 = sbr.rel (0) target = $region5
    $region4: #{tile.73} parent=1 // pred_region
      %6 = vsyncadd [#allocation1], 0
      %s8 = sshll.u32 %s0, 4
      %s9 = int_to_ptr.hbm [resolvable:$true] %s8
      %s10 = sshll.u32 [#allocation0], 4
      %s11 = int_to_ptr.vmem [resolvable:$true] %s10
      %13 = dma.hbm_to_vmem [thread:$0]  %s9, 16, %s11, [#allocation1]
    $region5: #{tile.73} parent=1 // pred_fallthru
      _
    // Predicated region
    $region6: #{tile.73} parent=1 // pred_check
      _
    $region7: #{tile.73} parent=1 // pred_check_branch
      %15 = sbr.rel (0) target = $region9
    $region8: #{tile.73} parent=1 // pred_region
      %17 = dma.done [#allocation1], 16
    $region9: #{tile.73} parent=1 // pred_fallthru
      _
    %v18 = vld [vmem:[#allocation0] ss:$0 sm:$0xff]
    %19 = vst [vmem:[%s1] sm:$0xff] %v18
    %s20 = scalar_lea.vmem %s1, 8
    %21 = vst [vmem:[%s20] sm:$0xff] %v18
    %s22 = scalar_lea.vmem %s1, 16
    %23 = vst [vmem:[%s22] sm:$0xff] %v18
    %s24 = scalar_lea.vmem %s1, 24
    %25 = vst [vmem:[%s24] sm:$0xff] %v18
    %s26 = scalar_lea.vmem %s1, 32
    %27 = vst [vmem:[%s26] sm:$0xff] %v18
    %s28 = scalar_lea.vmem %s1, 40
    %29 = vst [vmem:[%s28] sm:$0xff] %v18
    %s30 = scalar_lea.vmem %s1, 48
    %31 = vst [vmem:[%s30] sm:$0xff] %v18
    %s32 = scalar_lea.vmem %s1, 56
    %33 = vst [vmem:[%s32] sm:$0xff] %v18
    %34 = vsyncpa [#allocation1], 1

// kernel: tile.74
$region0: #{tile.74}
  %s0 = inlined_call_operand.vmem [shape: f32[64,8], index: 0, kind: input, shape index: {}]
  %s1 = inlined_call_operand.vmem [shape: f32[1,512], index: 1, kind: output, shape index: {}]
  $region1: #{tile.74} parent=0
    #allocation0 [shape = 'u8[16384]{0}', space=vmem, size = 0x4000, scoped, tag = 'scoped mem for output reshape']
    %s2 = smov 3
    %v3 = vld [vmem:[%s0] ss:$16 sm:%s2]
    %s4 = smov 12
    %v5 = vld [vmem:[%s0] ss:$16 sm:%s4]
    %vm6 = vcmask 1043458
    %v7 = vsel %vm6, %v5, %v3
    %vm8 = vcmask 64512
    %9 = vst.msk [vmem:[#allocation0] ss:$8 sm:$0xf] %vm8, %v7
    %s10 = scalar_lea.vmem %s0, 15
    %s11 = smov 3
    %v12 = vld [vmem:[%s10] ss:$16 sm:%s11]
    %s13 = scalar_lea.vmem %s0, 15
    %s14 = smov 12
    %v15 = vld [vmem:[%s13] ss:$16 sm:%s14]
    %vm16 = vcmask 1043458
    %v17 = vsel %vm16, %v15, %v12
    %18 = vrot.lane.b32.xlu0 %v17, 120
    %v19 = vpop.permute.xlu0 %18
    %vm20 = vcmask 1048512
    %21 = vst.msk [vmem:[#allocation0] ss:$8 sm:$0xf] %vm20, %v19
    %s22 = scalar_lea.vmem %s0, 14
    %s23 = smov 3
    %v24 = vld [vmem:[%s22] ss:$16 sm:%s23]
    %s25 = scalar_lea.vmem %s0, 14
    %s26 = smov 12
    %v27 = vld [vmem:[%s25] ss:$16 sm:%s26]
    %vm28 = vcmask 1043458
    %v29 = vsel %vm28, %v27, %v24
    %30 = vrot.lane.b32.xlu0 %v29, 112
    %v31 = vpop.permute.xlu0 %30
    %vm32 = vcmask 982912
    %33 = vst.msk [vmem:[#allocation0] ss:$8 sm:$0xf] %vm32, %v31
    %s34 = scalar_lea.vmem %s0, 13
    %s35 = smov 3
    %v36 = vld [vmem:[%s34] ss:$16 sm:%s35]
    %s37 = scalar_lea.vmem %s0, 13
    %s38 = smov 12
    %v39 = vld [vmem:[%s37] ss:$16 sm:%s38]
    %vm40 = vcmask 1043458
    %v41 = vsel %vm40, %v39, %v36
    %42 = vrot.lane.b32.xlu0 %v41, 104
    %v43 = vpop.permute.xlu0 %42
    %vm44 = vcmask 917312
    %45 = vst.msk [vmem:[#allocation0] ss:$8 sm:$0xf] %vm44, %v43
    %s46 = scalar_lea.vmem %s0, 12
    %s47 = smov 3
    %v48 = vld [vmem:[%s46] ss:$16 sm:%s47]
    %s49 = scalar_lea.vmem %s0, 12
    %s50 = smov 12
    %v51 = vld [vmem:[%s49] ss:$16 sm:%s50]
    %vm52 = vcmask 1043458
    %v53 = vsel %vm52, %v51, %v48
    %54 = vrot.lane.b32.xlu0 %v53, 96
    %v55 = vpop.permute.xlu0 %54
    %vm56 = vcmask 851712
    %57 = vst.msk [vmem:[#allocation0] ss:$8 sm:$0xf] %vm56, %v55
    %s58 = scalar_lea.vmem %s0, 11
    %s59 = smov 3
    %v60 = vld [vmem:[%s58] ss:$16 sm:%s59]
    %s61 = scalar_lea.vmem %s0, 11
    %s62 = smov 12
    %v63 = vld [vmem:[%s61] ss:$16 sm:%s62]
    %vm64 = vcmask 1043458
    %v65 = vsel %vm64, %v63, %v60
    %66 = vrot.lane.b32.xlu0 %v65, 88
    %v67 = vpop.permute.xlu0 %66
    %vm68 = vcmask 786112
    %69 = vst.msk [vmem:[#allocation0] ss:$8 sm:$0xf] %vm68, %v67
    %s70 = scalar_lea.vmem %s0, 10
    %s71 = smov 3
    %v72 = vld [vmem:[%s70] ss:$16 sm:%s71]
    %s73 = scalar_lea.vmem %s0, 10
    %s74 = smov 12
    %v75 = vld [vmem:[%s73] ss:$16 sm:%s74]
    %vm76 = vcmask 1043458
    %v77 = vsel %vm76, %v75, %v72
    %78 = vrot.lane.b32.xlu0 %v77, 80
    %v79 = vpop.permute.xlu0 %78
    %vm80 = vcmask 720512
    %81 = vst.msk [vmem:[#allocation0] ss:$8 sm:$0xf] %vm80, %v79
    %s82 = scalar_lea.vmem %s0, 9
    %s83 = smov 3
    %v84 = vld [vmem:[%s82] ss:$16 sm:%s83]
    %s85 = scalar_lea.vmem %s0, 9
    %s86 = smov 12
    %v87 = vld [vmem:[%s85] ss:$16 sm:%s86]
    %vm88 = vcmask 1043458
    %v89 = vsel %vm88, %v87, %v84
    %90 = vrot.lane.b32.xlu0 %v89, 72
    %v91 = vpop.permute.xlu0 %90
    %vm92 = vcmask 654912
    %93 = vst.msk [vmem:[#allocation0] ss:$8 sm:$0xf] %vm92, %v91
    %s94 = scalar_lea.vmem %s0, 8
    %s95 = smov 3
    %v96 = vld [vmem:[%s94] ss:$16 sm:%s95]
    %s97 = scalar_lea.vmem %s0, 8
    %s98 = smov 12
    %v99 = vld [vmem:[%s97] ss:$16 sm:%s98]
    %vm100 = vcmask 1043458
    %v101 = vsel %vm100, %v99, %v96
    %102 = vrot.lane.b32.xlu0 %v101, 64
    %v103 = vpop.permute.xlu0 %102
    %vm104 = vcmask 589312
    %105 = vst.msk [vmem:[#allocation0] ss:$8 sm:$0xf] %vm104, %v103
    %s106 = scalar_lea.vmem %s0, 7
    %s107 = smov 3
    %v108 = vld [vmem:[%s106] ss:$16 sm:%s107]
    %s109 = scalar_lea.vmem %s0, 7
    %s110 = smov 12
    %v111 = vld [vmem:[%s109] ss:$16 sm:%s110]
    %vm112 = vcmask 1043458
    %v113 = vsel %vm112, %v111, %v108
    %114 = vrot.lane.b32.xlu0 %v113, 56
    %v115 = vpop.permute.xlu0 %114
    %vm116 = vcmask 523712
    %117 = vst.msk [vmem:[#allocation0] ss:$8 sm:$0xf] %vm116, %v115
    %s118 = scalar_lea.vmem %s0, 6
    %s119 = smov 3
    %v120 = vld [vmem:[%s118] ss:$16 sm:%s119]
    %s121 = scalar_lea.vmem %s0, 6
    %s122 = smov 12
    %v123 = vld [vmem:[%s121] ss:$16 sm:%s122]
    %vm124 = vcmask 1043458
    %v125 = vsel %vm124, %v123, %v120
    %126 = vrot.lane.b32.xlu0 %v125, 48
    %v127 = vpop.permute.xlu0 %126
    %vm128 = vcmask 458112
    %129 = vst.msk [vmem:[#allocation0] ss:$8 sm:$0xf] %vm128, %v127
    %s130 = scalar_lea.vmem %s0, 5
    %s131 = smov 3
    %v132 = vld [vmem:[%s130] ss:$16 sm:%s131]
    %s133 = scalar_lea.vmem %s0, 5
    %s134 = smov 12
    %v135 = vld [vmem:[%s133] ss:$16 sm:%s134]
    %vm136 = vcmask 1043458
    %v137 = vsel %vm136, %v135, %v132
    %138 = vrot.lane.b32.xlu0 %v137, 40
    %v139 = vpop.permute.xlu0 %138
    %vm140 = vcmask 392512
    %141 = vst.msk [vmem:[#allocation0] ss:$8 sm:$0xf] %vm140, %v139
    %s142 = scalar_lea.vmem %s0, 4
    %s143 = smov 3
    %v144 = vld [vmem:[%s142] ss:$16 sm:%s143]
    %s145 = scalar_lea.vmem %s0, 4
    %s146 = smov 12
    %v147 = vld [vmem:[%s145] ss:$16 sm:%s146]
    %vm148 = vcmask 1043458
    %v149 = vsel %vm148, %v147, %v144
    %150 = vrot.lane.b32.xlu0 %v149, 32
    %v151 = vpop.permute.xlu0 %150
    %vm152 = vcmask 326912
    %153 = vst.msk [vmem:[#allocation0] ss:$8 sm:$0xf] %vm152, %v151
    %s154 = scalar_lea.vmem %s0, 3
    %s155 = smov 3
    %v156 = vld [vmem:[%s154] ss:$16 sm:%s155]
    %s157 = scalar_lea.vmem %s0, 3
    %s158 = smov 12
    %v159 = vld [vmem:[%s157] ss:$16 sm:%s158]
    %vm160 = vcmask 1043458
    %v161 = vsel %vm160, %v159, %v156
    %162 = vrot.lane.b32.xlu0 %v161, 24
    %v163 = vpop.permute.xlu0 %162
    %vm164 = vcmask 261312
    %165 = vst.msk [vmem:[#allocation0] ss:$8 sm:$0xf] %vm164, %v163
    %s166 = scalar_lea.vmem %s0, 2
    %s167 = smov 3
    %v168 = vld [vmem:[%s166] ss:$16 sm:%s167]
    %s169 = scalar_lea.vmem %s0, 2
    %s170 = smov 12
    %v171 = vld [vmem:[%s169] ss:$16 sm:%s170]
    %vm172 = vcmask 1043458
    %v173 = vsel %vm172, %v171, %v168
    %174 = vrot.lane.b32.xlu0 %v173, 16
    %v175 = vpop.permute.xlu0 %174
    %vm176 = vcmask 195712
    %177 = vst.msk [vmem:[#allocation0] ss:$8 sm:$0xf] %vm176, %v175
    %s178 = scalar_lea.vmem %s0, 1
    %s179 = smov 3
    %v180 = vld [vmem:[%s178] ss:$16 sm:%s179]
    %s181 = scalar_lea.vmem %s0, 1
    %s182 = smov 12
    %v183 = vld [vmem:[%s181] ss:$16 sm:%s182]
    %vm184 = vcmask 1043458
    %v185 = vsel %vm184, %v183, %v180
    %186 = vrot.lane.b32.xlu0 %v185, 8
    %v187 = vpop.permute.xlu0 %186
    %vm188 = vcmask 130112
    %189 = vst.msk [vmem:[#allocation0] ss:$8 sm:$0xf] %vm188, %v187
    %s191 = ssub.s32 2, 1
    %v192 = vld [vmem:[#allocation0] sm:%s191]
    %s194 = ssub.s32 2, 1
    %195 = vst [vmem:[%s1] sm:%s194] %v192
    %s196 = scalar_lea.vmem [#allocation0], 8
    %v197 = vld [vmem:[%s196] sm:%s191]
    %s199 = ssub.s32 2, 1
    %s200 = scalar_lea.vmem %s1, 1
    %201 = vst [vmem:[%s200] sm:%s199] %v197
    %s202 = scalar_lea.vmem [#allocation0], 16
    %v203 = vld [vmem:[%s202] sm:%s191]
    %s205 = ssub.s32 2, 1
    %s206 = scalar_lea.vmem %s1, 2
    %207 = vst [vmem:[%s206] sm:%s205] %v203
    %s208 = scalar_lea.vmem [#allocation0], 24
    %v209 = vld [vmem:[%s208] sm:%s191]
    %s211 = ssub.s32 2, 1
    %s212 = scalar_lea.vmem %s1, 3
    %213 = vst [vmem:[%s212] sm:%s211] %v209

// kernel: generator_forward.1
$region0: #{generator_forward.1}
  #allocation0 [shape = 'u32[]', space=smem, size = 0x4, offset = 0x4, fixed_abs, tag = 'smem constant byte address 0x4 - core index']
  #allocation1 [shape = 'u32[72,128]{1,0:T(1,128)}', space=vmem, size = 0x9000, scoped, tag = 'internal scratch']
  #allocation2 [shape = 'f32[48,128]{1,0:T(8,128)}', space=vmem, size = 0x6000, scoped, tag = 'scratch operand']
  #allocation3 [shape = 'f32[48,128]{1,0:T(8,128)}', space=vmem, size = 0x6000, scoped, tag = 'scratch operand']
  #allocation4 [shape = 'f32[80,256]{1,0:T(8,128)}', space=vmem, size = 0x14000, scoped, tag = 'scratch operand']
  %s0 = inlined_call_operand.vmem [shape: f32[2,16,128], index: 0, kind: input, shape index: {}]
  %s1 = inlined_call_operand.vmem [shape: f32[2,32,128], index: 1, kind: input, shape index: {}]
  %s2 = inlined_call_operand.vmem [shape: f32[12,128,128], index: 2, kind: input, shape index: {}]
  %s3 = inlined_call_operand.vmem [shape: f32[4,1,128], index: 3, kind: input, shape index: {}]
  %s4 = inlined_call_operand.vmem [shape: f32[3,128,512], index: 4, kind: input, shape index: {}]
  %s5 = inlined_call_operand.vmem [shape: f32[1,512], index: 5, kind: input, shape index: {}]
  %s6 = inlined_call_operand.vmem [shape: f32[1,512], index: 6, kind: input, shape index: {}]
  %s7 = inlined_call_operand.vmem [shape: f32[3,256,256], index: 7, kind: input, shape index: {}]
  %s8 = inlined_call_operand.vmem [shape: f32[1,256], index: 8, kind: input, shape index: {}]
  %s9 = inlined_call_operand.vmem [shape: f32[1,256], index: 9, kind: input, shape index: {}]
  %s10 = inlined_call_operand.vmem [shape: f32[3,256,128], index: 10, kind: input, shape index: {}]
  %s11 = inlined_call_operand.vmem [shape: f32[1,128], index: 11, kind: input, shape index: {}]
  %s12 = inlined_call_operand.vmem [shape: f32[2,32,128], index: 12, kind: output, shape index: {}]
  %s13 = sld [smem:[#allocation0]]
  $region58: #{generator_forward.1} parent=0
    _
  %s15 = ssub.s32 1, %s13
  %s16 = scalar_select 0, %s15, %s13
  // Predicated region
  $region2: #{generator_forward.1} parent=0 // pred_check
    _
  $region3: #{generator_forward.1} parent=0 // pred_check_branch
    %18 = sbr.rel (0) target = $region5
  $region4: #{generator_forward.1} parent=0 // pred_region
    _
  $region5: #{generator_forward.1} parent=0 // pred_fallthru
    _
  // Predicated region
  $region6: #{generator_forward.1} parent=0 // pred_check
    _
  $region7: #{generator_forward.1} parent=0 // pred_check_branch
    %20 = sbr.rel (0) target = $region9
  $region8: #{generator_forward.1} parent=0 // pred_region
    _
  $region9: #{generator_forward.1} parent=0 // pred_fallthru
    _
  // Predicated region
  $region10: #{generator_forward.1} parent=0 // pred_check
    _
  $region11: #{generator_forward.1} parent=0 // pred_check_branch
    %22 = sbr.rel (0) target = $region13
  $region12: #{generator_forward.1} parent=0 // pred_region
    _
  $region13: #{generator_forward.1} parent=0 // pred_fallthru
    _
  // Predicated region
  $region14: #{generator_forward.1} parent=0 // pred_check
    _
  $region15: #{generator_forward.1} parent=0 // pred_check_branch
    %24 = sbr.rel (0) target = $region17
  $region16: #{generator_forward.1} parent=0 // pred_region
    _
  $region17: #{generator_forward.1} parent=0 // pred_fallthru
    _
  // Predicated region
  $region18: #{generator_forward.1} parent=0 // pred_check
    _
  $region19: #{generator_forward.1} parent=0 // pred_check_branch
    %26 = sbr.rel (0) target = $region21
  $region20: #{generator_forward.1} parent=0 // pred_region
    _
  $region21: #{generator_forward.1} parent=0 // pred_fallthru
    _
  // Predicated region
  $region22: #{generator_forward.1} parent=0 // pred_check
    _
  $region23: #{generator_forward.1} parent=0 // pred_check_branch
    %28 = sbr.rel (0) target = $region25
  $region24: #{generator_forward.1} parent=0 // pred_region
    _
  $region25: #{generator_forward.1} parent=0 // pred_fallthru
    _
  // Predicated region
  $region26: #{generator_forward.1} parent=0 // pred_check
    _
  $region27: #{generator_forward.1} parent=0 // pred_check_branch
    %30 = sbr.rel (0) target = $region29
  $region28: #{generator_forward.1} parent=0 // pred_region
    _
  $region29: #{generator_forward.1} parent=0 // pred_fallthru
    _
  // Predicated region
  $region30: #{generator_forward.1} parent=0 // pred_check
    _
  $region31: #{generator_forward.1} parent=0 // pred_check_branch
    %32 = sbr.rel (0) target = $region33
  $region32: #{generator_forward.1} parent=0 // pred_region
    _
  $region33: #{generator_forward.1} parent=0 // pred_fallthru
    _
  // Predicated region
  $region34: #{generator_forward.1} parent=0 // pred_check
    _
  $region35: #{generator_forward.1} parent=0 // pred_check_branch
    %34 = sbr.rel (0) target = $region37
  $region36: #{generator_forward.1} parent=0 // pred_region
    _
  $region37: #{generator_forward.1} parent=0 // pred_fallthru
    _
  // Predicated region
  $region38: #{generator_forward.1} parent=0 // pred_check
    _
  $region39: #{generator_forward.1} parent=0 // pred_check_branch
    %36 = sbr.rel (0) target = $region41
  $region40: #{generator_forward.1} parent=0 // pred_region
    _
  $region41: #{generator_forward.1} parent=0 // pred_fallthru
    _
  // Predicated region
  $region42: #{generator_forward.1} parent=0 // pred_check
    _
  $region43: #{generator_forward.1} parent=0 // pred_check_branch
    %38 = sbr.rel (0) target = $region45
  $region44: #{generator_forward.1} parent=0 // pred_region
    _
  $region45: #{generator_forward.1} parent=0 // pred_fallthru
    _
  // Predicated region
  $region46: #{generator_forward.1} parent=0 // pred_check
    _
  $region47: #{generator_forward.1} parent=0 // pred_check_branch
    %40 = sbr.rel (0) target = $region49
  $region48: #{generator_forward.1} parent=0 // pred_region
    _
  $region49: #{generator_forward.1} parent=0 // pred_fallthru
    _
  %41 = vst [vmem:[#allocation2] sm:$0x1] 0.0
  %42 = vst [vmem:[#allocation2 + $0x11] sm:$0x7f] 0.0
  %43 = vst [vmem:[#allocation2 + $0x18] sm:$0x1] 0.0
  %44 = vst [vmem:[#allocation2 + $0x29] sm:$0x7f] 0.0
  %45 = vst [vmem:[#allocation3] sm:$0x1] 0.0
  %46 = vst [vmem:[#allocation3 + $0x11] sm:$0x7f] 0.0
  %47 = vst [vmem:[#allocation3 + $0x18] sm:$0x1] 0.0
  %48 = vst [vmem:[#allocation3 + $0x29] sm:$0x7f] 0.0
  %v49 = vlaneseq
  %vm50 = vcmp.ge.s32.totalorder %v49, 0
  %vm51 = vcmp.lt.s32.totalorder %v49, 256
  %vm52 = vmand %vm50, %vm51
  %53 = vst.msk [vmem:[#allocation4] ss:$8 sm:$0x3] %vm52, 0.0
  %54 = vst.msk [vmem:[#allocation4] ss:$8 sm:$0x0] %vm52, 0.0
  %55 = vst [vmem:[#allocation4 + $0x40] sm:$0xfe] 0.0
  %56 = vst [vmem:[#allocation4 + $0x48] sm:$0xfe] 0.0
  %s57 = scalar_lea.vmem [#allocation4], 80
  %58 = vst.msk [vmem:[%s57] ss:$8 sm:$0x3] %vm52, 0.0
  %59 = vst.msk [vmem:[%s57] ss:$8 sm:$0x0] %vm52, 0.0
  %60 = vst [vmem:[#allocation4 + $0x90] sm:$0xfe] 0.0
  %61 = vst [vmem:[#allocation4 + $0x98] sm:$0xfe] 0.0
  %v62 = vld [vmem:[%s0] sm:$0xff]
  %v63 = vld [vmem:[%s0 + $0x8] sm:$0xff]
  %64 = vst [vmem:[#allocation2 + $0x1] sm:$0xff] %v62
  %65 = vst [vmem:[#allocation2 + $0x9] sm:$0xff] %v63
  %s66 = scalar_lea.vmem %s0, 16
  %v67 = vld [vmem:[%s66] sm:$0xff]
  %v68 = vld [vmem:[%s66 + $0x8] sm:$0xff]
  %69 = vst [vmem:[#allocation2 + $0x19] sm:$0xff] %v67
  %70 = vst [vmem:[#allocation2 + $0x21] sm:$0xff] %v68
  %v71 = vld [vmem:[#allocation2] sm:$0xff]
  %v72 = vld [vmem:[#allocation2 + $0x8] sm:$0xff]
  %v73 = vld [vmem:[#allocation2 + $0x10] sm:$0xff]
  %v74 = vld [vmem:[#allocation2 + $0x18] sm:$0xff]
  %v75 = vld [vmem:[#allocation2 + $0x20] sm:$0xff]
  %v76 = vld [vmem:[#allocation2 + $0x28] sm:$0x3f]
  %v77 = vld [vmem:[%s2] sm:$0xff]
  %v78 = vld [vmem:[%s2 + $0x8] sm:$0xff]
  %v79 = vld [vmem:[%s2 + $0x10] sm:$0xff]
  %v80 = vld [vmem:[%s2 + $0x18] sm:$0xff]
  %v81 = vld [vmem:[%s2 + $0x20] sm:$0xff]
  %v82 = vld [vmem:[%s2 + $0x28] sm:$0xff]
  %v83 = vld [vmem:[%s2 + $0x30] sm:$0xff]
  %v84 = vld [vmem:[%s2 + $0x38] sm:$0xff]
  %v85 = vld [vmem:[%s2 + $0x40] sm:$0xff]
  %v86 = vld [vmem:[%s2 + $0x48] sm:$0xff]
  %v87 = vld [vmem:[%s2 + $0x50] sm:$0xff]
  %v88 = vld [vmem:[%s2 + $0x58] sm:$0xff]
  %v89 = vld [vmem:[%s2 + $0x60] sm:$0xff]
  %v90 = vld [vmem:[%s2 + $0x68] sm:$0xff]
  %v91 = vld [vmem:[%s2 + $0x70] sm:$0xff]
  %v92 = vld [vmem:[%s2 + $0x78] sm:$0xff]
  %v93 = vld [vmem:[#allocation2 + $0x1] sm:$0xff]
  %v94 = vld [vmem:[#allocation2 + $0x9] sm:$0xff]
  %v95 = vld [vmem:[#allocation2 + $0x11] sm:$0xff]
  %v96 = vld [vmem:[#allocation2 + $0x19] sm:$0xff]
  %v97 = vld [vmem:[#allocation2 + $0x21] sm:$0xff]
  %v98 = vld [vmem:[#allocation2 + $0x29] sm:$0x3f]
  %s99 = scalar_lea.vmem %s2, 128
  %v100 = vld [vmem:[%s99] sm:$0xff]
  %v101 = vld [vmem:[%s99 + $0x8] sm:$0xff]
  %v102 = vld [vmem:[%s99 + $0x10] sm:$0xff]
  %v103 = vld [vmem:[%s99 + $0x18] sm:$0xff]
  %v104 = vld [vmem:[%s99 + $0x20] sm:$0xff]
  %v105 = vld [vmem:[%s99 + $0x28] sm:$0xff]
  %v106 = vld [vmem:[%s99 + $0x30] sm:$0xff]
  %v107 = vld [vmem:[%s99 + $0x38] sm:$0xff]
  %v108 = vld [vmem:[%s99 + $0x40] sm:$0xff]
  %v109 = vld [vmem:[%s99 + $0x48] sm:$0xff]
  %v110 = vld [vmem:[%s99 + $0x50] sm:$0xff]
  %v111 = vld [vmem:[%s99 + $0x58] sm:$0xff]
  %v112 = vld [vmem:[%s99 + $0x60] sm:$0xff]
  %v113 = vld [vmem:[%s99 + $0x68] sm:$0xff]
  %v114 = vld [vmem:[%s99 + $0x70] sm:$0xff]
  %v115 = vld [vmem:[%s99 + $0x78] sm:$0xff]
  %116 = vmatpush.msra.mxu0 %v115
  %117 = vmatpush.msra.mxu0 %v114
  %118 = vmatpush.msra.mxu0 %v113
  %119 = vmatpush.msra.mxu0 %v112
  %120 = vmatpush.msra.mxu0 %v111
  %121 = vmatpush.msra.mxu0 %v110
  %122 = vmatpush.msra.mxu0 %v109
  %123 = vmatpush.msra.mxu0 %v108
  %124 = vmatpush.msra.mxu0 %v107
  %125 = vmatpush.msra.mxu0 %v106
  %126 = vmatpush.msra.mxu0 %v105
  %127 = vmatpush.msra.mxu0 %v104
  %128 = vmatpush.msra.mxu0 %v103
  %129 = vmatpush.msra.mxu0 %v102
  %130 = vmatpush.msra.mxu0 %v101
  %131 = vmatpush.msra.mxu0 %v100
  %132 = vmatmul.f32.gmra.mxu0 %v93
  %v133 = vpop.f32.mrf.mxu0
  %v134 = vadd.f32 0.0, %v133
  %135 = vmatmul.f32.gmra.mxu0 %v94
  %v136 = vpop.f32.mrf.mxu0
  %v137 = vadd.f32 0.0, %v136
  %138 = vmatmul.f32.gmra.mxu0 %v95
  %v139 = vpop.f32.mrf.mxu0
  %140 = vmatmul.f32.gmra.mxu0 %v96
  %v141 = vpop.f32.mrf.mxu0
  %v142 = vadd.f32 0.0, %v141
  %143 = vmatmul.f32.gmra.mxu0 %v97
  %v144 = vpop.f32.mrf.mxu0
  %v145 = vadd.f32 0.0, %v144
  %146 = vmatmul.f32.gmra.mxu0 %v98
  %v147 = vpop.f32.mrf.mxu0
  %148 = vdwg.mxu0
  %149 = vmatpush.msra.mxu0 %v92
  %150 = vmatpush.msra.mxu0 %v91
  %151 = vmatpush.msra.mxu0 %v90
  %152 = vmatpush.msra.mxu0 %v89
  %153 = vmatpush.msra.mxu0 %v88
  %154 = vmatpush.msra.mxu0 %v87
  %155 = vmatpush.msra.mxu0 %v86
  %156 = vmatpush.msra.mxu0 %v85
  %157 = vmatpush.msra.mxu0 %v84
  %158 = vmatpush.msra.mxu0 %v83
  %159 = vmatpush.msra.mxu0 %v82
  %160 = vmatpush.msra.mxu0 %v81
  %161 = vmatpush.msra.mxu0 %v80
  %162 = vmatpush.msra.mxu0 %v79
  %163 = vmatpush.msra.mxu0 %v78
  %164 = vmatpush.msra.mxu0 %v77
  %165 = vmatmul.f32.gmra.mxu0 %v71
  %v166 = vpop.f32.mrf.mxu0
  %v167 = vadd.f32 %v134, %v166
  %168 = vmatmul.f32.gmra.mxu0 %v72
  %v169 = vpop.f32.mrf.mxu0
  %v170 = vadd.f32 %v137, %v169
  %171 = vmatmul.f32.gmra.mxu0 %v73
  %v172 = vpop.f32.mrf.mxu0
  %173 = vmatmul.f32.gmra.mxu0 %v74
  %v174 = vpop.f32.mrf.mxu0
  %v175 = vadd.f32 %v142, %v174
  %176 = vmatmul.f32.gmra.mxu0 %v75
  %v177 = vpop.f32.mrf.mxu0
  %v178 = vadd.f32 %v145, %v177
  %179 = vmatmul.f32.gmra.mxu0 %v76
  %v180 = vpop.f32.mrf.mxu0
  %181 = vdwg.mxu0
  %v182 = vld [vmem:[#allocation2 + $0x2] sm:$0xff]
  %v183 = vld [vmem:[#allocation2 + $0xa] sm:$0xff]
  %v184 = vld [vmem:[#allocation2 + $0x12] sm:$0xff]
  %v185 = vld [vmem:[#allocation2 + $0x1a] sm:$0xff]
  %v186 = vld [vmem:[#allocation2 + $0x22] sm:$0xff]
  %v187 = vld [vmem:[#allocation2 + $0x2a] sm:$0x3f]
  %s188 = scalar_lea.vmem %s2, 256
  %v189 = vld [vmem:[%s188] sm:$0xff]
  %v190 = vld [vmem:[%s188 + $0x8] sm:$0xff]
  %v191 = vld [vmem:[%s188 + $0x10] sm:$0xff]
  %v192 = vld [vmem:[%s188 + $0x18] sm:$0xff]
  %v193 = vld [vmem:[%s188 + $0x20] sm:$0xff]
  %v194 = vld [vmem:[%s188 + $0x28] sm:$0xff]
  %v195 = vld [vmem:[%s188 + $0x30] sm:$0xff]
  %v196 = vld [vmem:[%s188 + $0x38] sm:$0xff]
  %v197 = vld [vmem:[%s188 + $0x40] sm:$0xff]
  %v198 = vld [vmem:[%s188 + $0x48] sm:$0xff]
  %v199 = vld [vmem:[%s188 + $0x50] sm:$0xff]
  %v200 = vld [vmem:[%s188 + $0x58] sm:$0xff]
  %v201 = vld [vmem:[%s188 + $0x60] sm:$0xff]
  %v202 = vld [vmem:[%s188 + $0x68] sm:$0xff]
  %v203 = vld [vmem:[%s188 + $0x70] sm:$0xff]
  %v204 = vld [vmem:[%s188 + $0x78] sm:$0xff]
  %205 = vmatpush.msra.mxu0 %v204
  %206 = vmatpush.msra.mxu0 %v203
  %207 = vmatpush.msra.mxu0 %v202
  %208 = vmatpush.msra.mxu0 %v201
  %209 = vmatpush.msra.mxu0 %v200
  %210 = vmatpush.msra.mxu0 %v199
  %211 = vmatpush.msra.mxu0 %v198
  %212 = vmatpush.msra.mxu0 %v197
  %213 = vmatpush.msra.mxu0 %v196
  %214 = vmatpush.msra.mxu0 %v195
  %215 = vmatpush.msra.mxu0 %v194
  %216 = vmatpush.msra.mxu0 %v193
  %217 = vmatpush.msra.mxu0 %v192
  %218 = vmatpush.msra.mxu0 %v191
  %219 = vmatpush.msra.mxu0 %v190
  %220 = vmatpush.msra.mxu0 %v189
  %221 = vmatmul.f32.gmra.mxu0 %v182
  %v222 = vpop.f32.mrf.mxu0
  %v223 = vadd.f32 0.0, %v222
  %224 = vmatmul.f32.gmra.mxu0 %v183
  %v225 = vpop.f32.mrf.mxu0
  %v226 = vadd.f32 0.0, %v225
  %227 = vmatmul.f32.gmra.mxu0 %v184
  %v228 = vpop.f32.mrf.mxu0
  %229 = vmatmul.f32.gmra.mxu0 %v185
  %v230 = vpop.f32.mrf.mxu0
  %v231 = vadd.f32 0.0, %v230
  %232 = vmatmul.f32.gmra.mxu0 %v186
  %v233 = vpop.f32.mrf.mxu0
  %v234 = vadd.f32 0.0, %v233
  %235 = vmatmul.f32.gmra.mxu0 %v187
  %v236 = vpop.f32.mrf.mxu0
  %237 = vdwg.mxu0
  %v238 = vadd.f32 %v167, %v223
  %v239 = vadd.f32 %v170, %v226
  %v240 = vadd.f32 %v175, %v231
  %v241 = vadd.f32 %v178, %v234
  %v242 = vld [vmem:[%s3] sm:$0x1]
  %v244 = vperm.slane %v242, 0
  %v246 = vadd.f32 %v238, %v244
  %v247 = vadd.f32 %v239, %v244
  %v248 = vadd.f32 %v240, %v244
  %v249 = vadd.f32 %v241, %v244
  %v250 = vmax.f32 %v246, 0.0
  %v251 = vmax.f32 %v247, 0.0
  %v252 = vmax.f32 %v248, 0.0
  %v253 = vmax.f32 %v249, 0.0
  %254 = vst [vmem:[#allocation3 + $0x1] sm:$0xff] %v250
  %255 = vst [vmem:[#allocation3 + $0x9] sm:$0xff] %v251
  %256 = vst [vmem:[#allocation3 + $0x19] sm:$0xff] %v252
  %257 = vst [vmem:[#allocation3 + $0x21] sm:$0xff] %v253
  %v258 = vld [vmem:[#allocation3] sm:$0xff]
  %v259 = vld [vmem:[#allocation3 + $0x8] sm:$0xff]
  %v260 = vld [vmem:[#allocation3 + $0x10] sm:$0xff]
  %v261 = vld [vmem:[#allocation3 + $0x18] sm:$0xff]
  %v262 = vld [vmem:[#allocation3 + $0x20] sm:$0xff]
  %v263 = vld [vmem:[#allocation3 + $0x28] sm:$0x3f]
  %s264 = scalar_lea.vmem %s2, 384
  %v265 = vld [vmem:[%s264] sm:$0xff]
  %v266 = vld [vmem:[%s264 + $0x8] sm:$0xff]
  %v267 = vld [vmem:[%s264 + $0x10] sm:$0xff]
  %v268 = vld [vmem:[%s264 + $0x18] sm:$0xff]
  %v269 = vld [vmem:[%s264 + $0x20] sm:$0xff]
  %v270 = vld [vmem:[%s264 + $0x28] sm:$0xff]
  %v271 = vld [vmem:[%s264 + $0x30] sm:$0xff]
  %v272 = vld [vmem:[%s264 + $0x38] sm:$0xff]
  %v273 = vld [vmem:[%s264 + $0x40] sm:$0xff]
  %v274 = vld [vmem:[%s264 + $0x48] sm:$0xff]
  %v275 = vld [vmem:[%s264 + $0x50] sm:$0xff]
  %v276 = vld [vmem:[%s264 + $0x58] sm:$0xff]
  %v277 = vld [vmem:[%s264 + $0x60] sm:$0xff]
  %v278 = vld [vmem:[%s264 + $0x68] sm:$0xff]
  %v279 = vld [vmem:[%s264 + $0x70] sm:$0xff]
  %v280 = vld [vmem:[%s264 + $0x78] sm:$0xff]
  %v281 = vld [vmem:[#allocation3 + $0x1] sm:$0xff]
  %v282 = vld [vmem:[#allocation3 + $0x9] sm:$0xff]
  %v283 = vld [vmem:[#allocation3 + $0x11] sm:$0xff]
  %v284 = vld [vmem:[#allocation3 + $0x19] sm:$0xff]
  %v285 = vld [vmem:[#allocation3 + $0x21] sm:$0xff]
  %v286 = vld [vmem:[#allocation3 + $0x29] sm:$0x3f]
  %s287 = scalar_lea.vmem %s2, 512
  %v288 = vld [vmem:[%s287] sm:$0xff]
  %v289 = vld [vmem:[%s287 + $0x8] sm:$0xff]
  %v290 = vld [vmem:[%s287 + $0x10] sm:$0xff]
  %v291 = vld [vmem:[%s287 + $0x18] sm:$0xff]
  %v292 = vld [vmem:[%s287 + $0x20] sm:$0xff]
  %v293 = vld [vmem:[%s287 + $0x28] sm:$0xff]
  %v294 = vld [vmem:[%s287 + $0x30] sm:$0xff]
  %v295 = vld [vmem:[%s287 + $0x38] sm:$0xff]
  %v296 = vld [vmem:[%s287 + $0x40] sm:$0xff]
  %v297 = vld [vmem:[%s287 + $0x48] sm:$0xff]
  %v298 = vld [vmem:[%s287 + $0x50] sm:$0xff]
  %v299 = vld [vmem:[%s287 + $0x58] sm:$0xff]
  %v300 = vld [vmem:[%s287 + $0x60] sm:$0xff]
  %v301 = vld [vmem:[%s287 + $0x68] sm:$0xff]
  %v302 = vld [vmem:[%s287 + $0x70] sm:$0xff]
  %v303 = vld [vmem:[%s287 + $0x78] sm:$0xff]
  %304 = vmatpush.msra.mxu0 %v303
  %305 = vmatpush.msra.mxu0 %v302
  %306 = vmatpush.msra.mxu0 %v301
  %307 = vmatpush.msra.mxu0 %v300
  %308 = vmatpush.msra.mxu0 %v299
  %309 = vmatpush.msra.mxu0 %v298
  %310 = vmatpush.msra.mxu0 %v297
  %311 = vmatpush.msra.mxu0 %v296
  %312 = vmatpush.msra.mxu0 %v295
  %313 = vmatpush.msra.mxu0 %v294
  %314 = vmatpush.msra.mxu0 %v293
  %315 = vmatpush.msra.mxu0 %v292
  %316 = vmatpush.msra.mxu0 %v291
  %317 = vmatpush.msra.mxu0 %v290
  %318 = vmatpush.msra.mxu0 %v289
  %319 = vmatpush.msra.mxu0 %v288
  %320 = vmatmul.f32.gmra.mxu0 %v281
  %v321 = vpop.f32.mrf.mxu0
  %v322 = vadd.f32 0.0, %v321
  %323 = vmatmul.f32.gmra.mxu0 %v282
  %v324 = vpop.f32.mrf.mxu0
  %v325 = vadd.f32 0.0, %v324
  %326 = vmatmul.f32.gmra.mxu0 %v283
  %v327 = vpop.f32.mrf.mxu0
  %328 = vmatmul.f32.gmra.mxu0 %v284
  %v329 = vpop.f32.mrf.mxu0
  %v330 = vadd.f32 0.0, %v329
  %331 = vmatmul.f32.gmra.mxu0 %v285
  %v332 = vpop.f32.mrf.mxu0
  %v333 = vadd.f32 0.0, %v332
  %334 = vmatmul.f32.gmra.mxu0 %v286
  %v335 = vpop.f32.mrf.mxu0
  %336 = vdwg.mxu0
  %337 = vmatpush.msra.mxu0 %v280
  %338 = vmatpush.msra.mxu0 %v279
  %339 = vmatpush.msra.mxu0 %v278
  %340 = vmatpush.msra.mxu0 %v277
  %341 = vmatpush.msra.mxu0 %v276
  %342 = vmatpush.msra.mxu0 %v275
  %343 = vmatpush.msra.mxu0 %v274
  %344 = vmatpush.msra.mxu0 %v273
  %345 = vmatpush.msra.mxu0 %v272
  %346 = vmatpush.msra.mxu0 %v271
  %347 = vmatpush.msra.mxu0 %v270
  %348 = vmatpush.msra.mxu0 %v269
  %349 = vmatpush.msra.mxu0 %v268
  %350 = vmatpush.msra.mxu0 %v267
  %351 = vmatpush.msra.mxu0 %v266
  %352 = vmatpush.msra.mxu0 %v265
  %353 = vmatmul.f32.gmra.mxu0 %v258
  %v354 = vpop.f32.mrf.mxu0
  %v355 = vadd.f32 %v322, %v354
  %356 = vmatmul.f32.gmra.mxu0 %v259
  %v357 = vpop.f32.mrf.mxu0
  %v358 = vadd.f32 %v325, %v357
  %359 = vmatmul.f32.gmra.mxu0 %v260
  %v360 = vpop.f32.mrf.mxu0
  %361 = vmatmul.f32.gmra.mxu0 %v261
  %v362 = vpop.f32.mrf.mxu0
  %v363 = vadd.f32 %v330, %v362
  %364 = vmatmul.f32.gmra.mxu0 %v262
  %v365 = vpop.f32.mrf.mxu0
  %v366 = vadd.f32 %v333, %v365
  %367 = vmatmul.f32.gmra.mxu0 %v263
  %v368 = vpop.f32.mrf.mxu0
  %369 = vdwg.mxu0
  %v370 = vld [vmem:[#allocation3 + $0x2] sm:$0xff]
  %v371 = vld [vmem:[#allocation3 + $0xa] sm:$0xff]
  %v372 = vld [vmem:[#allocation3 + $0x12] sm:$0xff]
  %v373 = vld [vmem:[#allocation3 + $0x1a] sm:$0xff]
  %v374 = vld [vmem:[#allocation3 + $0x22] sm:$0xff]
  %v375 = vld [vmem:[#allocation3 + $0x2a] sm:$0x3f]
  %s376 = scalar_lea.vmem %s2, 640
  %v377 = vld [vmem:[%s376] sm:$0xff]
  %v378 = vld [vmem:[%s376 + $0x8] sm:$0xff]
  %v379 = vld [vmem:[%s376 + $0x10] sm:$0xff]
  %v380 = vld [vmem:[%s376 + $0x18] sm:$0xff]
  %v381 = vld [vmem:[%s376 + $0x20] sm:$0xff]
  %v382 = vld [vmem:[%s376 + $0x28] sm:$0xff]
  %v383 = vld [vmem:[%s376 + $0x30] sm:$0xff]
  %v384 = vld [vmem:[%s376 + $0x38] sm:$0xff]
  %v385 = vld [vmem:[%s376 + $0x40] sm:$0xff]
  %v386 = vld [vmem:[%s376 + $0x48] sm:$0xff]
  %v387 = vld [vmem:[%s376 + $0x50] sm:$0xff]
  %v388 = vld [vmem:[%s376 + $0x58] sm:$0xff]
  %v389 = vld [vmem:[%s376 + $0x60] sm:$0xff]
  %v390 = vld [vmem:[%s376 + $0x68] sm:$0xff]
  %v391 = vld [vmem:[%s376 + $0x70] sm:$0xff]
  %v392 = vld [vmem:[%s376 + $0x78] sm:$0xff]
  %393 = vmatpush.msra.mxu0 %v392
  %394 = vmatpush.msra.mxu0 %v391
  %395 = vmatpush.msra.mxu0 %v390
  %396 = vmatpush.msra.mxu0 %v389
  %397 = vmatpush.msra.mxu0 %v388
  %398 = vmatpush.msra.mxu0 %v387
  %399 = vmatpush.msra.mxu0 %v386
  %400 = vmatpush.msra.mxu0 %v385
  %401 = vmatpush.msra.mxu0 %v384
  %402 = vmatpush.msra.mxu0 %v383
  %403 = vmatpush.msra.mxu0 %v382
  %404 = vmatpush.msra.mxu0 %v381
  %405 = vmatpush.msra.mxu0 %v380
  %406 = vmatpush.msra.mxu0 %v379
  %407 = vmatpush.msra.mxu0 %v378
  %408 = vmatpush.msra.mxu0 %v377
  %409 = vmatmul.f32.gmra.mxu0 %v370
  %v410 = vpop.f32.mrf.mxu0
  %v411 = vadd.f32 0.0, %v410
  %412 = vmatmul.f32.gmra.mxu0 %v371
  %v413 = vpop.f32.mrf.mxu0
  %v414 = vadd.f32 0.0, %v413
  %415 = vmatmul.f32.gmra.mxu0 %v372
  %v416 = vpop.f32.mrf.mxu0
  %417 = vmatmul.f32.gmra.mxu0 %v373
  %v418 = vpop.f32.mrf.mxu0
  %v419 = vadd.f32 0.0, %v418
  %420 = vmatmul.f32.gmra.mxu0 %v374
  %v421 = vpop.f32.mrf.mxu0
  %v422 = vadd.f32 0.0, %v421
  %423 = vmatmul.f32.gmra.mxu0 %v375
  %v424 = vpop.f32.mrf.mxu0
  %425 = vdwg.mxu0
  %v426 = vadd.f32 %v355, %v411
  %v427 = vadd.f32 %v358, %v414
  %v428 = vadd.f32 %v363, %v419
  %v429 = vadd.f32 %v366, %v422
  %s430 = scalar_lea.vmem %s3, 1
  %v431 = vld [vmem:[%s430] sm:$0x1]
  %v433 = vperm.slane %v431, 0
  %v435 = vadd.f32 %v426, %v433
  %v436 = vadd.f32 %v427, %v433
  %v437 = vadd.f32 %v428, %v433
  %v438 = vadd.f32 %v429, %v433
  %v439 = vld [vmem:[#allocation2 + $0x1] sm:$0xff]
  %v440 = vld [vmem:[#allocation2 + $0x9] sm:$0xff]
  %v441 = vadd.f32 %v439, %v435
  %v442 = vadd.f32 %v440, %v436
  %443 = vst [vmem:[#allocation2 + $0x1] sm:$0xff] %v441
  %444 = vst [vmem:[#allocation2 + $0x9] sm:$0xff] %v442
  %v445 = vld [vmem:[#allocation2 + $0x19] sm:$0xff]
  %v446 = vld [vmem:[#allocation2 + $0x21] sm:$0xff]
  %v447 = vadd.f32 %v445, %v437
  %v448 = vadd.f32 %v446, %v438
  %449 = vst [vmem:[#allocation2 + $0x19] sm:$0xff] %v447
  %450 = vst [vmem:[#allocation2 + $0x21] sm:$0xff] %v448
  %v451 = vld [vmem:[#allocation2] sm:$0xff]
  %v452 = vld [vmem:[#allocation2 + $0x8] sm:$0xff]
  %v453 = vld [vmem:[#allocation2 + $0x10] sm:$0xff]
  %v454 = vld [vmem:[#allocation2 + $0x18] sm:$0xff]
  %v455 = vld [vmem:[#allocation2 + $0x20] sm:$0xff]
  %v456 = vld [vmem:[#allocation2 + $0x28] sm:$0x3f]
  %s457 = scalar_lea.vmem %s2, 768
  %v458 = vld [vmem:[%s457] sm:$0xff]
  %v459 = vld [vmem:[%s457 + $0x8] sm:$0xff]
  %v460 = vld [vmem:[%s457 + $0x10] sm:$0xff]
  %v461 = vld [vmem:[%s457 + $0x18] sm:$0xff]
  %v462 = vld [vmem:[%s457 + $0x20] sm:$0xff]
  %v463 = vld [vmem:[%s457 + $0x28] sm:$0xff]
  %v464 = vld [vmem:[%s457 + $0x30] sm:$0xff]
  %v465 = vld [vmem:[%s457 + $0x38] sm:$0xff]
  %v466 = vld [vmem:[%s457 + $0x40] sm:$0xff]
  %v467 = vld [vmem:[%s457 + $0x48] sm:$0xff]
  %v468 = vld [vmem:[%s457 + $0x50] sm:$0xff]
  %v469 = vld [vmem:[%s457 + $0x58] sm:$0xff]
  %v470 = vld [vmem:[%s457 + $0x60] sm:$0xff]
  %v471 = vld [vmem:[%s457 + $0x68] sm:$0xff]
  %v472 = vld [vmem:[%s457 + $0x70] sm:$0xff]
  %v473 = vld [vmem:[%s457 + $0x78] sm:$0xff]
  %v474 = vld [vmem:[#allocation2 + $0x1] sm:$0xff]
  %v475 = vld [vmem:[#allocation2 + $0x9] sm:$0xff]
  %v476 = vld [vmem:[#allocation2 + $0x11] sm:$0xff]
  %v477 = vld [vmem:[#allocation2 + $0x19] sm:$0xff]
  %v478 = vld [vmem:[#allocation2 + $0x21] sm:$0xff]
  %v479 = vld [vmem:[#allocation2 + $0x29] sm:$0x3f]
  %s480 = scalar_lea.vmem %s2, 896
  %v481 = vld [vmem:[%s480] sm:$0xff]
  %v482 = vld [vmem:[%s480 + $0x8] sm:$0xff]
  %v483 = vld [vmem:[%s480 + $0x10] sm:$0xff]
  %v484 = vld [vmem:[%s480 + $0x18] sm:$0xff]
  %v485 = vld [vmem:[%s480 + $0x20] sm:$0xff]
  %v486 = vld [vmem:[%s480 + $0x28] sm:$0xff]
  %v487 = vld [vmem:[%s480 + $0x30] sm:$0xff]
  %v488 = vld [vmem:[%s480 + $0x38] sm:$0xff]
  %v489 = vld [vmem:[%s480 + $0x40] sm:$0xff]
  %v490 = vld [vmem:[%s480 + $0x48] sm:$0xff]
  %v491 = vld [vmem:[%s480 + $0x50] sm:$0xff]
  %v492 = vld [vmem:[%s480 + $0x58] sm:$0xff]
  %v493 = vld [vmem:[%s480 + $0x60] sm:$0xff]
  %v494 = vld [vmem:[%s480 + $0x68] sm:$0xff]
  %v495 = vld [vmem:[%s480 + $0x70] sm:$0xff]
  %v496 = vld [vmem:[%s480 + $0x78] sm:$0xff]
  %497 = vmatpush.msra.mxu0 %v496
  %498 = vmatpush.msra.mxu0 %v495
  %499 = vmatpush.msra.mxu0 %v494
  %500 = vmatpush.msra.mxu0 %v493
  %501 = vmatpush.msra.mxu0 %v492
  %502 = vmatpush.msra.mxu0 %v491
  %503 = vmatpush.msra.mxu0 %v490
  %504 = vmatpush.msra.mxu0 %v489
  %505 = vmatpush.msra.mxu0 %v488
  %506 = vmatpush.msra.mxu0 %v487
  %507 = vmatpush.msra.mxu0 %v486
  %508 = vmatpush.msra.mxu0 %v485
  %509 = vmatpush.msra.mxu0 %v484
  %510 = vmatpush.msra.mxu0 %v483
  %511 = vmatpush.msra.mxu0 %v482
  %512 = vmatpush.msra.mxu0 %v481
  %513 = vmatmul.f32.gmra.mxu0 %v474
  %v514 = vpop.f32.mrf.mxu0
  %v515 = vadd.f32 0.0, %v514
  %516 = vmatmul.f32.gmra.mxu0 %v475
  %v517 = vpop.f32.mrf.mxu0
  %v518 = vadd.f32 0.0, %v517
  %519 = vmatmul.f32.gmra.mxu0 %v476
  %v520 = vpop.f32.mrf.mxu0
  %521 = vmatmul.f32.gmra.mxu0 %v477
  %v522 = vpop.f32.mrf.mxu0
  %v523 = vadd.f32 0.0, %v522
  %524 = vmatmul.f32.gmra.mxu0 %v478
  %v525 = vpop.f32.mrf.mxu0
  %v526 = vadd.f32 0.0, %v525
  %527 = vmatmul.f32.gmra.mxu0 %v479
  %v528 = vpop.f32.mrf.mxu0
  %529 = vdwg.mxu0
  %530 = vmatpush.msra.mxu0 %v473
  %531 = vmatpush.msra.mxu0 %v472
  %532 = vmatpush.msra.mxu0 %v471
  %533 = vmatpush.msra.mxu0 %v470
  %534 = vmatpush.msra.mxu0 %v469
  %535 = vmatpush.msra.mxu0 %v468
  %536 = vmatpush.msra.mxu0 %v467
  %537 = vmatpush.msra.mxu0 %v466
  %538 = vmatpush.msra.mxu0 %v465
  %539 = vmatpush.msra.mxu0 %v464
  %540 = vmatpush.msra.mxu0 %v463
  %541 = vmatpush.msra.mxu0 %v462
  %542 = vmatpush.msra.mxu0 %v461
  %543 = vmatpush.msra.mxu0 %v460
  %544 = vmatpush.msra.mxu0 %v459
  %545 = vmatpush.msra.mxu0 %v458
  %546 = vmatmul.f32.gmra.mxu0 %v451
  %v547 = vpop.f32.mrf.mxu0
  %v548 = vadd.f32 %v515, %v547
  %549 = vmatmul.f32.gmra.mxu0 %v452
  %v550 = vpop.f32.mrf.mxu0
  %v551 = vadd.f32 %v518, %v550
  %552 = vmatmul.f32.gmra.mxu0 %v453
  %v553 = vpop.f32.mrf.mxu0
  %554 = vmatmul.f32.gmra.mxu0 %v454
  %v555 = vpop.f32.mrf.mxu0
  %v556 = vadd.f32 %v523, %v555
  %557 = vmatmul.f32.gmra.mxu0 %v455
  %v558 = vpop.f32.mrf.mxu0
  %v559 = vadd.f32 %v526, %v558
  %560 = vmatmul.f32.gmra.mxu0 %v456
  %v561 = vpop.f32.mrf.mxu0
  %562 = vdwg.mxu0
  %v563 = vld [vmem:[#allocation2 + $0x2] sm:$0xff]
  %v564 = vld [vmem:[#allocation2 + $0xa] sm:$0xff]
  %v565 = vld [vmem:[#allocation2 + $0x12] sm:$0xff]
  %v566 = vld [vmem:[#allocation2 + $0x1a] sm:$0xff]
  %v567 = vld [vmem:[#allocation2 + $0x22] sm:$0xff]
  %v568 = vld [vmem:[#allocation2 + $0x2a] sm:$0x3f]
  %s569 = scalar_lea.vmem %s2, 1024
  %v570 = vld [vmem:[%s569] sm:$0xff]
  %v571 = vld [vmem:[%s569 + $0x8] sm:$0xff]
  %v572 = vld [vmem:[%s569 + $0x10] sm:$0xff]
  %v573 = vld [vmem:[%s569 + $0x18] sm:$0xff]
  %v574 = vld [vmem:[%s569 + $0x20] sm:$0xff]
  %v575 = vld [vmem:[%s569 + $0x28] sm:$0xff]
  %v576 = vld [vmem:[%s569 + $0x30] sm:$0xff]
  %v577 = vld [vmem:[%s569 + $0x38] sm:$0xff]
  %v578 = vld [vmem:[%s569 + $0x40] sm:$0xff]
  %v579 = vld [vmem:[%s569 + $0x48] sm:$0xff]
  %v580 = vld [vmem:[%s569 + $0x50] sm:$0xff]
  %v581 = vld [vmem:[%s569 + $0x58] sm:$0xff]
  %v582 = vld [vmem:[%s569 + $0x60] sm:$0xff]
  %v583 = vld [vmem:[%s569 + $0x68] sm:$0xff]
  %v584 = vld [vmem:[%s569 + $0x70] sm:$0xff]
  %v585 = vld [vmem:[%s569 + $0x78] sm:$0xff]
  %586 = vmatpush.msra.mxu0 %v585
  %587 = vmatpush.msra.mxu0 %v584
  %588 = vmatpush.msra.mxu0 %v583
  %589 = vmatpush.msra.mxu0 %v582
  %590 = vmatpush.msra.mxu0 %v581
  %591 = vmatpush.msra.mxu0 %v580
  %592 = vmatpush.msra.mxu0 %v579
  %593 = vmatpush.msra.mxu0 %v578
  %594 = vmatpush.msra.mxu0 %v577
  %595 = vmatpush.msra.mxu0 %v576
  %596 = vmatpush.msra.mxu0 %v575
  %597 = vmatpush.msra.mxu0 %v574
  %598 = vmatpush.msra.mxu0 %v573
  %599 = vmatpush.msra.mxu0 %v572
  %600 = vmatpush.msra.mxu0 %v571
  %601 = vmatpush.msra.mxu0 %v570
  %602 = vmatmul.f32.gmra.mxu0 %v563
  %v603 = vpop.f32.mrf.mxu0
  %v604 = vadd.f32 0.0, %v603
  %605 = vmatmul.f32.gmra.mxu0 %v564
  %v606 = vpop.f32.mrf.mxu0
  %v607 = vadd.f32 0.0, %v606
  %608 = vmatmul.f32.gmra.mxu0 %v565
  %v609 = vpop.f32.mrf.mxu0
  %610 = vmatmul.f32.gmra.mxu0 %v566
  %v611 = vpop.f32.mrf.mxu0
  %v612 = vadd.f32 0.0, %v611
  %613 = vmatmul.f32.gmra.mxu0 %v567
  %v614 = vpop.f32.mrf.mxu0
  %v615 = vadd.f32 0.0, %v614
  %616 = vmatmul.f32.gmra.mxu0 %v568
  %v617 = vpop.f32.mrf.mxu0
  %618 = vdwg.mxu0
  %v619 = vadd.f32 %v548, %v604
  %v620 = vadd.f32 %v551, %v607
  %v621 = vadd.f32 %v556, %v612
  %v622 = vadd.f32 %v559, %v615
  %s623 = scalar_lea.vmem %s3, 2
  %v624 = vld [vmem:[%s623] sm:$0x1]
  %v626 = vperm.slane %v624, 0
  %v628 = vadd.f32 %v619, %v626
  %v629 = vadd.f32 %v620, %v626
  %v630 = vadd.f32 %v621, %v626
  %v631 = vadd.f32 %v622, %v626
  %v632 = vmax.f32 %v628, 0.0
  %v633 = vmax.f32 %v629, 0.0
  %v634 = vmax.f32 %v630, 0.0
  %v635 = vmax.f32 %v631, 0.0
  %636 = vst [vmem:[#allocation3 + $0x1] sm:$0xff] %v632
  %637 = vst [vmem:[#allocation3 + $0x9] sm:$0xff] %v633
  %638 = vst [vmem:[#allocation3 + $0x19] sm:$0xff] %v634
  %639 = vst [vmem:[#allocation3 + $0x21] sm:$0xff] %v635
  %v640 = vld [vmem:[#allocation3] sm:$0xff]
  %v641 = vld [vmem:[#allocation3 + $0x8] sm:$0xff]
  %v642 = vld [vmem:[#allocation3 + $0x10] sm:$0xff]
  %v643 = vld [vmem:[#allocation3 + $0x18] sm:$0xff]
  %v644 = vld [vmem:[#allocation3 + $0x20] sm:$0xff]
  %v645 = vld [vmem:[#allocation3 + $0x28] sm:$0x3f]
  %s646 = scalar_lea.vmem %s2, 1152
  %v647 = vld [vmem:[%s646] sm:$0xff]
  %v648 = vld [vmem:[%s646 + $0x8] sm:$0xff]
  %v649 = vld [vmem:[%s646 + $0x10] sm:$0xff]
  %v650 = vld [vmem:[%s646 + $0x18] sm:$0xff]
  %v651 = vld [vmem:[%s646 + $0x20] sm:$0xff]
  %v652 = vld [vmem:[%s646 + $0x28] sm:$0xff]
  %v653 = vld [vmem:[%s646 + $0x30] sm:$0xff]
  %v654 = vld [vmem:[%s646 + $0x38] sm:$0xff]
  %v655 = vld [vmem:[%s646 + $0x40] sm:$0xff]
  %v656 = vld [vmem:[%s646 + $0x48] sm:$0xff]
  %v657 = vld [vmem:[%s646 + $0x50] sm:$0xff]
  %v658 = vld [vmem:[%s646 + $0x58] sm:$0xff]
  %v659 = vld [vmem:[%s646 + $0x60] sm:$0xff]
  %v660 = vld [vmem:[%s646 + $0x68] sm:$0xff]
  %v661 = vld [vmem:[%s646 + $0x70] sm:$0xff]
  %v662 = vld [vmem:[%s646 + $0x78] sm:$0xff]
  %v663 = vld [vmem:[#allocation3 + $0x1] sm:$0xff]
  %v664 = vld [vmem:[#allocation3 + $0x9] sm:$0xff]
  %v665 = vld [vmem:[#allocation3 + $0x11] sm:$0xff]
  %v666 = vld [vmem:[#allocation3 + $0x19] sm:$0xff]
  %v667 = vld [vmem:[#allocation3 + $0x21] sm:$0xff]
  %v668 = vld [vmem:[#allocation3 + $0x29] sm:$0x3f]
  %s669 = scalar_lea.vmem %s2, 1280
  %v670 = vld [vmem:[%s669] sm:$0xff]
  %v671 = vld [vmem:[%s669 + $0x8] sm:$0xff]
  %v672 = vld [vmem:[%s669 + $0x10] sm:$0xff]
  %v673 = vld [vmem:[%s669 + $0x18] sm:$0xff]
  %v674 = vld [vmem:[%s669 + $0x20] sm:$0xff]
  %v675 = vld [vmem:[%s669 + $0x28] sm:$0xff]
  %v676 = vld [vmem:[%s669 + $0x30] sm:$0xff]
  %v677 = vld [vmem:[%s669 + $0x38] sm:$0xff]
  %v678 = vld [vmem:[%s669 + $0x40] sm:$0xff]
  %v679 = vld [vmem:[%s669 + $0x48] sm:$0xff]
  %v680 = vld [vmem:[%s669 + $0x50] sm:$0xff]
  %v681 = vld [vmem:[%s669 + $0x58] sm:$0xff]
  %v682 = vld [vmem:[%s669 + $0x60] sm:$0xff]
  %v683 = vld [vmem:[%s669 + $0x68] sm:$0xff]
  %v684 = vld [vmem:[%s669 + $0x70] sm:$0xff]
  %v685 = vld [vmem:[%s669 + $0x78] sm:$0xff]
  %686 = vmatpush.msra.mxu0 %v685
  %687 = vmatpush.msra.mxu0 %v684
  %688 = vmatpush.msra.mxu0 %v683
  %689 = vmatpush.msra.mxu0 %v682
  %690 = vmatpush.msra.mxu0 %v681
  %691 = vmatpush.msra.mxu0 %v680
  %692 = vmatpush.msra.mxu0 %v679
  %693 = vmatpush.msra.mxu0 %v678
  %694 = vmatpush.msra.mxu0 %v677
  %695 = vmatpush.msra.mxu0 %v676
  %696 = vmatpush.msra.mxu0 %v675
  %697 = vmatpush.msra.mxu0 %v674
  %698 = vmatpush.msra.mxu0 %v673
  %699 = vmatpush.msra.mxu0 %v672
  %700 = vmatpush.msra.mxu0 %v671
  %701 = vmatpush.msra.mxu0 %v670
  %702 = vmatmul.f32.gmra.mxu0 %v663
  %v703 = vpop.f32.mrf.mxu0
  %v704 = vadd.f32 0.0, %v703
  %705 = vmatmul.f32.gmra.mxu0 %v664
  %v706 = vpop.f32.mrf.mxu0
  %v707 = vadd.f32 0.0, %v706
  %708 = vmatmul.f32.gmra.mxu0 %v665
  %v709 = vpop.f32.mrf.mxu0
  %710 = vmatmul.f32.gmra.mxu0 %v666
  %v711 = vpop.f32.mrf.mxu0
  %v712 = vadd.f32 0.0, %v711
  %713 = vmatmul.f32.gmra.mxu0 %v667
  %v714 = vpop.f32.mrf.mxu0
  %v715 = vadd.f32 0.0, %v714
  %716 = vmatmul.f32.gmra.mxu0 %v668
  %v717 = vpop.f32.mrf.mxu0
  %718 = vdwg.mxu0
  %719 = vmatpush.msra.mxu0 %v662
  %720 = vmatpush.msra.mxu0 %v661
  %721 = vmatpush.msra.mxu0 %v660
  %722 = vmatpush.msra.mxu0 %v659
  %723 = vmatpush.msra.mxu0 %v658
  %724 = vmatpush.msra.mxu0 %v657
  %725 = vmatpush.msra.mxu0 %v656
  %726 = vmatpush.msra.mxu0 %v655
  %727 = vmatpush.msra.mxu0 %v654
  %728 = vmatpush.msra.mxu0 %v653
  %729 = vmatpush.msra.mxu0 %v652
  %730 = vmatpush.msra.mxu0 %v651
  %731 = vmatpush.msra.mxu0 %v650
  %732 = vmatpush.msra.mxu0 %v649
  %733 = vmatpush.msra.mxu0 %v648
  %734 = vmatpush.msra.mxu0 %v647
  %735 = vmatmul.f32.gmra.mxu0 %v640
  %v736 = vpop.f32.mrf.mxu0
  %v737 = vadd.f32 %v704, %v736
  %738 = vmatmul.f32.gmra.mxu0 %v641
  %v739 = vpop.f32.mrf.mxu0
  %v740 = vadd.f32 %v707, %v739
  %741 = vmatmul.f32.gmra.mxu0 %v642
  %v742 = vpop.f32.mrf.mxu0
  %743 = vmatmul.f32.gmra.mxu0 %v643
  %v744 = vpop.f32.mrf.mxu0
  %v745 = vadd.f32 %v712, %v744
  %746 = vmatmul.f32.gmra.mxu0 %v644
  %v747 = vpop.f32.mrf.mxu0
  %v748 = vadd.f32 %v715, %v747
  %749 = vmatmul.f32.gmra.mxu0 %v645
  %v750 = vpop.f32.mrf.mxu0
  %751 = vdwg.mxu0
  %v752 = vld [vmem:[#allocation3 + $0x2] sm:$0xff]
  %v753 = vld [vmem:[#allocation3 + $0xa] sm:$0xff]
  %v754 = vld [vmem:[#allocation3 + $0x12] sm:$0xff]
  %v755 = vld [vmem:[#allocation3 + $0x1a] sm:$0xff]
  %v756 = vld [vmem:[#allocation3 + $0x22] sm:$0xff]
  %v757 = vld [vmem:[#allocation3 + $0x2a] sm:$0x3f]
  %s758 = scalar_lea.vmem %s2, 1408
  %v759 = vld [vmem:[%s758] sm:$0xff]
  %v760 = vld [vmem:[%s758 + $0x8] sm:$0xff]
  %v761 = vld [vmem:[%s758 + $0x10] sm:$0xff]
  %v762 = vld [vmem:[%s758 + $0x18] sm:$0xff]
  %v763 = vld [vmem:[%s758 + $0x20] sm:$0xff]
  %v764 = vld [vmem:[%s758 + $0x28] sm:$0xff]
  %v765 = vld [vmem:[%s758 + $0x30] sm:$0xff]
  %v766 = vld [vmem:[%s758 + $0x38] sm:$0xff]
  %v767 = vld [vmem:[%s758 + $0x40] sm:$0xff]
  %v768 = vld [vmem:[%s758 + $0x48] sm:$0xff]
  %v769 = vld [vmem:[%s758 + $0x50] sm:$0xff]
  %v770 = vld [vmem:[%s758 + $0x58] sm:$0xff]
  %v771 = vld [vmem:[%s758 + $0x60] sm:$0xff]
  %v772 = vld [vmem:[%s758 + $0x68] sm:$0xff]
  %v773 = vld [vmem:[%s758 + $0x70] sm:$0xff]
  %v774 = vld [vmem:[%s758 + $0x78] sm:$0xff]
  %775 = vmatpush.msra.mxu0 %v774
  %776 = vmatpush.msra.mxu0 %v773
  %777 = vmatpush.msra.mxu0 %v772
  %778 = vmatpush.msra.mxu0 %v771
  %779 = vmatpush.msra.mxu0 %v770
  %780 = vmatpush.msra.mxu0 %v769
  %781 = vmatpush.msra.mxu0 %v768
  %782 = vmatpush.msra.mxu0 %v767
  %783 = vmatpush.msra.mxu0 %v766
  %784 = vmatpush.msra.mxu0 %v765
  %785 = vmatpush.msra.mxu0 %v764
  %786 = vmatpush.msra.mxu0 %v763
  %787 = vmatpush.msra.mxu0 %v762
  %788 = vmatpush.msra.mxu0 %v761
  %789 = vmatpush.msra.mxu0 %v760
  %790 = vmatpush.msra.mxu0 %v759
  %791 = vmatmul.f32.gmra.mxu0 %v752
  %v792 = vpop.f32.mrf.mxu0
  %v793 = vadd.f32 0.0, %v792
  %794 = vmatmul.f32.gmra.mxu0 %v753
  %v795 = vpop.f32.mrf.mxu0
  %v796 = vadd.f32 0.0, %v795
  %797 = vmatmul.f32.gmra.mxu0 %v754
  %v798 = vpop.f32.mrf.mxu0
  %799 = vmatmul.f32.gmra.mxu0 %v755
  %v800 = vpop.f32.mrf.mxu0
  %v801 = vadd.f32 0.0, %v800
  %802 = vmatmul.f32.gmra.mxu0 %v756
  %v803 = vpop.f32.mrf.mxu0
  %v804 = vadd.f32 0.0, %v803
  %805 = vmatmul.f32.gmra.mxu0 %v757
  %v806 = vpop.f32.mrf.mxu0
  %807 = vdwg.mxu0
  %v808 = vadd.f32 %v737, %v793
  %v809 = vadd.f32 %v740, %v796
  %v810 = vadd.f32 %v745, %v801
  %v811 = vadd.f32 %v748, %v804
  %s812 = scalar_lea.vmem %s3, 3
  %v813 = vld [vmem:[%s812] sm:$0x1]
  %v815 = vperm.slane %v813, 0
  %v817 = vadd.f32 %v808, %v815
  %v818 = vadd.f32 %v809, %v815
  %v819 = vadd.f32 %v810, %v815
  %v820 = vadd.f32 %v811, %v815
  %v821 = vld [vmem:[#allocation2 + $0x1] sm:$0xff]
  %v822 = vld [vmem:[#allocation2 + $0x9] sm:$0xff]
  %v823 = vadd.f32 %v821, %v817
  %v824 = vadd.f32 %v822, %v818
  %825 = vst [vmem:[#allocation2 + $0x1] sm:$0xff] %v823
  %826 = vst [vmem:[#allocation2 + $0x9] sm:$0xff] %v824
  %v827 = vld [vmem:[#allocation2 + $0x19] sm:$0xff]
  %v828 = vld [vmem:[#allocation2 + $0x21] sm:$0xff]
  %v829 = vadd.f32 %v827, %v819
  %v830 = vadd.f32 %v828, %v820
  %831 = vst [vmem:[#allocation2 + $0x19] sm:$0xff] %v829
  %832 = vst [vmem:[#allocation2 + $0x21] sm:$0xff] %v830
  %v833 = vld [vmem:[#allocation2] sm:$0xff]
  %v834 = vld [vmem:[#allocation2 + $0x8] sm:$0xff]
  %v835 = vld [vmem:[#allocation2 + $0x10] sm:$0xff]
  %v836 = vld [vmem:[#allocation2 + $0x18] sm:$0xff]
  %v837 = vld [vmem:[#allocation2 + $0x20] sm:$0xff]
  %v838 = vld [vmem:[#allocation2 + $0x28] sm:$0x3f]
  %v839 = vld [vmem:[%s4] sm:$0xff]
  %v840 = vld [vmem:[%s4 + $0x8] sm:$0xff]
  %v841 = vld [vmem:[%s4 + $0x10] sm:$0xff]
  %v842 = vld [vmem:[%s4 + $0x18] sm:$0xff]
  %v843 = vld [vmem:[%s4 + $0x20] sm:$0xff]
  %v844 = vld [vmem:[%s4 + $0x28] sm:$0xff]
  %v845 = vld [vmem:[%s4 + $0x30] sm:$0xff]
  %v846 = vld [vmem:[%s4 + $0x38] sm:$0xff]
  %v847 = vld [vmem:[%s4 + $0x40] sm:$0xff]
  %v848 = vld [vmem:[%s4 + $0x48] sm:$0xff]
  %v849 = vld [vmem:[%s4 + $0x50] sm:$0xff]
  %v850 = vld [vmem:[%s4 + $0x58] sm:$0xff]
  %v851 = vld [vmem:[%s4 + $0x60] sm:$0xff]
  %v852 = vld [vmem:[%s4 + $0x68] sm:$0xff]
  %v853 = vld [vmem:[%s4 + $0x70] sm:$0xff]
  %v854 = vld [vmem:[%s4 + $0x78] sm:$0xff]
  %v855 = vld [vmem:[%s4 + $0x80] sm:$0xff]
  %v856 = vld [vmem:[%s4 + $0x88] sm:$0xff]
  %v857 = vld [vmem:[%s4 + $0x90] sm:$0xff]
  %v858 = vld [vmem:[%s4 + $0x98] sm:$0xff]
  %v859 = vld [vmem:[%s4 + $0xa0] sm:$0xff]
  %v860 = vld [vmem:[%s4 + $0xa8] sm:$0xff]
  %v861 = vld [vmem:[%s4 + $0xb0] sm:$0xff]
  %v862 = vld [vmem:[%s4 + $0xb8] sm:$0xff]
  %v863 = vld [vmem:[%s4 + $0xc0] sm:$0xff]
  %v864 = vld [vmem:[%s4 + $0xc8] sm:$0xff]
  %v865 = vld [vmem:[%s4 + $0xd0] sm:$0xff]
  %v866 = vld [vmem:[%s4 + $0xd8] sm:$0xff]
  %v867 = vld [vmem:[%s4 + $0xe0] sm:$0xff]
  %v868 = vld [vmem:[%s4 + $0xe8] sm:$0xff]
  %v869 = vld [vmem:[%s4 + $0xf0] sm:$0xff]
  %v870 = vld [vmem:[%s4 + $0xf8] sm:$0xff]
  %v871 = vld [vmem:[%s4 + $0x100] sm:$0xff]
  %v872 = vld [vmem:[%s4 + $0x108] sm:$0xff]
  %v873 = vld [vmem:[%s4 + $0x110] sm:$0xff]
  %v874 = vld [vmem:[%s4 + $0x118] sm:$0xff]
  %v875 = vld [vmem:[%s4 + $0x120] sm:$0xff]
  %v876 = vld [vmem:[%s4 + $0x128] sm:$0xff]
  %v877 = vld [vmem:[%s4 + $0x130] sm:$0xff]
  %v878 = vld [vmem:[%s4 + $0x138] sm:$0xff]
  %v879 = vld [vmem:[%s4 + $0x140] sm:$0xff]
  %v880 = vld [vmem:[%s4 + $0x148] sm:$0xff]
  %v881 = vld [vmem:[%s4 + $0x150] sm:$0xff]
  %v882 = vld [vmem:[%s4 + $0x158] sm:$0xff]
  %v883 = vld [vmem:[%s4 + $0x160] sm:$0xff]
  %v884 = vld [vmem:[%s4 + $0x168] sm:$0xff]
  %v885 = vld [vmem:[%s4 + $0x170] sm:$0xff]
  %v886 = vld [vmem:[%s4 + $0x178] sm:$0xff]
  %v887 = vld [vmem:[%s4 + $0x180] sm:$0xff]
  %v888 = vld [vmem:[%s4 + $0x188] sm:$0xff]
  %v889 = vld [vmem:[%s4 + $0x190] sm:$0xff]
  %v890 = vld [vmem:[%s4 + $0x198] sm:$0xff]
  %v891 = vld [vmem:[%s4 + $0x1a0] sm:$0xff]
  %v892 = vld [vmem:[%s4 + $0x1a8] sm:$0xff]
  %v893 = vld [vmem:[%s4 + $0x1b0] sm:$0xff]
  %v894 = vld [vmem:[%s4 + $0x1b8] sm:$0xff]
  %v895 = vld [vmem:[%s4 + $0x1c0] sm:$0xff]
  %v896 = vld [vmem:[%s4 + $0x1c8] sm:$0xff]
  %v897 = vld [vmem:[%s4 + $0x1d0] sm:$0xff]
  %v898 = vld [vmem:[%s4 + $0x1d8] sm:$0xff]
  %v899 = vld [vmem:[%s4 + $0x1e0] sm:$0xff]
  %v900 = vld [vmem:[%s4 + $0x1e8] sm:$0xff]
  %v901 = vld [vmem:[%s4 + $0x1f0] sm:$0xff]
  %v902 = vld [vmem:[%s4 + $0x1f8] sm:$0xff]
  %v903 = vld [vmem:[#allocation2 + $0x1] sm:$0xff]
  %v904 = vld [vmem:[#allocation2 + $0x9] sm:$0xff]
  %v905 = vld [vmem:[#allocation2 + $0x11] sm:$0xff]
  %v906 = vld [vmem:[#allocation2 + $0x19] sm:$0xff]
  %v907 = vld [vmem:[#allocation2 + $0x21] sm:$0xff]
  %v908 = vld [vmem:[#allocation2 + $0x29] sm:$0x3f]
  %s909 = scalar_lea.vmem %s4, 512
  %v910 = vld [vmem:[%s909] sm:$0xff]
  %v911 = vld [vmem:[%s909 + $0x8] sm:$0xff]
  %v912 = vld [vmem:[%s909 + $0x10] sm:$0xff]
  %v913 = vld [vmem:[%s909 + $0x18] sm:$0xff]
  %v914 = vld [vmem:[%s909 + $0x20] sm:$0xff]
  %v915 = vld [vmem:[%s909 + $0x28] sm:$0xff]
  %v916 = vld [vmem:[%s909 + $0x30] sm:$0xff]
  %v917 = vld [vmem:[%s909 + $0x38] sm:$0xff]
  %v918 = vld [vmem:[%s909 + $0x40] sm:$0xff]
  %v919 = vld [vmem:[%s909 + $0x48] sm:$0xff]
  %v920 = vld [vmem:[%s909 + $0x50] sm:$0xff]
  %v921 = vld [vmem:[%s909 + $0x58] sm:$0xff]
  %v922 = vld [vmem:[%s909 + $0x60] sm:$0xff]
  %v923 = vld [vmem:[%s909 + $0x68] sm:$0xff]
  %v924 = vld [vmem:[%s909 + $0x70] sm:$0xff]
  %v925 = vld [vmem:[%s909 + $0x78] sm:$0xff]
  %v926 = vld [vmem:[%s909 + $0x80] sm:$0xff]
  %v927 = vld [vmem:[%s909 + $0x88] sm:$0xff]
  %v928 = vld [vmem:[%s909 + $0x90] sm:$0xff]
  %v929 = vld [vmem:[%s909 + $0x98] sm:$0xff]
  %v930 = vld [vmem:[%s909 + $0xa0] sm:$0xff]
  %v931 = vld [vmem:[%s909 + $0xa8] sm:$0xff]
  %v932 = vld [vmem:[%s909 + $0xb0] sm:$0xff]
  %v933 = vld [vmem:[%s909 + $0xb8] sm:$0xff]
  %v934 = vld [vmem:[%s909 + $0xc0] sm:$0xff]
  %v935 = vld [vmem:[%s909 + $0xc8] sm:$0xff]
  %v936 = vld [vmem:[%s909 + $0xd0] sm:$0xff]
  %v937 = vld [vmem:[%s909 + $0xd8] sm:$0xff]
  %v938 = vld [vmem:[%s909 + $0xe0] sm:$0xff]
  %v939 = vld [vmem:[%s909 + $0xe8] sm:$0xff]
  %v940 = vld [vmem:[%s909 + $0xf0] sm:$0xff]
  %v941 = vld [vmem:[%s909 + $0xf8] sm:$0xff]
  %v942 = vld [vmem:[%s909 + $0x100] sm:$0xff]
  %v943 = vld [vmem:[%s909 + $0x108] sm:$0xff]
  %v944 = vld [vmem:[%s909 + $0x110] sm:$0xff]
  %v945 = vld [vmem:[%s909 + $0x118] sm:$0xff]
  %v946 = vld [vmem:[%s909 + $0x120] sm:$0xff]
  %v947 = vld [vmem:[%s909 + $0x128] sm:$0xff]
  %v948 = vld [vmem:[%s909 + $0x130] sm:$0xff]
  %v949 = vld [vmem:[%s909 + $0x138] sm:$0xff]
  %v950 = vld [vmem:[%s909 + $0x140] sm:$0xff]
  %v951 = vld [vmem:[%s909 + $0x148] sm:$0xff]
  %v952 = vld [vmem:[%s909 + $0x150] sm:$0xff]
  %v953 = vld [vmem:[%s909 + $0x158] sm:$0xff]
  %v954 = vld [vmem:[%s909 + $0x160] sm:$0xff]
  %v955 = vld [vmem:[%s909 + $0x168] sm:$0xff]
  %v956 = vld [vmem:[%s909 + $0x170] sm:$0xff]
  %v957 = vld [vmem:[%s909 + $0x178] sm:$0xff]
  %v958 = vld [vmem:[%s909 + $0x180] sm:$0xff]
  %v959 = vld [vmem:[%s909 + $0x188] sm:$0xff]
  %v960 = vld [vmem:[%s909 + $0x190] sm:$0xff]
  %v961 = vld [vmem:[%s909 + $0x198] sm:$0xff]
  %v962 = vld [vmem:[%s909 + $0x1a0] sm:$0xff]
  %v963 = vld [vmem:[%s909 + $0x1a8] sm:$0xff]
  %v964 = vld [vmem:[%s909 + $0x1b0] sm:$0xff]
  %v965 = vld [vmem:[%s909 + $0x1b8] sm:$0xff]
  %v966 = vld [vmem:[%s909 + $0x1c0] sm:$0xff]
  %v967 = vld [vmem:[%s909 + $0x1c8] sm:$0xff]
  %v968 = vld [vmem:[%s909 + $0x1d0] sm:$0xff]
  %v969 = vld [vmem:[%s909 + $0x1d8] sm:$0xff]
  %v970 = vld [vmem:[%s909 + $0x1e0] sm:$0xff]
  %v971 = vld [vmem:[%s909 + $0x1e8] sm:$0xff]
  %v972 = vld [vmem:[%s909 + $0x1f0] sm:$0xff]
  %v973 = vld [vmem:[%s909 + $0x1f8] sm:$0xff]
  %974 = vmatpush.msra.mxu0 %v970
  %975 = vmatpush.msra.mxu0 %v966
  %976 = vmatpush.msra.mxu0 %v962
  %977 = vmatpush.msra.mxu0 %v958
  %978 = vmatpush.msra.mxu0 %v954
  %979 = vmatpush.msra.mxu0 %v950
  %980 = vmatpush.msra.mxu0 %v946
  %981 = vmatpush.msra.mxu0 %v942
  %982 = vmatpush.msra.mxu0 %v938
  %983 = vmatpush.msra.mxu0 %v934
  %984 = vmatpush.msra.mxu0 %v930
  %985 = vmatpush.msra.mxu0 %v926
  %986 = vmatpush.msra.mxu0 %v922
  %987 = vmatpush.msra.mxu0 %v918
  %988 = vmatpush.msra.mxu0 %v914
  %989 = vmatpush.msra.mxu0 %v910
  %990 = vmatmul.f32.gmra.mxu0 %v903
  %v991 = vpop.f32.mrf.mxu0
  %v992 = vadd.f32 0.0, %v991
  %993 = vmatmul.f32.gmra.mxu0 %v904
  %v994 = vpop.f32.mrf.mxu0
  %v995 = vadd.f32 0.0, %v994
  %996 = vmatmul.f32.gmra.mxu0 %v905
  %v997 = vpop.f32.mrf.mxu0
  %998 = vmatmul.f32.gmra.mxu0 %v906
  %v999 = vpop.f32.mrf.mxu0
  %v1000 = vadd.f32 0.0, %v999
  %1001 = vmatmul.f32.gmra.mxu0 %v907
  %v1002 = vpop.f32.mrf.mxu0
  %v1003 = vadd.f32 0.0, %v1002
  %1004 = vmatmul.f32.gmra.mxu0 %v908
  %v1005 = vpop.f32.mrf.mxu0
  %1006 = vdwg.mxu0
  %1007 = vmatpush.msra.mxu0 %v971
  %1008 = vmatpush.msra.mxu0 %v967
  %1009 = vmatpush.msra.mxu0 %v963
  %1010 = vmatpush.msra.mxu0 %v959
  %1011 = vmatpush.msra.mxu0 %v955
  %1012 = vmatpush.msra.mxu0 %v951
  %1013 = vmatpush.msra.mxu0 %v947
  %1014 = vmatpush.msra.mxu0 %v943
  %1015 = vmatpush.msra.mxu0 %v939
  %1016 = vmatpush.msra.mxu0 %v935
  %1017 = vmatpush.msra.mxu0 %v931
  %1018 = vmatpush.msra.mxu0 %v927
  %1019 = vmatpush.msra.mxu0 %v923
  %1020 = vmatpush.msra.mxu0 %v919
  %1021 = vmatpush.msra.mxu0 %v915
  %1022 = vmatpush.msra.mxu0 %v911
  %1023 = vmatmul.f32.gmra.mxu0 %v903
  %v1024 = vpop.f32.mrf.mxu0
  %v1025 = vadd.f32 0.0, %v1024
  %1026 = vmatmul.f32.gmra.mxu0 %v904
  %v1027 = vpop.f32.mrf.mxu0
  %v1028 = vadd.f32 0.0, %v1027
  %1029 = vmatmul.f32.gmra.mxu0 %v905
  %v1030 = vpop.f32.mrf.mxu0
  %1031 = vmatmul.f32.gmra.mxu0 %v906
  %v1032 = vpop.f32.mrf.mxu0
  %v1033 = vadd.f32 0.0, %v1032
  %1034 = vmatmul.f32.gmra.mxu0 %v907
  %v1035 = vpop.f32.mrf.mxu0
  %v1036 = vadd.f32 0.0, %v1035
  %1037 = vmatmul.f32.gmra.mxu0 %v908
  %v1038 = vpop.f32.mrf.mxu0
  %1039 = vdwg.mxu0
  %1040 = vmatpush.msra.mxu0 %v972
  %1041 = vmatpush.msra.mxu0 %v968
  %1042 = vmatpush.msra.mxu0 %v964
  %1043 = vmatpush.msra.mxu0 %v960
  %1044 = vmatpush.msra.mxu0 %v956
  %1045 = vmatpush.msra.mxu0 %v952
  %1046 = vmatpush.msra.mxu0 %v948
  %1047 = vmatpush.msra.mxu0 %v944
  %1048 = vmatpush.msra.mxu0 %v940
  %1049 = vmatpush.msra.mxu0 %v936
  %1050 = vmatpush.msra.mxu0 %v932
  %1051 = vmatpush.msra.mxu0 %v928
  %1052 = vmatpush.msra.mxu0 %v924
  %1053 = vmatpush.msra.mxu0 %v920
  %1054 = vmatpush.msra.mxu0 %v916
  %1055 = vmatpush.msra.mxu0 %v912
  %1056 = vmatmul.f32.gmra.mxu0 %v903
  %v1057 = vpop.f32.mrf.mxu0
  %v1058 = vadd.f32 0.0, %v1057
  %1059 = vmatmul.f32.gmra.mxu0 %v904
  %v1060 = vpop.f32.mrf.mxu0
  %v1061 = vadd.f32 0.0, %v1060
  %1062 = vmatmul.f32.gmra.mxu0 %v905
  %v1063 = vpop.f32.mrf.mxu0
  %1064 = vmatmul.f32.gmra.mxu0 %v906
  %v1065 = vpop.f32.mrf.mxu0
  %v1066 = vadd.f32 0.0, %v1065
  %1067 = vmatmul.f32.gmra.mxu0 %v907
  %v1068 = vpop.f32.mrf.mxu0
  %v1069 = vadd.f32 0.0, %v1068
  %1070 = vmatmul.f32.gmra.mxu0 %v908
  %v1071 = vpop.f32.mrf.mxu0
  %1072 = vdwg.mxu0
  %1073 = vmatpush.msra.mxu0 %v973
  %1074 = vmatpush.msra.mxu0 %v969
  %1075 = vmatpush.msra.mxu0 %v965
  %1076 = vmatpush.msra.mxu0 %v961
  %1077 = vmatpush.msra.mxu0 %v957
  %1078 = vmatpush.msra.mxu0 %v953
  %1079 = vmatpush.msra.mxu0 %v949
  %1080 = vmatpush.msra.mxu0 %v945
  %1081 = vmatpush.msra.mxu0 %v941
  %1082 = vmatpush.msra.mxu0 %v937
  %1083 = vmatpush.msra.mxu0 %v933
  %1084 = vmatpush.msra.mxu0 %v929
  %1085 = vmatpush.msra.mxu0 %v925
  %1086 = vmatpush.msra.mxu0 %v921
  %1087 = vmatpush.msra.mxu0 %v917
  %1088 = vmatpush.msra.mxu0 %v913
  %1089 = vmatmul.f32.gmra.mxu0 %v903
  %v1090 = vpop.f32.mrf.mxu0
  %v1091 = vadd.f32 0.0, %v1090
  %1092 = vmatmul.f32.gmra.mxu0 %v904
  %v1093 = vpop.f32.mrf.mxu0
  %v1094 = vadd.f32 0.0, %v1093
  %1095 = vmatmul.f32.gmra.mxu0 %v905
  %v1096 = vpop.f32.mrf.mxu0
  %1097 = vmatmul.f32.gmra.mxu0 %v906
  %v1098 = vpop.f32.mrf.mxu0
  %v1099 = vadd.f32 0.0, %v1098
  %1100 = vmatmul.f32.gmra.mxu0 %v907
  %v1101 = vpop.f32.mrf.mxu0
  %v1102 = vadd.f32 0.0, %v1101
  %1103 = vmatmul.f32.gmra.mxu0 %v908
  %v1104 = vpop.f32.mrf.mxu0
  %1105 = vdwg.mxu0
  %1106 = vmatpush.msra.mxu0 %v899
  %1107 = vmatpush.msra.mxu0 %v895
  %1108 = vmatpush.msra.mxu0 %v891
  %1109 = vmatpush.msra.mxu0 %v887
  %1110 = vmatpush.msra.mxu0 %v883
  %1111 = vmatpush.msra.mxu0 %v879
  %1112 = vmatpush.msra.mxu0 %v875
  %1113 = vmatpush.msra.mxu0 %v871
  %1114 = vmatpush.msra.mxu0 %v867
  %1115 = vmatpush.msra.mxu0 %v863
  %1116 = vmatpush.msra.mxu0 %v859
  %1117 = vmatpush.msra.mxu0 %v855
  %1118 = vmatpush.msra.mxu0 %v851
  %1119 = vmatpush.msra.mxu0 %v847
  %1120 = vmatpush.msra.mxu0 %v843
  %1121 = vmatpush.msra.mxu0 %v839
  %1122 = vmatmul.f32.gmra.mxu0 %v833
  %v1123 = vpop.f32.mrf.mxu0
  %v1124 = vadd.f32 %v992, %v1123
  %1125 = vmatmul.f32.gmra.mxu0 %v834
  %v1126 = vpop.f32.mrf.mxu0
  %v1127 = vadd.f32 %v995, %v1126
  %1128 = vmatmul.f32.gmra.mxu0 %v835
  %v1129 = vpop.f32.mrf.mxu0
  %1130 = vmatmul.f32.gmra.mxu0 %v836
  %v1131 = vpop.f32.mrf.mxu0
  %v1132 = vadd.f32 %v1000, %v1131
  %1133 = vmatmul.f32.gmra.mxu0 %v837
  %v1134 = vpop.f32.mrf.mxu0
  %v1135 = vadd.f32 %v1003, %v1134
  %1136 = vmatmul.f32.gmra.mxu0 %v838
  %v1137 = vpop.f32.mrf.mxu0
  %1138 = vdwg.mxu0
  %1139 = vmatpush.msra.mxu0 %v900
  %1140 = vmatpush.msra.mxu0 %v896
  %1141 = vmatpush.msra.mxu0 %v892
  %1142 = vmatpush.msra.mxu0 %v888
  %1143 = vmatpush.msra.mxu0 %v884
  %1144 = vmatpush.msra.mxu0 %v880
  %1145 = vmatpush.msra.mxu0 %v876
  %1146 = vmatpush.msra.mxu0 %v872
  %1147 = vmatpush.msra.mxu0 %v868
  %1148 = vmatpush.msra.mxu0 %v864
  %1149 = vmatpush.msra.mxu0 %v860
  %1150 = vmatpush.msra.mxu0 %v856
  %1151 = vmatpush.msra.mxu0 %v852
  %1152 = vmatpush.msra.mxu0 %v848
  %1153 = vmatpush.msra.mxu0 %v844
  %1154 = vmatpush.msra.mxu0 %v840
  %1155 = vmatmul.f32.gmra.mxu0 %v833
  %v1156 = vpop.f32.mrf.mxu0
  %v1157 = vadd.f32 %v1025, %v1156
  %1158 = vmatmul.f32.gmra.mxu0 %v834
  %v1159 = vpop.f32.mrf.mxu0
  %v1160 = vadd.f32 %v1028, %v1159
  %1161 = vmatmul.f32.gmra.mxu0 %v835
  %v1162 = vpop.f32.mrf.mxu0
  %1163 = vmatmul.f32.gmra.mxu0 %v836
  %v1164 = vpop.f32.mrf.mxu0
  %v1165 = vadd.f32 %v1033, %v1164
  %1166 = vmatmul.f32.gmra.mxu0 %v837
  %v1167 = vpop.f32.mrf.mxu0
  %v1168 = vadd.f32 %v1036, %v1167
  %1169 = vmatmul.f32.gmra.mxu0 %v838
  %v1170 = vpop.f32.mrf.mxu0
  %1171 = vdwg.mxu0
  %1172 = vmatpush.msra.mxu0 %v901
  %1173 = vmatpush.msra.mxu0 %v897
  %1174 = vmatpush.msra.mxu0 %v893
  %1175 = vmatpush.msra.mxu0 %v889
  %1176 = vmatpush.msra.mxu0 %v885
  %1177 = vmatpush.msra.mxu0 %v881
  %1178 = vmatpush.msra.mxu0 %v877
  %1179 = vmatpush.msra.mxu0 %v873
  %1180 = vmatpush.msra.mxu0 %v869
  %1181 = vmatpush.msra.mxu0 %v865
  %1182 = vmatpush.msra.mxu0 %v861
  %1183 = vmatpush.msra.mxu0 %v857
  %1184 = vmatpush.msra.mxu0 %v853
  %1185 = vmatpush.msra.mxu0 %v849
  %1186 = vmatpush.msra.mxu0 %v845
  %1187 = vmatpush.msra.mxu0 %v841
  %1188 = vmatmul.f32.gmra.mxu0 %v833
  %v1189 = vpop.f32.mrf.mxu0
  %v1190 = vadd.f32 %v1058, %v1189
  %1191 = vmatmul.f32.gmra.mxu0 %v834
  %v1192 = vpop.f32.mrf.mxu0
  %v1193 = vadd.f32 %v1061, %v1192
  %1194 = vmatmul.f32.gmra.mxu0 %v835
  %v1195 = vpop.f32.mrf.mxu0
  %1196 = vmatmul.f32.gmra.mxu0 %v836
  %v1197 = vpop.f32.mrf.mxu0
  %v1198 = vadd.f32 %v1066, %v1197
  %1199 = vmatmul.f32.gmra.mxu0 %v837
  %v1200 = vpop.f32.mrf.mxu0
  %v1201 = vadd.f32 %v1069, %v1200
  %1202 = vmatmul.f32.gmra.mxu0 %v838
  %v1203 = vpop.f32.mrf.mxu0
  %1204 = vdwg.mxu0
  %1205 = vmatpush.msra.mxu0 %v902
  %1206 = vmatpush.msra.mxu0 %v898
  %1207 = vmatpush.msra.mxu0 %v894
  %1208 = vmatpush.msra.mxu0 %v890
  %1209 = vmatpush.msra.mxu0 %v886
  %1210 = vmatpush.msra.mxu0 %v882
  %1211 = vmatpush.msra.mxu0 %v878
  %1212 = vmatpush.msra.mxu0 %v874
  %1213 = vmatpush.msra.mxu0 %v870
  %1214 = vmatpush.msra.mxu0 %v866
  %1215 = vmatpush.msra.mxu0 %v862
  %1216 = vmatpush.msra.mxu0 %v858
  %1217 = vmatpush.msra.mxu0 %v854
  %1218 = vmatpush.msra.mxu0 %v850
  %1219 = vmatpush.msra.mxu0 %v846
  %1220 = vmatpush.msra.mxu0 %v842
  %1221 = vmatmul.f32.gmra.mxu0 %v833
  %v1222 = vpop.f32.mrf.mxu0
  %v1223 = vadd.f32 %v1091, %v1222
  %1224 = vmatmul.f32.gmra.mxu0 %v834
  %v1225 = vpop.f32.mrf.mxu0
  %v1226 = vadd.f32 %v1094, %v1225
  %1227 = vmatmul.f32.gmra.mxu0 %v835
  %v1228 = vpop.f32.mrf.mxu0
  %1229 = vmatmul.f32.gmra.mxu0 %v836
  %v1230 = vpop.f32.mrf.mxu0
  %v1231 = vadd.f32 %v1099, %v1230
  %1232 = vmatmul.f32.gmra.mxu0 %v837
  %v1233 = vpop.f32.mrf.mxu0
  %v1234 = vadd.f32 %v1102, %v1233
  %1235 = vmatmul.f32.gmra.mxu0 %v838
  %v1236 = vpop.f32.mrf.mxu0
  %1237 = vdwg.mxu0
  %v1238 = vld [vmem:[#allocation2 + $0x2] sm:$0xff]
  %v1239 = vld [vmem:[#allocation2 + $0xa] sm:$0xff]
  %v1240 = vld [vmem:[#allocation2 + $0x12] sm:$0xff]
  %v1241 = vld [vmem:[#allocation2 + $0x1a] sm:$0xff]
  %v1242 = vld [vmem:[#allocation2 + $0x22] sm:$0xff]
  %v1243 = vld [vmem:[#allocation2 + $0x2a] sm:$0x3f]
  %s1244 = scalar_lea.vmem %s4, 1024
  %v1245 = vld [vmem:[%s1244] sm:$0xff]
  %v1246 = vld [vmem:[%s1244 + $0x8] sm:$0xff]
  %v1247 = vld [vmem:[%s1244 + $0x10] sm:$0xff]
  %v1248 = vld [vmem:[%s1244 + $0x18] sm:$0xff]
  %v1249 = vld [vmem:[%s1244 + $0x20] sm:$0xff]
  %v1250 = vld [vmem:[%s1244 + $0x28] sm:$0xff]
  %v1251 = vld [vmem:[%s1244 + $0x30] sm:$0xff]
  %v1252 = vld [vmem:[%s1244 + $0x38] sm:$0xff]
  %v1253 = vld [vmem:[%s1244 + $0x40] sm:$0xff]
  %v1254 = vld [vmem:[%s1244 + $0x48] sm:$0xff]
  %v1255 = vld [vmem:[%s1244 + $0x50] sm:$0xff]
  %v1256 = vld [vmem:[%s1244 + $0x58] sm:$0xff]
  %v1257 = vld [vmem:[%s1244 + $0x60] sm:$0xff]
  %v1258 = vld [vmem:[%s1244 + $0x68] sm:$0xff]
  %v1259 = vld [vmem:[%s1244 + $0x70] sm:$0xff]
  %v1260 = vld [vmem:[%s1244 + $0x78] sm:$0xff]
  %v1261 = vld [vmem:[%s1244 + $0x80] sm:$0xff]
  %v1262 = vld [vmem:[%s1244 + $0x88] sm:$0xff]
  %v1263 = vld [vmem:[%s1244 + $0x90] sm:$0xff]
  %v1264 = vld [vmem:[%s1244 + $0x98] sm:$0xff]
  %v1265 = vld [vmem:[%s1244 + $0xa0] sm:$0xff]
  %v1266 = vld [vmem:[%s1244 + $0xa8] sm:$0xff]
  %v1267 = vld [vmem:[%s1244 + $0xb0] sm:$0xff]
  %v1268 = vld [vmem:[%s1244 + $0xb8] sm:$0xff]
  %v1269 = vld [vmem:[%s1244 + $0xc0] sm:$0xff]
  %v1270 = vld [vmem:[%s1244 + $0xc8] sm:$0xff]
  %v1271 = vld [vmem:[%s1244 + $0xd0] sm:$0xff]
  %v1272 = vld [vmem:[%s1244 + $0xd8] sm:$0xff]
  %v1273 = vld [vmem:[%s1244 + $0xe0] sm:$0xff]
  %v1274 = vld [vmem:[%s1244 + $0xe8] sm:$0xff]
  %v1275 = vld [vmem:[%s1244 + $0xf0] sm:$0xff]
  %v1276 = vld [vmem:[%s1244 + $0xf8] sm:$0xff]
  %v1277 = vld [vmem:[%s1244 + $0x100] sm:$0xff]
  %v1278 = vld [vmem:[%s1244 + $0x108] sm:$0xff]
  %v1279 = vld [vmem:[%s1244 + $0x110] sm:$0xff]
  %v1280 = vld [vmem:[%s1244 + $0x118] sm:$0xff]
  %v1281 = vld [vmem:[%s1244 + $0x120] sm:$0xff]
  %v1282 = vld [vmem:[%s1244 + $0x128] sm:$0xff]
  %v1283 = vld [vmem:[%s1244 + $0x130] sm:$0xff]
  %v1284 = vld [vmem:[%s1244 + $0x138] sm:$0xff]
  %v1285 = vld [vmem:[%s1244 + $0x140] sm:$0xff]
  %v1286 = vld [vmem:[%s1244 + $0x148] sm:$0xff]
  %v1287 = vld [vmem:[%s1244 + $0x150] sm:$0xff]
  %v1288 = vld [vmem:[%s1244 + $0x158] sm:$0xff]
  %v1289 = vld [vmem:[%s1244 + $0x160] sm:$0xff]
  %v1290 = vld [vmem:[%s1244 + $0x168] sm:$0xff]
  %v1291 = vld [vmem:[%s1244 + $0x170] sm:$0xff]
  %v1292 = vld [vmem:[%s1244 + $0x178] sm:$0xff]
  %v1293 = vld [vmem:[%s1244 + $0x180] sm:$0xff]
  %v1294 = vld [vmem:[%s1244 + $0x188] sm:$0xff]
  %v1295 = vld [vmem:[%s1244 + $0x190] sm:$0xff]
  %v1296 = vld [vmem:[%s1244 + $0x198] sm:$0xff]
  %v1297 = vld [vmem:[%s1244 + $0x1a0] sm:$0xff]
  %v1298 = vld [vmem:[%s1244 + $0x1a8] sm:$0xff]
  %v1299 = vld [vmem:[%s1244 + $0x1b0] sm:$0xff]
  %v1300 = vld [vmem:[%s1244 + $0x1b8] sm:$0xff]
  %v1301 = vld [vmem:[%s1244 + $0x1c0] sm:$0xff]
  %v1302 = vld [vmem:[%s1244 + $0x1c8] sm:$0xff]
  %v1303 = vld [vmem:[%s1244 + $0x1d0] sm:$0xff]
  %v1304 = vld [vmem:[%s1244 + $0x1d8] sm:$0xff]
  %v1305 = vld [vmem:[%s1244 + $0x1e0] sm:$0xff]
  %v1306 = vld [vmem:[%s1244 + $0x1e8] sm:$0xff]
  %v1307 = vld [vmem:[%s1244 + $0x1f0] sm:$0xff]
  %v1308 = vld [vmem:[%s1244 + $0x1f8] sm:$0xff]
  %1309 = vmatpush.msra.mxu0 %v1305
  %1310 = vmatpush.msra.mxu0 %v1301
  %1311 = vmatpush.msra.mxu0 %v1297
  %1312 = vmatpush.msra.mxu0 %v1293
  %1313 = vmatpush.msra.mxu0 %v1289
  %1314 = vmatpush.msra.mxu0 %v1285
  %1315 = vmatpush.msra.mxu0 %v1281
  %1316 = vmatpush.msra.mxu0 %v1277
  %1317 = vmatpush.msra.mxu0 %v1273
  %1318 = vmatpush.msra.mxu0 %v1269
  %1319 = vmatpush.msra.mxu0 %v1265
  %1320 = vmatpush.msra.mxu0 %v1261
  %1321 = vmatpush.msra.mxu0 %v1257
  %1322 = vmatpush.msra.mxu0 %v1253
  %1323 = vmatpush.msra.mxu0 %v1249
  %1324 = vmatpush.msra.mxu0 %v1245
  %1325 = vmatmul.f32.gmra.mxu0 %v1238
  %v1326 = vpop.f32.mrf.mxu0
  %v1327 = vadd.f32 0.0, %v1326
  %1328 = vmatmul.f32.gmra.mxu0 %v1239
  %v1329 = vpop.f32.mrf.mxu0
  %v1330 = vadd.f32 0.0, %v1329
  %1331 = vmatmul.f32.gmra.mxu0 %v1240
  %v1332 = vpop.f32.mrf.mxu0
  %1333 = vmatmul.f32.gmra.mxu0 %v1241
  %v1334 = vpop.f32.mrf.mxu0
  %v1335 = vadd.f32 0.0, %v1334
  %1336 = vmatmul.f32.gmra.mxu0 %v1242
  %v1337 = vpop.f32.mrf.mxu0
  %v1338 = vadd.f32 0.0, %v1337
  %1339 = vmatmul.f32.gmra.mxu0 %v1243
  %v1340 = vpop.f32.mrf.mxu0
  %1341 = vdwg.mxu0
  %1342 = vmatpush.msra.mxu0 %v1306
  %1343 = vmatpush.msra.mxu0 %v1302
  %1344 = vmatpush.msra.mxu0 %v1298
  %1345 = vmatpush.msra.mxu0 %v1294
  %1346 = vmatpush.msra.mxu0 %v1290
  %1347 = vmatpush.msra.mxu0 %v1286
  %1348 = vmatpush.msra.mxu0 %v1282
  %1349 = vmatpush.msra.mxu0 %v1278
  %1350 = vmatpush.msra.mxu0 %v1274
  %1351 = vmatpush.msra.mxu0 %v1270
  %1352 = vmatpush.msra.mxu0 %v1266
  %1353 = vmatpush.msra.mxu0 %v1262
  %1354 = vmatpush.msra.mxu0 %v1258
  %1355 = vmatpush.msra.mxu0 %v1254
  %1356 = vmatpush.msra.mxu0 %v1250
  %1357 = vmatpush.msra.mxu0 %v1246
  %1358 = vmatmul.f32.gmra.mxu0 %v1238
  %v1359 = vpop.f32.mrf.mxu0
  %v1360 = vadd.f32 0.0, %v1359
  %1361 = vmatmul.f32.gmra.mxu0 %v1239
  %v1362 = vpop.f32.mrf.mxu0
  %v1363 = vadd.f32 0.0, %v1362
  %1364 = vmatmul.f32.gmra.mxu0 %v1240
  %v1365 = vpop.f32.mrf.mxu0
  %1366 = vmatmul.f32.gmra.mxu0 %v1241
  %v1367 = vpop.f32.mrf.mxu0
  %v1368 = vadd.f32 0.0, %v1367
  %1369 = vmatmul.f32.gmra.mxu0 %v1242
  %v1370 = vpop.f32.mrf.mxu0
  %v1371 = vadd.f32 0.0, %v1370
  %1372 = vmatmul.f32.gmra.mxu0 %v1243
  %v1373 = vpop.f32.mrf.mxu0
  %1374 = vdwg.mxu0
  %1375 = vmatpush.msra.mxu0 %v1307
  %1376 = vmatpush.msra.mxu0 %v1303
  %1377 = vmatpush.msra.mxu0 %v1299
  %1378 = vmatpush.msra.mxu0 %v1295
  %1379 = vmatpush.msra.mxu0 %v1291
  %1380 = vmatpush.msra.mxu0 %v1287
  %1381 = vmatpush.msra.mxu0 %v1283
  %1382 = vmatpush.msra.mxu0 %v1279
  %1383 = vmatpush.msra.mxu0 %v1275
  %1384 = vmatpush.msra.mxu0 %v1271
  %1385 = vmatpush.msra.mxu0 %v1267
  %1386 = vmatpush.msra.mxu0 %v1263
  %1387 = vmatpush.msra.mxu0 %v1259
  %1388 = vmatpush.msra.mxu0 %v1255
  %1389 = vmatpush.msra.mxu0 %v1251
  %1390 = vmatpush.msra.mxu0 %v1247
  %1391 = vmatmul.f32.gmra.mxu0 %v1238
  %v1392 = vpop.f32.mrf.mxu0
  %v1393 = vadd.f32 0.0, %v1392
  %1394 = vmatmul.f32.gmra.mxu0 %v1239
  %v1395 = vpop.f32.mrf.mxu0
  %v1396 = vadd.f32 0.0, %v1395
  %1397 = vmatmul.f32.gmra.mxu0 %v1240
  %v1398 = vpop.f32.mrf.mxu0
  %1399 = vmatmul.f32.gmra.mxu0 %v1241
  %v1400 = vpop.f32.mrf.mxu0
  %v1401 = vadd.f32 0.0, %v1400
  %1402 = vmatmul.f32.gmra.mxu0 %v1242
  %v1403 = vpop.f32.mrf.mxu0
  %v1404 = vadd.f32 0.0, %v1403
  %1405 = vmatmul.f32.gmra.mxu0 %v1243
  %v1406 = vpop.f32.mrf.mxu0
  %1407 = vdwg.mxu0
  %1408 = vmatpush.msra.mxu0 %v1308
  %1409 = vmatpush.msra.mxu0 %v1304
  %1410 = vmatpush.msra.mxu0 %v1300
  %1411 = vmatpush.msra.mxu0 %v1296
  %1412 = vmatpush.msra.mxu0 %v1292
  %1413 = vmatpush.msra.mxu0 %v1288
  %1414 = vmatpush.msra.mxu0 %v1284
  %1415 = vmatpush.msra.mxu0 %v1280
  %1416 = vmatpush.msra.mxu0 %v1276
  %1417 = vmatpush.msra.mxu0 %v1272
  %1418 = vmatpush.msra.mxu0 %v1268
  %1419 = vmatpush.msra.mxu0 %v1264
  %1420 = vmatpush.msra.mxu0 %v1260
  %1421 = vmatpush.msra.mxu0 %v1256
  %1422 = vmatpush.msra.mxu0 %v1252
  %1423 = vmatpush.msra.mxu0 %v1248
  %1424 = vmatmul.f32.gmra.mxu0 %v1238
  %v1425 = vpop.f32.mrf.mxu0
  %v1426 = vadd.f32 0.0, %v1425
  %1427 = vmatmul.f32.gmra.mxu0 %v1239
  %v1428 = vpop.f32.mrf.mxu0
  %v1429 = vadd.f32 0.0, %v1428
  %1430 = vmatmul.f32.gmra.mxu0 %v1240
  %v1431 = vpop.f32.mrf.mxu0
  %1432 = vmatmul.f32.gmra.mxu0 %v1241
  %v1433 = vpop.f32.mrf.mxu0
  %v1434 = vadd.f32 0.0, %v1433
  %1435 = vmatmul.f32.gmra.mxu0 %v1242
  %v1436 = vpop.f32.mrf.mxu0
  %v1437 = vadd.f32 0.0, %v1436
  %1438 = vmatmul.f32.gmra.mxu0 %v1243
  %v1439 = vpop.f32.mrf.mxu0
  %1440 = vdwg.mxu0
  %v1441 = vadd.f32 %v1124, %v1327
  %v1442 = vadd.f32 %v1157, %v1360
  %v1443 = vadd.f32 %v1190, %v1393
  %v1444 = vadd.f32 %v1223, %v1426
  %v1445 = vadd.f32 %v1127, %v1330
  %v1446 = vadd.f32 %v1160, %v1363
  %v1447 = vadd.f32 %v1193, %v1396
  %v1448 = vadd.f32 %v1226, %v1429
  %v1449 = vadd.f32 %v1132, %v1335
  %v1450 = vadd.f32 %v1165, %v1368
  %v1451 = vadd.f32 %v1198, %v1401
  %v1452 = vadd.f32 %v1231, %v1434
  %v1453 = vadd.f32 %v1135, %v1338
  %v1454 = vadd.f32 %v1168, %v1371
  %v1455 = vadd.f32 %v1201, %v1404
  %v1456 = vadd.f32 %v1234, %v1437
  %v1457 = vld [vmem:[%s5] sm:$0xf]
  %v1459 = vperm.slane %v1457, 0
  %v1460 = vperm.slane %v1457, 1
  %v1461 = vperm.slane %v1457, 2
  %v1462 = vperm.slane %v1457, 3
  %v1467 = vadd.f32 %v1441, %v1459
  %v1468 = vadd.f32 %v1442, %v1460
  %v1469 = vadd.f32 %v1443, %v1461
  %v1470 = vadd.f32 %v1444, %v1462
  %v1471 = vadd.f32 %v1445, %v1459
  %v1472 = vadd.f32 %v1446, %v1460
  %v1473 = vadd.f32 %v1447, %v1461
  %v1474 = vadd.f32 %v1448, %v1462
  %v1475 = vadd.f32 %v1449, %v1459
  %v1476 = vadd.f32 %v1450, %v1460
  %v1477 = vadd.f32 %v1451, %v1461
  %v1478 = vadd.f32 %v1452, %v1462
  %v1479 = vadd.f32 %v1453, %v1459
  %v1480 = vadd.f32 %v1454, %v1460
  %v1481 = vadd.f32 %v1455, %v1461
  %v1482 = vadd.f32 %v1456, %v1462
  %vm1483 = vcmp.ge.f32.partialorder %v1467, 0.0
  %vm1484 = vcmp.ge.f32.partialorder %v1468, 0.0
  %vm1485 = vcmp.ge.f32.partialorder %v1469, 0.0
  %vm1486 = vcmp.ge.f32.partialorder %v1470, 0.0
  %vm1487 = vcmp.ge.f32.partialorder %v1471, 0.0
  %vm1488 = vcmp.ge.f32.partialorder %v1472, 0.0
  %vm1489 = vcmp.ge.f32.partialorder %v1473, 0.0
  %vm1490 = vcmp.ge.f32.partialorder %v1474, 0.0
  %vm1491 = vcmp.ge.f32.partialorder %v1475, 0.0
  %vm1492 = vcmp.ge.f32.partialorder %v1476, 0.0
  %vm1493 = vcmp.ge.f32.partialorder %v1477, 0.0
  %vm1494 = vcmp.ge.f32.partialorder %v1478, 0.0
  %vm1495 = vcmp.ge.f32.partialorder %v1479, 0.0
  %vm1496 = vcmp.ge.f32.partialorder %v1480, 0.0
  %vm1497 = vcmp.ge.f32.partialorder %v1481, 0.0
  %vm1498 = vcmp.ge.f32.partialorder %v1482, 0.0
  %v1499 = vld [vmem:[%s6] sm:$0xf]
  %v1501 = vperm.slane %v1499, 0
  %v1502 = vperm.slane %v1499, 1
  %v1503 = vperm.slane %v1499, 2
  %v1504 = vperm.slane %v1499, 3
  %v1509 = vmul.f32 %v1467, %v1501
  %v1510 = vmul.f32 %v1468, %v1502
  %v1511 = vmul.f32 %v1469, %v1503
  %v1512 = vmul.f32 %v1470, %v1504
  %v1513 = vmul.f32 %v1471, %v1501
  %v1514 = vmul.f32 %v1472, %v1502
  %v1515 = vmul.f32 %v1473, %v1503
  %v1516 = vmul.f32 %v1474, %v1504
  %v1517 = vmul.f32 %v1475, %v1501
  %v1518 = vmul.f32 %v1476, %v1502
  %v1519 = vmul.f32 %v1477, %v1503
  %v1520 = vmul.f32 %v1478, %v1504
  %v1521 = vmul.f32 %v1479, %v1501
  %v1522 = vmul.f32 %v1480, %v1502
  %v1523 = vmul.f32 %v1481, %v1503
  %v1524 = vmul.f32 %v1482, %v1504
  %v1525 = vsel %vm1483, %v1467, %v1509
  %v1526 = vsel %vm1484, %v1468, %v1510
  %v1527 = vsel %vm1485, %v1469, %v1511
  %v1528 = vsel %vm1486, %v1470, %v1512
  %v1529 = vsel %vm1487, %v1471, %v1513
  %v1530 = vsel %vm1488, %v1472, %v1514
  %v1531 = vsel %vm1489, %v1473, %v1515
  %v1532 = vsel %vm1490, %v1474, %v1516
  %v1533 = vsel %vm1491, %v1475, %v1517
  %v1534 = vsel %vm1492, %v1476, %v1518
  %v1535 = vsel %vm1493, %v1477, %v1519
  %v1536 = vsel %vm1494, %v1478, %v1520
  %v1537 = vsel %vm1495, %v1479, %v1521
  %v1538 = vsel %vm1496, %v1480, %v1522
  %v1539 = vsel %vm1497, %v1481, %v1523
  %v1540 = vsel %vm1498, %v1482, %v1524
  %v1549 = vrot.slane %v1526, 6
  %v1550 = vrot.slane %v1527, 4
  %v1551 = vrot.slane %v1528, 2
  %v1552 = vrot.slane %v1530, 6
  %v1553 = vrot.slane %v1531, 4
  %v1554 = vrot.slane %v1532, 2
  %vm1555 = vcmask 1041408
  %v1556 = vsel %vm1555, %v1525, %v1549
  %vm1557 = vcmask 1045508
  %v1558 = vsel %vm1557, %v1550, %v1551
  %vm1559 = vcmask 1043456
  %v1560 = vsel %vm1559, %v1556, %v1558
  %vm1561 = vcmask 1043458
  %v1562 = vsel %vm1561, %v1525, %v1549
  %vm1563 = vcmask 1045504
  %v1564 = vsel %vm1563, %v1551, %v1550
  %vm1565 = vcmask 1045506
  %v1566 = vsel %vm1565, %v1562, %v1564
  %v1567 = vrot.slane %v1566, 2
  %v1568 = vsel %vm1557, %v1525, %v1549
  %v1569 = vsel %vm1555, %v1550, %v1551
  %v1570 = vsel %vm1559, %v1569, %v1568
  %v1571 = vrot.slane %v1570, 4
  %v1572 = vsel %vm1563, %v1549, %v1525
  %v1573 = vsel %vm1561, %v1550, %v1551
  %v1574 = vsel %vm1565, %v1573, %v1572
  %v1575 = vrot.slane %v1574, 6
  %v1576 = vsel %vm1555, %v1529, %v1552
  %v1577 = vsel %vm1557, %v1553, %v1554
  %v1578 = vsel %vm1559, %v1576, %v1577
  %v1579 = vsel %vm1561, %v1529, %v1552
  %v1580 = vsel %vm1563, %v1554, %v1553
  %v1581 = vsel %vm1565, %v1579, %v1580
  %v1582 = vrot.slane %v1581, 2
  %v1583 = vsel %vm1557, %v1529, %v1552
  %v1584 = vsel %vm1555, %v1553, %v1554
  %v1585 = vsel %vm1559, %v1584, %v1583
  %v1586 = vrot.slane %v1585, 4
  %v1587 = vsel %vm1563, %v1552, %v1529
  %v1588 = vsel %vm1561, %v1553, %v1554
  %v1589 = vsel %vm1565, %v1588, %v1587
  %v1590 = vrot.slane %v1589, 6
  %v1600 = vunpack.c.l.s4 1935823168
  %v1601 = vunpack.c.0.s8 %v1600
  %v1602 = vperm.slane %v1560, %v1601
  %v1604 = vunpack.c.l.s4 1935823168
  %v1605 = vunpack.c.0.s8 %v1604
  %v1606 = vperm.slane %v1567, %v1605
  %v1608 = vunpack.c.l.s4 1935823168
  %v1609 = vunpack.c.0.s8 %v1608
  %v1610 = vperm.slane %v1571, %v1609
  %v1612 = vunpack.c.l.s4 1935823168
  %v1613 = vunpack.c.0.s8 %v1612
  %v1614 = vperm.slane %v1575, %v1613
  %v1616 = vunpack.c.l.s4 1935823168
  %v1617 = vunpack.c.0.s8 %v1616
  %v1618 = vperm.slane %v1578, %v1617
  %v1620 = vunpack.c.l.s4 1935823168
  %v1621 = vunpack.c.0.s8 %v1620
  %v1622 = vperm.slane %v1582, %v1621
  %v1624 = vunpack.c.l.s4 1935823168
  %v1625 = vunpack.c.0.s8 %v1624
  %v1626 = vperm.slane %v1586, %v1625
  %v1628 = vunpack.c.l.s4 1935823168
  %v1629 = vunpack.c.0.s8 %v1628
  %v1630 = vperm.slane %v1590, %v1629
  %1639 = vst [vmem:[#allocation1] ss:$2 sm:$0xff] %v1602
  %s1640 = scalar_lea.vmem [#allocation1], 1
  %1641 = vst [vmem:[%s1640] ss:$2 sm:$0xff] %v1606
  %s1642 = scalar_lea.vmem [#allocation1], 16
  %1643 = vst [vmem:[%s1642] ss:$2 sm:$0xff] %v1610
  %s1644 = scalar_lea.vmem [#allocation1], 17
  %1645 = vst [vmem:[%s1644] ss:$2 sm:$0xff] %v1614
  %s1646 = scalar_lea.vmem [#allocation1], 32
  %1647 = vst [vmem:[%s1646] ss:$2 sm:$0xff] %v1618
  %s1648 = scalar_lea.vmem [#allocation1], 33
  %1649 = vst [vmem:[%s1648] ss:$2 sm:$0xff] %v1622
  %s1650 = scalar_lea.vmem [#allocation1], 48
  %1651 = vst [vmem:[%s1650] ss:$2 sm:$0xff] %v1626
  %s1652 = scalar_lea.vmem [#allocation1], 49
  %1653 = vst [vmem:[%s1652] ss:$2 sm:$0xff] %v1630
  %v1654 = vld.sshfl [vmem:[#allocation1] sm:$0xff pattern:$0x75316420]
  %v1655 = vld.sshfl [vmem:[#allocation1 + $0x8] sm:$0xff pattern:$0x75316420]
  %v1656 = vld.sshfl [vmem:[#allocation1 + $0x10] sm:$0xff pattern:$0x75316420]
  %v1657 = vld.sshfl [vmem:[#allocation1 + $0x18] sm:$0xff pattern:$0x75316420]
  %v1658 = vld.sshfl [vmem:[#allocation1 + $0x20] sm:$0xff pattern:$0x75316420]
  %v1659 = vld.sshfl [vmem:[#allocation1 + $0x28] sm:$0xff pattern:$0x75316420]
  %v1660 = vld.sshfl [vmem:[#allocation1 + $0x30] sm:$0xff pattern:$0x75316420]
  %v1661 = vld.sshfl [vmem:[#allocation1 + $0x38] sm:$0xff pattern:$0x75316420]
  %vm1662 = vcmask 1040384
  %v1663 = vrot.slane %v1654, 7
  %v1664 = vrot.slane %v1655, 7
  %v1665 = vrot.slane %v1656, 7
  %v1666 = vsel %vm1662, %v1663, %v1665
  %v1667 = vrot.slane %v1657, 7
  %v1668 = vsel %vm1662, %v1664, %v1667
  %v1669 = vrot.slane %v1658, 7
  %v1670 = vsel %vm1662, %v1665, %v1669
  %v1671 = vrot.slane %v1659, 7
  %v1672 = vsel %vm1662, %v1667, %v1671
  %v1673 = vrot.slane %v1660, 7
  %v1674 = vsel %vm1662, %v1669, %v1673
  %v1675 = vrot.slane %v1661, 7
  %v1676 = vsel %vm1662, %v1671, %v1675
  %1687 = vst [vmem:[#allocation4] sm:$0xfe] %v1663
  %1688 = vst [vmem:[#allocation4 + $0x8] sm:$0xfe] %v1664
  %1689 = vst [vmem:[#allocation4 + $0x10] sm:$0xff] %v1666
  %1690 = vst [vmem:[#allocation4 + $0x18] sm:$0xff] %v1668
  %1691 = vst [vmem:[#allocation4 + $0x20] sm:$0xff] %v1670
  %1692 = vst [vmem:[#allocation4 + $0x28] sm:$0xff] %v1672
  %1693 = vst [vmem:[#allocation4 + $0x30] sm:$0xff] %v1674
  %1694 = vst [vmem:[#allocation4 + $0x38] sm:$0xff] %v1676
  %1695 = vst [vmem:[#allocation4 + $0x40] sm:$0x1] %v1673
  %1696 = vst [vmem:[#allocation4 + $0x48] sm:$0x1] %v1675
  %v1705 = vrot.slane %v1534, 6
  %v1706 = vrot.slane %v1535, 4
  %v1707 = vrot.slane %v1536, 2
  %v1708 = vrot.slane %v1538, 6
  %v1709 = vrot.slane %v1539, 4
  %v1710 = vrot.slane %v1540, 2
  %v1711 = vsel %vm1555, %v1533, %v1705
  %v1712 = vsel %vm1557, %v1706, %v1707
  %v1713 = vsel %vm1559, %v1711, %v1712
  %v1714 = vsel %vm1561, %v1533, %v1705
  %v1715 = vsel %vm1563, %v1707, %v1706
  %v1716 = vsel %vm1565, %v1714, %v1715
  %v1717 = vrot.slane %v1716, 2
  %v1718 = vsel %vm1557, %v1533, %v1705
  %v1719 = vsel %vm1555, %v1706, %v1707
  %v1720 = vsel %vm1559, %v1719, %v1718
  %v1721 = vrot.slane %v1720, 4
  %v1722 = vsel %vm1563, %v1705, %v1533
  %v1723 = vsel %vm1561, %v1706, %v1707
  %v1724 = vsel %vm1565, %v1723, %v1722
  %v1725 = vrot.slane %v1724, 6
  %v1726 = vsel %vm1555, %v1537, %v1708
  %v1727 = vsel %vm1557, %v1709, %v1710
  %v1728 = vsel %vm1559, %v1726, %v1727
  %v1729 = vsel %vm1561, %v1537, %v1708
  %v1730 = vsel %vm1563, %v1710, %v1709
  %v1731 = vsel %vm1565, %v1729, %v1730
  %v1732 = vrot.slane %v1731, 2
  %v1733 = vsel %vm1557, %v1537, %v1708
  %v1734 = vsel %vm1555, %v1709, %v1710
  %v1735 = vsel %vm1559, %v1734, %v1733
  %v1736 = vrot.slane %v1735, 4
  %v1737 = vsel %vm1563, %v1708, %v1537
  %v1738 = vsel %vm1561, %v1709, %v1710
  %v1739 = vsel %vm1565, %v1738, %v1737
  %v1740 = vrot.slane %v1739, 6
  %v1750 = vunpack.c.l.s4 1935823168
  %v1751 = vunpack.c.0.s8 %v1750
  %v1752 = vperm.slane %v1713, %v1751
  %v1754 = vunpack.c.l.s4 1935823168
  %v1755 = vunpack.c.0.s8 %v1754
  %v1756 = vperm.slane %v1717, %v1755
  %v1758 = vunpack.c.l.s4 1935823168
  %v1759 = vunpack.c.0.s8 %v1758
  %v1760 = vperm.slane %v1721, %v1759
  %v1762 = vunpack.c.l.s4 1935823168
  %v1763 = vunpack.c.0.s8 %v1762
  %v1764 = vperm.slane %v1725, %v1763
  %v1766 = vunpack.c.l.s4 1935823168
  %v1767 = vunpack.c.0.s8 %v1766
  %v1768 = vperm.slane %v1728, %v1767
  %v1770 = vunpack.c.l.s4 1935823168
  %v1771 = vunpack.c.0.s8 %v1770
  %v1772 = vperm.slane %v1732, %v1771
  %v1774 = vunpack.c.l.s4 1935823168
  %v1775 = vunpack.c.0.s8 %v1774
  %v1776 = vperm.slane %v1736, %v1775
  %v1778 = vunpack.c.l.s4 1935823168
  %v1779 = vunpack.c.0.s8 %v1778
  %v1780 = vperm.slane %v1740, %v1779
  %1789 = vst [vmem:[#allocation1] ss:$2 sm:$0xff] %v1752
  %s1790 = scalar_lea.vmem [#allocation1], 1
  %1791 = vst [vmem:[%s1790] ss:$2 sm:$0xff] %v1756
  %s1792 = scalar_lea.vmem [#allocation1], 16
  %1793 = vst [vmem:[%s1792] ss:$2 sm:$0xff] %v1760
  %s1794 = scalar_lea.vmem [#allocation1], 17
  %1795 = vst [vmem:[%s1794] ss:$2 sm:$0xff] %v1764
  %s1796 = scalar_lea.vmem [#allocation1], 32
  %1797 = vst [vmem:[%s1796] ss:$2 sm:$0xff] %v1768
  %s1798 = scalar_lea.vmem [#allocation1], 33
  %1799 = vst [vmem:[%s1798] ss:$2 sm:$0xff] %v1772
  %s1800 = scalar_lea.vmem [#allocation1], 48
  %1801 = vst [vmem:[%s1800] ss:$2 sm:$0xff] %v1776
  %s1802 = scalar_lea.vmem [#allocation1], 49
  %1803 = vst [vmem:[%s1802] ss:$2 sm:$0xff] %v1780
  %v1804 = vld.sshfl [vmem:[#allocation1] sm:$0xff pattern:$0x75316420]
  %v1805 = vld.sshfl [vmem:[#allocation1 + $0x8] sm:$0xff pattern:$0x75316420]
  %v1806 = vld.sshfl [vmem:[#allocation1 + $0x10] sm:$0xff pattern:$0x75316420]
  %v1807 = vld.sshfl [vmem:[#allocation1 + $0x18] sm:$0xff pattern:$0x75316420]
  %v1808 = vld.sshfl [vmem:[#allocation1 + $0x20] sm:$0xff pattern:$0x75316420]
  %v1809 = vld.sshfl [vmem:[#allocation1 + $0x28] sm:$0xff pattern:$0x75316420]
  %v1810 = vld.sshfl [vmem:[#allocation1 + $0x30] sm:$0xff pattern:$0x75316420]
  %v1811 = vld.sshfl [vmem:[#allocation1 + $0x38] sm:$0xff pattern:$0x75316420]
  %v1812 = vrot.slane %v1804, 7
  %v1813 = vrot.slane %v1805, 7
  %v1814 = vrot.slane %v1806, 7
  %v1815 = vsel %vm1662, %v1812, %v1814
  %v1816 = vrot.slane %v1807, 7
  %v1817 = vsel %vm1662, %v1813, %v1816
  %v1818 = vrot.slane %v1808, 7
  %v1819 = vsel %vm1662, %v1814, %v1818
  %v1820 = vrot.slane %v1809, 7
  %v1821 = vsel %vm1662, %v1816, %v1820
  %v1822 = vrot.slane %v1810, 7
  %v1823 = vsel %vm1662, %v1818, %v1822
  %v1824 = vrot.slane %v1811, 7
  %v1825 = vsel %vm1662, %v1820, %v1824
  %1836 = vst [vmem:[#allocation4 + $0x50] sm:$0xfe] %v1812
  %1837 = vst [vmem:[#allocation4 + $0x58] sm:$0xfe] %v1813
  %1838 = vst [vmem:[#allocation4 + $0x60] sm:$0xff] %v1815
  %1839 = vst [vmem:[#allocation4 + $0x68] sm:$0xff] %v1817
  %1840 = vst [vmem:[#allocation4 + $0x70] sm:$0xff] %v1819
  %1841 = vst [vmem:[#allocation4 + $0x78] sm:$0xff] %v1821
  %1842 = vst [vmem:[#allocation4 + $0x80] sm:$0xff] %v1823
  %1843 = vst [vmem:[#allocation4 + $0x88] sm:$0xff] %v1825
  %1844 = vst [vmem:[#allocation4 + $0x90] sm:$0x1] %v1822
  %1845 = vst [vmem:[#allocation4 + $0x98] sm:$0x1] %v1824
  %v1846 = vld [vmem:[#allocation4] sm:$0xff]
  %v1847 = vld [vmem:[#allocation4 + $0x8] sm:$0xff]
  %v1848 = vld [vmem:[#allocation4 + $0x10] sm:$0xff]
  %v1849 = vld [vmem:[#allocation4 + $0x18] sm:$0xff]
  %v1850 = vld [vmem:[#allocation4 + $0x20] sm:$0xff]
  %v1851 = vld [vmem:[#allocation4 + $0x28] sm:$0xff]
  %v1852 = vld [vmem:[#allocation4 + $0x30] sm:$0xff]
  %v1853 = vld [vmem:[#allocation4 + $0x38] sm:$0xff]
  %v1854 = vld [vmem:[#allocation4 + $0x40] sm:$0xff]
  %v1855 = vld [vmem:[#allocation4 + $0x48] sm:$0xff]
  %v1856 = vld [vmem:[#allocation4 + $0x50] sm:$0xff]
  %v1857 = vld [vmem:[#allocation4 + $0x58] sm:$0xff]
  %v1858 = vld [vmem:[#allocation4 + $0x60] sm:$0xff]
  %v1859 = vld [vmem:[#allocation4 + $0x68] sm:$0xff]
  %v1860 = vld [vmem:[#allocation4 + $0x70] sm:$0xff]
  %v1861 = vld [vmem:[#allocation4 + $0x78] sm:$0xff]
  %v1862 = vld [vmem:[#allocation4 + $0x80] sm:$0xff]
  %v1863 = vld [vmem:[#allocation4 + $0x88] sm:$0xff]
  %v1864 = vld [vmem:[#allocation4 + $0x90] sm:$0x3f]
  %v1865 = vld [vmem:[#allocation4 + $0x98] sm:$0x3f]
  %v1866 = vld [vmem:[%s7] sm:$0xff]
  %v1867 = vld [vmem:[%s7 + $0x8] sm:$0xff]
  %v1868 = vld [vmem:[%s7 + $0x10] sm:$0xff]
  %v1869 = vld [vmem:[%s7 + $0x18] sm:$0xff]
  %v1870 = vld [vmem:[%s7 + $0x20] sm:$0xff]
  %v1871 = vld [vmem:[%s7 + $0x28] sm:$0xff]
  %v1872 = vld [vmem:[%s7 + $0x30] sm:$0xff]
  %v1873 = vld [vmem:[%s7 + $0x38] sm:$0xff]
  %v1874 = vld [vmem:[%s7 + $0x40] sm:$0xff]
  %v1875 = vld [vmem:[%s7 + $0x48] sm:$0xff]
  %v1876 = vld [vmem:[%s7 + $0x50] sm:$0xff]
  %v1877 = vld [vmem:[%s7 + $0x58] sm:$0xff]
  %v1878 = vld [vmem:[%s7 + $0x60] sm:$0xff]
  %v1879 = vld [vmem:[%s7 + $0x68] sm:$0xff]
  %v1880 = vld [vmem:[%s7 + $0x70] sm:$0xff]
  %v1881 = vld [vmem:[%s7 + $0x78] sm:$0xff]
  %v1882 = vld [vmem:[%s7 + $0x80] sm:$0xff]
  %v1883 = vld [vmem:[%s7 + $0x88] sm:$0xff]
  %v1884 = vld [vmem:[%s7 + $0x90] sm:$0xff]
  %v1885 = vld [vmem:[%s7 + $0x98] sm:$0xff]
  %v1886 = vld [vmem:[%s7 + $0xa0] sm:$0xff]
  %v1887 = vld [vmem:[%s7 + $0xa8] sm:$0xff]
  %v1888 = vld [vmem:[%s7 + $0xb0] sm:$0xff]
  %v1889 = vld [vmem:[%s7 + $0xb8] sm:$0xff]
  %v1890 = vld [vmem:[%s7 + $0xc0] sm:$0xff]
  %v1891 = vld [vmem:[%s7 + $0xc8] sm:$0xff]
  %v1892 = vld [vmem:[%s7 + $0xd0] sm:$0xff]
  %v1893 = vld [vmem:[%s7 + $0xd8] sm:$0xff]
  %v1894 = vld [vmem:[%s7 + $0xe0] sm:$0xff]
  %v1895 = vld [vmem:[%s7 + $0xe8] sm:$0xff]
  %v1896 = vld [vmem:[%s7 + $0xf0] sm:$0xff]
  %v1897 = vld [vmem:[%s7 + $0xf8] sm:$0xff]
  %v1898 = vld [vmem:[%s7 + $0x100] sm:$0xff]
  %v1899 = vld [vmem:[%s7 + $0x108] sm:$0xff]
  %v1900 = vld [vmem:[%s7 + $0x110] sm:$0xff]
  %v1901 = vld [vmem:[%s7 + $0x118] sm:$0xff]
  %v1902 = vld [vmem:[%s7 + $0x120] sm:$0xff]
  %v1903 = vld [vmem:[%s7 + $0x128] sm:$0xff]
  %v1904 = vld [vmem:[%s7 + $0x130] sm:$0xff]
  %v1905 = vld [vmem:[%s7 + $0x138] sm:$0xff]
  %v1906 = vld [vmem:[%s7 + $0x140] sm:$0xff]
  %v1907 = vld [vmem:[%s7 + $0x148] sm:$0xff]
  %v1908 = vld [vmem:[%s7 + $0x150] sm:$0xff]
  %v1909 = vld [vmem:[%s7 + $0x158] sm:$0xff]
  %v1910 = vld [vmem:[%s7 + $0x160] sm:$0xff]
  %v1911 = vld [vmem:[%s7 + $0x168] sm:$0xff]
  %v1912 = vld [vmem:[%s7 + $0x170] sm:$0xff]
  %v1913 = vld [vmem:[%s7 + $0x178] sm:$0xff]
  %v1914 = vld [vmem:[%s7 + $0x180] sm:$0xff]
  %v1915 = vld [vmem:[%s7 + $0x188] sm:$0xff]
  %v1916 = vld [vmem:[%s7 + $0x190] sm:$0xff]
  %v1917 = vld [vmem:[%s7 + $0x198] sm:$0xff]
  %v1918 = vld [vmem:[%s7 + $0x1a0] sm:$0xff]
  %v1919 = vld [vmem:[%s7 + $0x1a8] sm:$0xff]
  %v1920 = vld [vmem:[%s7 + $0x1b0] sm:$0xff]
  %v1921 = vld [vmem:[%s7 + $0x1b8] sm:$0xff]
  %v1922 = vld [vmem:[%s7 + $0x1c0] sm:$0xff]
  %v1923 = vld [vmem:[%s7 + $0x1c8] sm:$0xff]
  %v1924 = vld [vmem:[%s7 + $0x1d0] sm:$0xff]
  %v1925 = vld [vmem:[%s7 + $0x1d8] sm:$0xff]
  %v1926 = vld [vmem:[%s7 + $0x1e0] sm:$0xff]
  %v1927 = vld [vmem:[%s7 + $0x1e8] sm:$0xff]
  %v1928 = vld [vmem:[%s7 + $0x1f0] sm:$0xff]
  %v1929 = vld [vmem:[%s7 + $0x1f8] sm:$0xff]
  %v1930 = vld [vmem:[#allocation4] sm:$0xfe]
  %v1931 = vld [vmem:[#allocation4 + $0x8] sm:$0xfe]
  %v1932 = vld [vmem:[#allocation4 + $0x90] sm:$0x7f]
  %v1933 = vld [vmem:[#allocation4 + $0x98] sm:$0x7f]
  %s1934 = scalar_lea.vmem %s7, 512
  %v1935 = vld [vmem:[%s1934] sm:$0xff]
  %v1936 = vld [vmem:[%s1934 + $0x8] sm:$0xff]
  %v1937 = vld [vmem:[%s1934 + $0x10] sm:$0xff]
  %v1938 = vld [vmem:[%s1934 + $0x18] sm:$0xff]
  %v1939 = vld [vmem:[%s1934 + $0x20] sm:$0xff]
  %v1940 = vld [vmem:[%s1934 + $0x28] sm:$0xff]
  %v1941 = vld [vmem:[%s1934 + $0x30] sm:$0xff]
  %v1942 = vld [vmem:[%s1934 + $0x38] sm:$0xff]
  %v1943 = vld [vmem:[%s1934 + $0x40] sm:$0xff]
  %v1944 = vld [vmem:[%s1934 + $0x48] sm:$0xff]
  %v1945 = vld [vmem:[%s1934 + $0x50] sm:$0xff]
  %v1946 = vld [vmem:[%s1934 + $0x58] sm:$0xff]
  %v1947 = vld [vmem:[%s1934 + $0x60] sm:$0xff]
  %v1948 = vld [vmem:[%s1934 + $0x68] sm:$0xff]
  %v1949 = vld [vmem:[%s1934 + $0x70] sm:$0xff]
  %v1950 = vld [vmem:[%s1934 + $0x78] sm:$0xff]
  %v1951 = vld [vmem:[%s1934 + $0x80] sm:$0xff]
  %v1952 = vld [vmem:[%s1934 + $0x88] sm:$0xff]
  %v1953 = vld [vmem:[%s1934 + $0x90] sm:$0xff]
  %v1954 = vld [vmem:[%s1934 + $0x98] sm:$0xff]
  %v1955 = vld [vmem:[%s1934 + $0xa0] sm:$0xff]
  %v1956 = vld [vmem:[%s1934 + $0xa8] sm:$0xff]
  %v1957 = vld [vmem:[%s1934 + $0xb0] sm:$0xff]
  %v1958 = vld [vmem:[%s1934 + $0xb8] sm:$0xff]
  %v1959 = vld [vmem:[%s1934 + $0xc0] sm:$0xff]
  %v1960 = vld [vmem:[%s1934 + $0xc8] sm:$0xff]
  %v1961 = vld [vmem:[%s1934 + $0xd0] sm:$0xff]
  %v1962 = vld [vmem:[%s1934 + $0xd8] sm:$0xff]
  %v1963 = vld [vmem:[%s1934 + $0xe0] sm:$0xff]
  %v1964 = vld [vmem:[%s1934 + $0xe8] sm:$0xff]
  %v1965 = vld [vmem:[%s1934 + $0xf0] sm:$0xff]
  %v1966 = vld [vmem:[%s1934 + $0xf8] sm:$0xff]
  %v1967 = vld [vmem:[%s1934 + $0x100] sm:$0xff]
  %v1968 = vld [vmem:[%s1934 + $0x108] sm:$0xff]
  %v1969 = vld [vmem:[%s1934 + $0x110] sm:$0xff]
  %v1970 = vld [vmem:[%s1934 + $0x118] sm:$0xff]
  %v1971 = vld [vmem:[%s1934 + $0x120] sm:$0xff]
  %v1972 = vld [vmem:[%s1934 + $0x128] sm:$0xff]
  %v1973 = vld [vmem:[%s1934 + $0x130] sm:$0xff]
  %v1974 = vld [vmem:[%s1934 + $0x138] sm:$0xff]
  %v1975 = vld [vmem:[%s1934 + $0x140] sm:$0xff]
  %v1976 = vld [vmem:[%s1934 + $0x148] sm:$0xff]
  %v1977 = vld [vmem:[%s1934 + $0x150] sm:$0xff]
  %v1978 = vld [vmem:[%s1934 + $0x158] sm:$0xff]
  %v1979 = vld [vmem:[%s1934 + $0x160] sm:$0xff]
  %v1980 = vld [vmem:[%s1934 + $0x168] sm:$0xff]
  %v1981 = vld [vmem:[%s1934 + $0x170] sm:$0xff]
  %v1982 = vld [vmem:[%s1934 + $0x178] sm:$0xff]
  %v1983 = vld [vmem:[%s1934 + $0x180] sm:$0xff]
  %v1984 = vld [vmem:[%s1934 + $0x188] sm:$0xff]
  %v1985 = vld [vmem:[%s1934 + $0x190] sm:$0xff]
  %v1986 = vld [vmem:[%s1934 + $0x198] sm:$0xff]
  %v1987 = vld [vmem:[%s1934 + $0x1a0] sm:$0xff]
  %v1988 = vld [vmem:[%s1934 + $0x1a8] sm:$0xff]
  %v1989 = vld [vmem:[%s1934 + $0x1b0] sm:$0xff]
  %v1990 = vld [vmem:[%s1934 + $0x1b8] sm:$0xff]
  %v1991 = vld [vmem:[%s1934 + $0x1c0] sm:$0xff]
  %v1992 = vld [vmem:[%s1934 + $0x1c8] sm:$0xff]
  %v1993 = vld [vmem:[%s1934 + $0x1d0] sm:$0xff]
  %v1994 = vld [vmem:[%s1934 + $0x1d8] sm:$0xff]
  %v1995 = vld [vmem:[%s1934 + $0x1e0] sm:$0xff]
  %v1996 = vld [vmem:[%s1934 + $0x1e8] sm:$0xff]
  %v1997 = vld [vmem:[%s1934 + $0x1f0] sm:$0xff]
  %v1998 = vld [vmem:[%s1934 + $0x1f8] sm:$0xff]
  %vm2019 = vcmask 1046528
  %v2020 = vrot.slane %v1930, 1
  %v2021 = vrot.slane %v1848, 1
  %v2022 = vsel %vm2019, %v2020, %v2021
  %v2023 = vrot.slane %v1931, 1
  %v2024 = vrot.slane %v1849, 1
  %v2025 = vsel %vm2019, %v2023, %v2024
  %v2026 = vrot.slane %v1850, 1
  %v2027 = vsel %vm2019, %v2021, %v2026
  %v2028 = vrot.slane %v1851, 1
  %v2029 = vsel %vm2019, %v2024, %v2028
  %v2030 = vrot.slane %v1852, 1
  %v2031 = vsel %vm2019, %v2026, %v2030
  %v2032 = vrot.slane %v1853, 1
  %v2033 = vsel %vm2019, %v2028, %v2032
  %v2034 = vrot.slane %v1854, 1
  %v2035 = vsel %vm2019, %v2030, %v2034
  %v2036 = vrot.slane %v1855, 1
  %v2037 = vsel %vm2019, %v2032, %v2036
  %v2038 = vrot.slane %v1856, 1
  %v2039 = vsel %vm2019, %v2034, %v2038
  %v2040 = vrot.slane %v1857, 1
  %v2041 = vsel %vm2019, %v2036, %v2040
  %v2042 = vrot.slane %v1858, 1
  %v2043 = vsel %vm2019, %v2038, %v2042
  %v2044 = vrot.slane %v1859, 1
  %v2045 = vsel %vm2019, %v2040, %v2044
  %v2046 = vrot.slane %v1860, 1
  %v2047 = vsel %vm2019, %v2042, %v2046
  %v2048 = vrot.slane %v1861, 1
  %v2049 = vsel %vm2019, %v2044, %v2048
  %v2050 = vrot.slane %v1862, 1
  %v2051 = vsel %vm2019, %v2046, %v2050
  %v2052 = vrot.slane %v1863, 1
  %v2053 = vsel %vm2019, %v2048, %v2052
  %v2054 = vrot.slane %v1932, 1
  %v2055 = vsel %vm2019, %v2050, %v2054
  %v2056 = vrot.slane %v1933, 1
  %v2057 = vsel %vm2019, %v2052, %v2056
  %2078 = vmatpush.msra.mxu0 %v1965
  %2079 = vmatpush.msra.mxu0 %v1963
  %2080 = vmatpush.msra.mxu0 %v1961
  %2081 = vmatpush.msra.mxu0 %v1959
  %2082 = vmatpush.msra.mxu0 %v1957
  %2083 = vmatpush.msra.mxu0 %v1955
  %2084 = vmatpush.msra.mxu0 %v1953
  %2085 = vmatpush.msra.mxu0 %v1951
  %2086 = vmatpush.msra.mxu0 %v1949
  %2087 = vmatpush.msra.mxu0 %v1947
  %2088 = vmatpush.msra.mxu0 %v1945
  %2089 = vmatpush.msra.mxu0 %v1943
  %2090 = vmatpush.msra.mxu0 %v1941
  %2091 = vmatpush.msra.mxu0 %v1939
  %2092 = vmatpush.msra.mxu0 %v1937
  %2093 = vmatpush.msra.mxu0 %v1935
  %2094 = vmatmul.f32.gmra.mxu0 %v2022
  %v2095 = vpop.f32.mrf.mxu0
  %v2096 = vadd.f32 0.0, %v2095
  %2097 = vmatmul.f32.gmra.mxu0 %v2027
  %v2098 = vpop.f32.mrf.mxu0
  %v2099 = vadd.f32 0.0, %v2098
  %2100 = vmatmul.f32.gmra.mxu0 %v2031
  %v2101 = vpop.f32.mrf.mxu0
  %v2102 = vadd.f32 0.0, %v2101
  %2103 = vmatmul.f32.gmra.mxu0 %v2035
  %v2104 = vpop.f32.mrf.mxu0
  %v2105 = vadd.f32 0.0, %v2104
  %2106 = vmatmul.f32.gmra.mxu0 %v2039
  %v2107 = vpop.f32.mrf.mxu0
  %2108 = vmatmul.f32.gmra.mxu0 %v2043
  %v2109 = vpop.f32.mrf.mxu0
  %v2110 = vadd.f32 0.0, %v2109
  %2111 = vmatmul.f32.gmra.mxu0 %v2047
  %v2112 = vpop.f32.mrf.mxu0
  %v2113 = vadd.f32 0.0, %v2112
  %2114 = vmatmul.f32.gmra.mxu0 %v2051
  %v2115 = vpop.f32.mrf.mxu0
  %v2116 = vadd.f32 0.0, %v2115
  %2117 = vmatmul.f32.gmra.mxu0 %v2055
  %v2118 = vpop.f32.mrf.mxu0
  %v2119 = vadd.f32 0.0, %v2118
  %2120 = vmatmul.f32.gmra.mxu0 %v2054
  %v2121 = vpop.f32.mrf.mxu0
  %2122 = vdwg.mxu0
  %2123 = vmatpush.msra.mxu0 %v1997
  %2124 = vmatpush.msra.mxu0 %v1995
  %2125 = vmatpush.msra.mxu0 %v1993
  %2126 = vmatpush.msra.mxu0 %v1991
  %2127 = vmatpush.msra.mxu0 %v1989
  %2128 = vmatpush.msra.mxu0 %v1987
  %2129 = vmatpush.msra.mxu0 %v1985
  %2130 = vmatpush.msra.mxu0 %v1983
  %2131 = vmatpush.msra.mxu0 %v1981
  %2132 = vmatpush.msra.mxu0 %v1979
  %2133 = vmatpush.msra.mxu0 %v1977
  %2134 = vmatpush.msra.mxu0 %v1975
  %2135 = vmatpush.msra.mxu0 %v1973
  %2136 = vmatpush.msra.mxu0 %v1971
  %2137 = vmatpush.msra.mxu0 %v1969
  %2138 = vmatpush.msra.mxu0 %v1967
  %2139 = vmatmul.f32.gmra.mxu0 %v2025
  %v2140 = vpop.f32.mrf.mxu0
  %v2141 = vadd.f32 %v2096, %v2140
  %2142 = vmatmul.f32.gmra.mxu0 %v2029
  %v2143 = vpop.f32.mrf.mxu0
  %v2144 = vadd.f32 %v2099, %v2143
  %2145 = vmatmul.f32.gmra.mxu0 %v2033
  %v2146 = vpop.f32.mrf.mxu0
  %v2147 = vadd.f32 %v2102, %v2146
  %2148 = vmatmul.f32.gmra.mxu0 %v2037
  %v2149 = vpop.f32.mrf.mxu0
  %v2150 = vadd.f32 %v2105, %v2149
  %2151 = vmatmul.f32.gmra.mxu0 %v2041
  %v2152 = vpop.f32.mrf.mxu0
  %2153 = vmatmul.f32.gmra.mxu0 %v2045
  %v2154 = vpop.f32.mrf.mxu0
  %v2155 = vadd.f32 %v2110, %v2154
  %2156 = vmatmul.f32.gmra.mxu0 %v2049
  %v2157 = vpop.f32.mrf.mxu0
  %v2158 = vadd.f32 %v2113, %v2157
  %2159 = vmatmul.f32.gmra.mxu0 %v2053
  %v2160 = vpop.f32.mrf.mxu0
  %v2161 = vadd.f32 %v2116, %v2160
  %2162 = vmatmul.f32.gmra.mxu0 %v2057
  %v2163 = vpop.f32.mrf.mxu0
  %v2164 = vadd.f32 %v2119, %v2163
  %2165 = vmatmul.f32.gmra.mxu0 %v2056
  %v2166 = vpop.f32.mrf.mxu0
  %2167 = vdwg.mxu0
  %2168 = vmatpush.msra.mxu0 %v1966
  %2169 = vmatpush.msra.mxu0 %v1964
  %2170 = vmatpush.msra.mxu0 %v1962
  %2171 = vmatpush.msra.mxu0 %v1960
  %2172 = vmatpush.msra.mxu0 %v1958
  %2173 = vmatpush.msra.mxu0 %v1956
  %2174 = vmatpush.msra.mxu0 %v1954
  %2175 = vmatpush.msra.mxu0 %v1952
  %2176 = vmatpush.msra.mxu0 %v1950
  %2177 = vmatpush.msra.mxu0 %v1948
  %2178 = vmatpush.msra.mxu0 %v1946
  %2179 = vmatpush.msra.mxu0 %v1944
  %2180 = vmatpush.msra.mxu0 %v1942
  %2181 = vmatpush.msra.mxu0 %v1940
  %2182 = vmatpush.msra.mxu0 %v1938
  %2183 = vmatpush.msra.mxu0 %v1936
  %2184 = vmatmul.f32.gmra.mxu0 %v2022
  %v2185 = vpop.f32.mrf.mxu0
  %v2186 = vadd.f32 0.0, %v2185
  %2187 = vmatmul.f32.gmra.mxu0 %v2027
  %v2188 = vpop.f32.mrf.mxu0
  %v2189 = vadd.f32 0.0, %v2188
  %2190 = vmatmul.f32.gmra.mxu0 %v2031
  %v2191 = vpop.f32.mrf.mxu0
  %v2192 = vadd.f32 0.0, %v2191
  %2193 = vmatmul.f32.gmra.mxu0 %v2035
  %v2194 = vpop.f32.mrf.mxu0
  %v2195 = vadd.f32 0.0, %v2194
  %2196 = vmatmul.f32.gmra.mxu0 %v2039
  %v2197 = vpop.f32.mrf.mxu0
  %2198 = vmatmul.f32.gmra.mxu0 %v2043
  %v2199 = vpop.f32.mrf.mxu0
  %v2200 = vadd.f32 0.0, %v2199
  %2201 = vmatmul.f32.gmra.mxu0 %v2047
  %v2202 = vpop.f32.mrf.mxu0
  %v2203 = vadd.f32 0.0, %v2202
  %2204 = vmatmul.f32.gmra.mxu0 %v2051
  %v2205 = vpop.f32.mrf.mxu0
  %v2206 = vadd.f32 0.0, %v2205
  %2207 = vmatmul.f32.gmra.mxu0 %v2055
  %v2208 = vpop.f32.mrf.mxu0
  %v2209 = vadd.f32 0.0, %v2208
  %2210 = vmatmul.f32.gmra.mxu0 %v2054
  %v2211 = vpop.f32.mrf.mxu0
  %2212 = vdwg.mxu0
  %2213 = vmatpush.msra.mxu0 %v1998
  %2214 = vmatpush.msra.mxu0 %v1996
  %2215 = vmatpush.msra.mxu0 %v1994
  %2216 = vmatpush.msra.mxu0 %v1992
  %2217 = vmatpush.msra.mxu0 %v1990
  %2218 = vmatpush.msra.mxu0 %v1988
  %2219 = vmatpush.msra.mxu0 %v1986
  %2220 = vmatpush.msra.mxu0 %v1984
  %2221 = vmatpush.msra.mxu0 %v1982
  %2222 = vmatpush.msra.mxu0 %v1980
  %2223 = vmatpush.msra.mxu0 %v1978
  %2224 = vmatpush.msra.mxu0 %v1976
  %2225 = vmatpush.msra.mxu0 %v1974
  %2226 = vmatpush.msra.mxu0 %v1972
  %2227 = vmatpush.msra.mxu0 %v1970
  %2228 = vmatpush.msra.mxu0 %v1968
  %2229 = vmatmul.f32.gmra.mxu0 %v2025
  %v2230 = vpop.f32.mrf.mxu0
  %v2231 = vadd.f32 %v2186, %v2230
  %2232 = vmatmul.f32.gmra.mxu0 %v2029
  %v2233 = vpop.f32.mrf.mxu0
  %v2234 = vadd.f32 %v2189, %v2233
  %2235 = vmatmul.f32.gmra.mxu0 %v2033
  %v2236 = vpop.f32.mrf.mxu0
  %v2237 = vadd.f32 %v2192, %v2236
  %2238 = vmatmul.f32.gmra.mxu0 %v2037
  %v2239 = vpop.f32.mrf.mxu0
  %v2240 = vadd.f32 %v2195, %v2239
  %2241 = vmatmul.f32.gmra.mxu0 %v2041
  %v2242 = vpop.f32.mrf.mxu0
  %2243 = vmatmul.f32.gmra.mxu0 %v2045
  %v2244 = vpop.f32.mrf.mxu0
  %v2245 = vadd.f32 %v2200, %v2244
  %2246 = vmatmul.f32.gmra.mxu0 %v2049
  %v2247 = vpop.f32.mrf.mxu0
  %v2248 = vadd.f32 %v2203, %v2247
  %2249 = vmatmul.f32.gmra.mxu0 %v2053
  %v2250 = vpop.f32.mrf.mxu0
  %v2251 = vadd.f32 %v2206, %v2250
  %2252 = vmatmul.f32.gmra.mxu0 %v2057
  %v2253 = vpop.f32.mrf.mxu0
  %v2254 = vadd.f32 %v2209, %v2253
  %2255 = vmatmul.f32.gmra.mxu0 %v2056
  %v2256 = vpop.f32.mrf.mxu0
  %2257 = vdwg.mxu0
  %2258 = vmatpush.msra.mxu0 %v1896
  %2259 = vmatpush.msra.mxu0 %v1894
  %2260 = vmatpush.msra.mxu0 %v1892
  %2261 = vmatpush.msra.mxu0 %v1890
  %2262 = vmatpush.msra.mxu0 %v1888
  %2263 = vmatpush.msra.mxu0 %v1886
  %2264 = vmatpush.msra.mxu0 %v1884
  %2265 = vmatpush.msra.mxu0 %v1882
  %2266 = vmatpush.msra.mxu0 %v1880
  %2267 = vmatpush.msra.mxu0 %v1878
  %2268 = vmatpush.msra.mxu0 %v1876
  %2269 = vmatpush.msra.mxu0 %v1874
  %2270 = vmatpush.msra.mxu0 %v1872
  %2271 = vmatpush.msra.mxu0 %v1870
  %2272 = vmatpush.msra.mxu0 %v1868
  %2273 = vmatpush.msra.mxu0 %v1866
  %2274 = vmatmul.f32.gmra.mxu0 %v1846
  %v2275 = vpop.f32.mrf.mxu0
  %v2276 = vadd.f32 %v2141, %v2275
  %2277 = vmatmul.f32.gmra.mxu0 %v1848
  %v2278 = vpop.f32.mrf.mxu0
  %v2279 = vadd.f32 %v2144, %v2278
  %2280 = vmatmul.f32.gmra.mxu0 %v1850
  %v2281 = vpop.f32.mrf.mxu0
  %v2282 = vadd.f32 %v2147, %v2281
  %2283 = vmatmul.f32.gmra.mxu0 %v1852
  %v2284 = vpop.f32.mrf.mxu0
  %v2285 = vadd.f32 %v2150, %v2284
  %2286 = vmatmul.f32.gmra.mxu0 %v1854
  %v2287 = vpop.f32.mrf.mxu0
  %2288 = vmatmul.f32.gmra.mxu0 %v1856
  %v2289 = vpop.f32.mrf.mxu0
  %v2290 = vadd.f32 %v2155, %v2289
  %2291 = vmatmul.f32.gmra.mxu0 %v1858
  %v2292 = vpop.f32.mrf.mxu0
  %v2293 = vadd.f32 %v2158, %v2292
  %2294 = vmatmul.f32.gmra.mxu0 %v1860
  %v2295 = vpop.f32.mrf.mxu0
  %v2296 = vadd.f32 %v2161, %v2295
  %2297 = vmatmul.f32.gmra.mxu0 %v1862
  %v2298 = vpop.f32.mrf.mxu0
  %v2299 = vadd.f32 %v2164, %v2298
  %2300 = vmatmul.f32.gmra.mxu0 %v1864
  %v2301 = vpop.f32.mrf.mxu0
  %2302 = vdwg.mxu0
  %2303 = vmatpush.msra.mxu0 %v1928
  %2304 = vmatpush.msra.mxu0 %v1926
  %2305 = vmatpush.msra.mxu0 %v1924
  %2306 = vmatpush.msra.mxu0 %v1922
  %2307 = vmatpush.msra.mxu0 %v1920
  %2308 = vmatpush.msra.mxu0 %v1918
  %2309 = vmatpush.msra.mxu0 %v1916
  %2310 = vmatpush.msra.mxu0 %v1914
  %2311 = vmatpush.msra.mxu0 %v1912
  %2312 = vmatpush.msra.mxu0 %v1910
  %2313 = vmatpush.msra.mxu0 %v1908
  %2314 = vmatpush.msra.mxu0 %v1906
  %2315 = vmatpush.msra.mxu0 %v1904
  %2316 = vmatpush.msra.mxu0 %v1902
  %2317 = vmatpush.msra.mxu0 %v1900
  %2318 = vmatpush.msra.mxu0 %v1898
  %2319 = vmatmul.f32.gmra.mxu0 %v1847
  %v2320 = vpop.f32.mrf.mxu0
  %v2321 = vadd.f32 %v2276, %v2320
  %2322 = vmatmul.f32.gmra.mxu0 %v1849
  %v2323 = vpop.f32.mrf.mxu0
  %v2324 = vadd.f32 %v2279, %v2323
  %2325 = vmatmul.f32.gmra.mxu0 %v1851
  %v2326 = vpop.f32.mrf.mxu0
  %v2327 = vadd.f32 %v2282, %v2326
  %2328 = vmatmul.f32.gmra.mxu0 %v1853
  %v2329 = vpop.f32.mrf.mxu0
  %v2330 = vadd.f32 %v2285, %v2329
  %2331 = vmatmul.f32.gmra.mxu0 %v1855
  %v2332 = vpop.f32.mrf.mxu0
  %2333 = vmatmul.f32.gmra.mxu0 %v1857
  %v2334 = vpop.f32.mrf.mxu0
  %v2335 = vadd.f32 %v2290, %v2334
  %2336 = vmatmul.f32.gmra.mxu0 %v1859
  %v2337 = vpop.f32.mrf.mxu0
  %v2338 = vadd.f32 %v2293, %v2337
  %2339 = vmatmul.f32.gmra.mxu0 %v1861
  %v2340 = vpop.f32.mrf.mxu0
  %v2341 = vadd.f32 %v2296, %v2340
  %2342 = vmatmul.f32.gmra.mxu0 %v1863
  %v2343 = vpop.f32.mrf.mxu0
  %v2344 = vadd.f32 %v2299, %v2343
  %2345 = vmatmul.f32.gmra.mxu0 %v1865
  %v2346 = vpop.f32.mrf.mxu0
  %2347 = vdwg.mxu0
  %2348 = vmatpush.msra.mxu0 %v1897
  %2349 = vmatpush.msra.mxu0 %v1895
  %2350 = vmatpush.msra.mxu0 %v1893
  %2351 = vmatpush.msra.mxu0 %v1891
  %2352 = vmatpush.msra.mxu0 %v1889
  %2353 = vmatpush.msra.mxu0 %v1887
  %2354 = vmatpush.msra.mxu0 %v1885
  %2355 = vmatpush.msra.mxu0 %v1883
  %2356 = vmatpush.msra.mxu0 %v1881
  %2357 = vmatpush.msra.mxu0 %v1879
  %2358 = vmatpush.msra.mxu0 %v1877
  %2359 = vmatpush.msra.mxu0 %v1875
  %2360 = vmatpush.msra.mxu0 %v1873
  %2361 = vmatpush.msra.mxu0 %v1871
  %2362 = vmatpush.msra.mxu0 %v1869
  %2363 = vmatpush.msra.mxu0 %v1867
  %2364 = vmatmul.f32.gmra.mxu0 %v1846
  %v2365 = vpop.f32.mrf.mxu0
  %v2366 = vadd.f32 %v2231, %v2365
  %2367 = vmatmul.f32.gmra.mxu0 %v1848
  %v2368 = vpop.f32.mrf.mxu0
  %v2369 = vadd.f32 %v2234, %v2368
  %2370 = vmatmul.f32.gmra.mxu0 %v1850
  %v2371 = vpop.f32.mrf.mxu0
  %v2372 = vadd.f32 %v2237, %v2371
  %2373 = vmatmul.f32.gmra.mxu0 %v1852
  %v2374 = vpop.f32.mrf.mxu0
  %v2375 = vadd.f32 %v2240, %v2374
  %2376 = vmatmul.f32.gmra.mxu0 %v1854
  %v2377 = vpop.f32.mrf.mxu0
  %2378 = vmatmul.f32.gmra.mxu0 %v1856
  %v2379 = vpop.f32.mrf.mxu0
  %v2380 = vadd.f32 %v2245, %v2379
  %2381 = vmatmul.f32.gmra.mxu0 %v1858
  %v2382 = vpop.f32.mrf.mxu0
  %v2383 = vadd.f32 %v2248, %v2382
  %2384 = vmatmul.f32.gmra.mxu0 %v1860
  %v2385 = vpop.f32.mrf.mxu0
  %v2386 = vadd.f32 %v2251, %v2385
  %2387 = vmatmul.f32.gmra.mxu0 %v1862
  %v2388 = vpop.f32.mrf.mxu0
  %v2389 = vadd.f32 %v2254, %v2388
  %2390 = vmatmul.f32.gmra.mxu0 %v1864
  %v2391 = vpop.f32.mrf.mxu0
  %2392 = vdwg.mxu0
  %2393 = vmatpush.msra.mxu0 %v1929
  %2394 = vmatpush.msra.mxu0 %v1927
  %2395 = vmatpush.msra.mxu0 %v1925
  %2396 = vmatpush.msra.mxu0 %v1923
  %2397 = vmatpush.msra.mxu0 %v1921
  %2398 = vmatpush.msra.mxu0 %v1919
  %2399 = vmatpush.msra.mxu0 %v1917
  %2400 = vmatpush.msra.mxu0 %v1915
  %2401 = vmatpush.msra.mxu0 %v1913
  %2402 = vmatpush.msra.mxu0 %v1911
  %2403 = vmatpush.msra.mxu0 %v1909
  %2404 = vmatpush.msra.mxu0 %v1907
  %2405 = vmatpush.msra.mxu0 %v1905
  %2406 = vmatpush.msra.mxu0 %v1903
  %2407 = vmatpush.msra.mxu0 %v1901
  %2408 = vmatpush.msra.mxu0 %v1899
  %2409 = vmatmul.f32.gmra.mxu0 %v1847
  %v2410 = vpop.f32.mrf.mxu0
  %v2411 = vadd.f32 %v2366, %v2410
  %2412 = vmatmul.f32.gmra.mxu0 %v1849
  %v2413 = vpop.f32.mrf.mxu0
  %v2414 = vadd.f32 %v2369, %v2413
  %2415 = vmatmul.f32.gmra.mxu0 %v1851
  %v2416 = vpop.f32.mrf.mxu0
  %v2417 = vadd.f32 %v2372, %v2416
  %2418 = vmatmul.f32.gmra.mxu0 %v1853
  %v2419 = vpop.f32.mrf.mxu0
  %v2420 = vadd.f32 %v2375, %v2419
  %2421 = vmatmul.f32.gmra.mxu0 %v1855
  %v2422 = vpop.f32.mrf.mxu0
  %2423 = vmatmul.f32.gmra.mxu0 %v1857
  %v2424 = vpop.f32.mrf.mxu0
  %v2425 = vadd.f32 %v2380, %v2424
  %2426 = vmatmul.f32.gmra.mxu0 %v1859
  %v2427 = vpop.f32.mrf.mxu0
  %v2428 = vadd.f32 %v2383, %v2427
  %2429 = vmatmul.f32.gmra.mxu0 %v1861
  %v2430 = vpop.f32.mrf.mxu0
  %v2431 = vadd.f32 %v2386, %v2430
  %2432 = vmatmul.f32.gmra.mxu0 %v1863
  %v2433 = vpop.f32.mrf.mxu0
  %v2434 = vadd.f32 %v2389, %v2433
  %2435 = vmatmul.f32.gmra.mxu0 %v1865
  %v2436 = vpop.f32.mrf.mxu0
  %2437 = vdwg.mxu0
  %v2438 = vld [vmem:[#allocation4] sm:$0xfc]
  %v2439 = vld [vmem:[#allocation4 + $0x8] sm:$0xfc]
  %v2440 = vld [vmem:[#allocation4 + $0x90] sm:$0xff]
  %v2441 = vld [vmem:[#allocation4 + $0x98] sm:$0xff]
  %s2442 = scalar_lea.vmem %s7, 1024
  %v2443 = vld [vmem:[%s2442] sm:$0xff]
  %v2444 = vld [vmem:[%s2442 + $0x8] sm:$0xff]
  %v2445 = vld [vmem:[%s2442 + $0x10] sm:$0xff]
  %v2446 = vld [vmem:[%s2442 + $0x18] sm:$0xff]
  %v2447 = vld [vmem:[%s2442 + $0x20] sm:$0xff]
  %v2448 = vld [vmem:[%s2442 + $0x28] sm:$0xff]
  %v2449 = vld [vmem:[%s2442 + $0x30] sm:$0xff]
  %v2450 = vld [vmem:[%s2442 + $0x38] sm:$0xff]
  %v2451 = vld [vmem:[%s2442 + $0x40] sm:$0xff]
  %v2452 = vld [vmem:[%s2442 + $0x48] sm:$0xff]
  %v2453 = vld [vmem:[%s2442 + $0x50] sm:$0xff]
  %v2454 = vld [vmem:[%s2442 + $0x58] sm:$0xff]
  %v2455 = vld [vmem:[%s2442 + $0x60] sm:$0xff]
  %v2456 = vld [vmem:[%s2442 + $0x68] sm:$0xff]
  %v2457 = vld [vmem:[%s2442 + $0x70] sm:$0xff]
  %v2458 = vld [vmem:[%s2442 + $0x78] sm:$0xff]
  %v2459 = vld [vmem:[%s2442 + $0x80] sm:$0xff]
  %v2460 = vld [vmem:[%s2442 + $0x88] sm:$0xff]
  %v2461 = vld [vmem:[%s2442 + $0x90] sm:$0xff]
  %v2462 = vld [vmem:[%s2442 + $0x98] sm:$0xff]
  %v2463 = vld [vmem:[%s2442 + $0xa0] sm:$0xff]
  %v2464 = vld [vmem:[%s2442 + $0xa8] sm:$0xff]
  %v2465 = vld [vmem:[%s2442 + $0xb0] sm:$0xff]
  %v2466 = vld [vmem:[%s2442 + $0xb8] sm:$0xff]
  %v2467 = vld [vmem:[%s2442 + $0xc0] sm:$0xff]
  %v2468 = vld [vmem:[%s2442 + $0xc8] sm:$0xff]
  %v2469 = vld [vmem:[%s2442 + $0xd0] sm:$0xff]
  %v2470 = vld [vmem:[%s2442 + $0xd8] sm:$0xff]
  %v2471 = vld [vmem:[%s2442 + $0xe0] sm:$0xff]
  %v2472 = vld [vmem:[%s2442 + $0xe8] sm:$0xff]
  %v2473 = vld [vmem:[%s2442 + $0xf0] sm:$0xff]
  %v2474 = vld [vmem:[%s2442 + $0xf8] sm:$0xff]
  %v2475 = vld [vmem:[%s2442 + $0x100] sm:$0xff]
  %v2476 = vld [vmem:[%s2442 + $0x108] sm:$0xff]
  %v2477 = vld [vmem:[%s2442 + $0x110] sm:$0xff]
  %v2478 = vld [vmem:[%s2442 + $0x118] sm:$0xff]
  %v2479 = vld [vmem:[%s2442 + $0x120] sm:$0xff]
  %v2480 = vld [vmem:[%s2442 + $0x128] sm:$0xff]
  %v2481 = vld [vmem:[%s2442 + $0x130] sm:$0xff]
  %v2482 = vld [vmem:[%s2442 + $0x138] sm:$0xff]
  %v2483 = vld [vmem:[%s2442 + $0x140] sm:$0xff]
  %v2484 = vld [vmem:[%s2442 + $0x148] sm:$0xff]
  %v2485 = vld [vmem:[%s2442 + $0x150] sm:$0xff]
  %v2486 = vld [vmem:[%s2442 + $0x158] sm:$0xff]
  %v2487 = vld [vmem:[%s2442 + $0x160] sm:$0xff]
  %v2488 = vld [vmem:[%s2442 + $0x168] sm:$0xff]
  %v2489 = vld [vmem:[%s2442 + $0x170] sm:$0xff]
  %v2490 = vld [vmem:[%s2442 + $0x178] sm:$0xff]
  %v2491 = vld [vmem:[%s2442 + $0x180] sm:$0xff]
  %v2492 = vld [vmem:[%s2442 + $0x188] sm:$0xff]
  %v2493 = vld [vmem:[%s2442 + $0x190] sm:$0xff]
  %v2494 = vld [vmem:[%s2442 + $0x198] sm:$0xff]
  %v2495 = vld [vmem:[%s2442 + $0x1a0] sm:$0xff]
  %v2496 = vld [vmem:[%s2442 + $0x1a8] sm:$0xff]
  %v2497 = vld [vmem:[%s2442 + $0x1b0] sm:$0xff]
  %v2498 = vld [vmem:[%s2442 + $0x1b8] sm:$0xff]
  %v2499 = vld [vmem:[%s2442 + $0x1c0] sm:$0xff]
  %v2500 = vld [vmem:[%s2442 + $0x1c8] sm:$0xff]
  %v2501 = vld [vmem:[%s2442 + $0x1d0] sm:$0xff]
  %v2502 = vld [vmem:[%s2442 + $0x1d8] sm:$0xff]
  %v2503 = vld [vmem:[%s2442 + $0x1e0] sm:$0xff]
  %v2504 = vld [vmem:[%s2442 + $0x1e8] sm:$0xff]
  %v2505 = vld [vmem:[%s2442 + $0x1f0] sm:$0xff]
  %v2506 = vld [vmem:[%s2442 + $0x1f8] sm:$0xff]
  %v2511 = vrot.slane %v2438, 2
  %v2512 = vrot.slane %v1848, 2
  %v2513 = vsel %vm1563, %v2511, %v2512
  %v2514 = vrot.slane %v2439, 2
  %v2515 = vrot.slane %v1849, 2
  %v2516 = vsel %vm1563, %v2514, %v2515
  %v2517 = vrot.slane %v1850, 2
  %v2518 = vsel %vm1563, %v2512, %v2517
  %v2519 = vrot.slane %v1851, 2
  %v2520 = vsel %vm1563, %v2515, %v2519
  %v2521 = vrot.slane %v1852, 2
  %v2522 = vsel %vm1563, %v2517, %v2521
  %v2523 = vrot.slane %v1853, 2
  %v2524 = vsel %vm1563, %v2519, %v2523
  %v2525 = vrot.slane %v1854, 2
  %v2526 = vsel %vm1563, %v2521, %v2525
  %v2527 = vrot.slane %v1855, 2
  %v2528 = vsel %vm1563, %v2523, %v2527
  %v2529 = vrot.slane %v1856, 2
  %v2530 = vsel %vm1563, %v2525, %v2529
  %v2531 = vrot.slane %v1857, 2
  %v2532 = vsel %vm1563, %v2527, %v2531
  %v2533 = vrot.slane %v1858, 2
  %v2534 = vsel %vm1563, %v2529, %v2533
  %v2535 = vrot.slane %v1859, 2
  %v2536 = vsel %vm1563, %v2531, %v2535
  %v2537 = vrot.slane %v1860, 2
  %v2538 = vsel %vm1563, %v2533, %v2537
  %v2539 = vrot.slane %v1861, 2
  %v2540 = vsel %vm1563, %v2535, %v2539
  %v2541 = vrot.slane %v1862, 2
  %v2542 = vsel %vm1563, %v2537, %v2541
  %v2543 = vrot.slane %v1863, 2
  %v2544 = vsel %vm1563, %v2539, %v2543
  %v2545 = vrot.slane %v2440, 2
  %v2546 = vsel %vm1563, %v2541, %v2545
  %v2547 = vrot.slane %v2441, 2
  %v2548 = vsel %vm1563, %v2543, %v2547
  %2569 = vmatpush.msra.mxu0 %v2473
  %2570 = vmatpush.msra.mxu0 %v2471
  %2571 = vmatpush.msra.mxu0 %v2469
  %2572 = vmatpush.msra.mxu0 %v2467
  %2573 = vmatpush.msra.mxu0 %v2465
  %2574 = vmatpush.msra.mxu0 %v2463
  %2575 = vmatpush.msra.mxu0 %v2461
  %2576 = vmatpush.msra.mxu0 %v2459
  %2577 = vmatpush.msra.mxu0 %v2457
  %2578 = vmatpush.msra.mxu0 %v2455
  %2579 = vmatpush.msra.mxu0 %v2453
  %2580 = vmatpush.msra.mxu0 %v2451
  %2581 = vmatpush.msra.mxu0 %v2449
  %2582 = vmatpush.msra.mxu0 %v2447
  %2583 = vmatpush.msra.mxu0 %v2445
  %2584 = vmatpush.msra.mxu0 %v2443
  %2585 = vmatmul.f32.gmra.mxu0 %v2513
  %v2586 = vpop.f32.mrf.mxu0
  %v2587 = vadd.f32 0.0, %v2586
  %2588 = vmatmul.f32.gmra.mxu0 %v2518
  %v2589 = vpop.f32.mrf.mxu0
  %v2590 = vadd.f32 0.0, %v2589
  %2591 = vmatmul.f32.gmra.mxu0 %v2522
  %v2592 = vpop.f32.mrf.mxu0
  %v2593 = vadd.f32 0.0, %v2592
  %2594 = vmatmul.f32.gmra.mxu0 %v2526
  %v2595 = vpop.f32.mrf.mxu0
  %v2596 = vadd.f32 0.0, %v2595
  %2597 = vmatmul.f32.gmra.mxu0 %v2530
  %v2598 = vpop.f32.mrf.mxu0
  %2599 = vmatmul.f32.gmra.mxu0 %v2534
  %v2600 = vpop.f32.mrf.mxu0
  %v2601 = vadd.f32 0.0, %v2600
  %2602 = vmatmul.f32.gmra.mxu0 %v2538
  %v2603 = vpop.f32.mrf.mxu0
  %v2604 = vadd.f32 0.0, %v2603
  %2605 = vmatmul.f32.gmra.mxu0 %v2542
  %v2606 = vpop.f32.mrf.mxu0
  %v2607 = vadd.f32 0.0, %v2606
  %2608 = vmatmul.f32.gmra.mxu0 %v2546
  %v2609 = vpop.f32.mrf.mxu0
  %v2610 = vadd.f32 0.0, %v2609
  %2611 = vmatmul.f32.gmra.mxu0 %v2545
  %v2612 = vpop.f32.mrf.mxu0
  %2613 = vdwg.mxu0
  %2614 = vmatpush.msra.mxu0 %v2505
  %2615 = vmatpush.msra.mxu0 %v2503
  %2616 = vmatpush.msra.mxu0 %v2501
  %2617 = vmatpush.msra.mxu0 %v2499
  %2618 = vmatpush.msra.mxu0 %v2497
  %2619 = vmatpush.msra.mxu0 %v2495
  %2620 = vmatpush.msra.mxu0 %v2493
  %2621 = vmatpush.msra.mxu0 %v2491
  %2622 = vmatpush.msra.mxu0 %v2489
  %2623 = vmatpush.msra.mxu0 %v2487
  %2624 = vmatpush.msra.mxu0 %v2485
  %2625 = vmatpush.msra.mxu0 %v2483
  %2626 = vmatpush.msra.mxu0 %v2481
  %2627 = vmatpush.msra.mxu0 %v2479
  %2628 = vmatpush.msra.mxu0 %v2477
  %2629 = vmatpush.msra.mxu0 %v2475
  %2630 = vmatmul.f32.gmra.mxu0 %v2516
  %v2631 = vpop.f32.mrf.mxu0
  %v2632 = vadd.f32 %v2587, %v2631
  %2633 = vmatmul.f32.gmra.mxu0 %v2520
  %v2634 = vpop.f32.mrf.mxu0
  %v2635 = vadd.f32 %v2590, %v2634
  %2636 = vmatmul.f32.gmra.mxu0 %v2524
  %v2637 = vpop.f32.mrf.mxu0
  %v2638 = vadd.f32 %v2593, %v2637
  %2639 = vmatmul.f32.gmra.mxu0 %v2528
  %v2640 = vpop.f32.mrf.mxu0
  %v2641 = vadd.f32 %v2596, %v2640
  %2642 = vmatmul.f32.gmra.mxu0 %v2532
  %v2643 = vpop.f32.mrf.mxu0
  %2644 = vmatmul.f32.gmra.mxu0 %v2536
  %v2645 = vpop.f32.mrf.mxu0
  %v2646 = vadd.f32 %v2601, %v2645
  %2647 = vmatmul.f32.gmra.mxu0 %v2540
  %v2648 = vpop.f32.mrf.mxu0
  %v2649 = vadd.f32 %v2604, %v2648
  %2650 = vmatmul.f32.gmra.mxu0 %v2544
  %v2651 = vpop.f32.mrf.mxu0
  %v2652 = vadd.f32 %v2607, %v2651
  %2653 = vmatmul.f32.gmra.mxu0 %v2548
  %v2654 = vpop.f32.mrf.mxu0
  %v2655 = vadd.f32 %v2610, %v2654
  %2656 = vmatmul.f32.gmra.mxu0 %v2547
  %v2657 = vpop.f32.mrf.mxu0
  %2658 = vdwg.mxu0
  %2659 = vmatpush.msra.mxu0 %v2474
  %2660 = vmatpush.msra.mxu0 %v2472
  %2661 = vmatpush.msra.mxu0 %v2470
  %2662 = vmatpush.msra.mxu0 %v2468
  %2663 = vmatpush.msra.mxu0 %v2466
  %2664 = vmatpush.msra.mxu0 %v2464
  %2665 = vmatpush.msra.mxu0 %v2462
  %2666 = vmatpush.msra.mxu0 %v2460
  %2667 = vmatpush.msra.mxu0 %v2458
  %2668 = vmatpush.msra.mxu0 %v2456
  %2669 = vmatpush.msra.mxu0 %v2454
  %2670 = vmatpush.msra.mxu0 %v2452
  %2671 = vmatpush.msra.mxu0 %v2450
  %2672 = vmatpush.msra.mxu0 %v2448
  %2673 = vmatpush.msra.mxu0 %v2446
  %2674 = vmatpush.msra.mxu0 %v2444
  %2675 = vmatmul.f32.gmra.mxu0 %v2513
  %v2676 = vpop.f32.mrf.mxu0
  %v2677 = vadd.f32 0.0, %v2676
  %2678 = vmatmul.f32.gmra.mxu0 %v2518
  %v2679 = vpop.f32.mrf.mxu0
  %v2680 = vadd.f32 0.0, %v2679
  %2681 = vmatmul.f32.gmra.mxu0 %v2522
  %v2682 = vpop.f32.mrf.mxu0
  %v2683 = vadd.f32 0.0, %v2682
  %2684 = vmatmul.f32.gmra.mxu0 %v2526
  %v2685 = vpop.f32.mrf.mxu0
  %v2686 = vadd.f32 0.0, %v2685
  %2687 = vmatmul.f32.gmra.mxu0 %v2530
  %v2688 = vpop.f32.mrf.mxu0
  %2689 = vmatmul.f32.gmra.mxu0 %v2534
  %v2690 = vpop.f32.mrf.mxu0
  %v2691 = vadd.f32 0.0, %v2690
  %2692 = vmatmul.f32.gmra.mxu0 %v2538
  %v2693 = vpop.f32.mrf.mxu0
  %v2694 = vadd.f32 0.0, %v2693
  %2695 = vmatmul.f32.gmra.mxu0 %v2542
  %v2696 = vpop.f32.mrf.mxu0
  %v2697 = vadd.f32 0.0, %v2696
  %2698 = vmatmul.f32.gmra.mxu0 %v2546
  %v2699 = vpop.f32.mrf.mxu0
  %v2700 = vadd.f32 0.0, %v2699
  %2701 = vmatmul.f32.gmra.mxu0 %v2545
  %v2702 = vpop.f32.mrf.mxu0
  %2703 = vdwg.mxu0
  %2704 = vmatpush.msra.mxu0 %v2506
  %2705 = vmatpush.msra.mxu0 %v2504
  %2706 = vmatpush.msra.mxu0 %v2502
  %2707 = vmatpush.msra.mxu0 %v2500
  %2708 = vmatpush.msra.mxu0 %v2498
  %2709 = vmatpush.msra.mxu0 %v2496
  %2710 = vmatpush.msra.mxu0 %v2494
  %2711 = vmatpush.msra.mxu0 %v2492
  %2712 = vmatpush.msra.mxu0 %v2490
  %2713 = vmatpush.msra.mxu0 %v2488
  %2714 = vmatpush.msra.mxu0 %v2486
  %2715 = vmatpush.msra.mxu0 %v2484
  %2716 = vmatpush.msra.mxu0 %v2482
  %2717 = vmatpush.msra.mxu0 %v2480
  %2718 = vmatpush.msra.mxu0 %v2478
  %2719 = vmatpush.msra.mxu0 %v2476
  %2720 = vmatmul.f32.gmra.mxu0 %v2516
  %v2721 = vpop.f32.mrf.mxu0
  %v2722 = vadd.f32 %v2677, %v2721
  %2723 = vmatmul.f32.gmra.mxu0 %v2520
  %v2724 = vpop.f32.mrf.mxu0
  %v2725 = vadd.f32 %v2680, %v2724
  %2726 = vmatmul.f32.gmra.mxu0 %v2524
  %v2727 = vpop.f32.mrf.mxu0
  %v2728 = vadd.f32 %v2683, %v2727
  %2729 = vmatmul.f32.gmra.mxu0 %v2528
  %v2730 = vpop.f32.mrf.mxu0
  %v2731 = vadd.f32 %v2686, %v2730
  %2732 = vmatmul.f32.gmra.mxu0 %v2532
  %v2733 = vpop.f32.mrf.mxu0
  %2734 = vmatmul.f32.gmra.mxu0 %v2536
  %v2735 = vpop.f32.mrf.mxu0
  %v2736 = vadd.f32 %v2691, %v2735
  %2737 = vmatmul.f32.gmra.mxu0 %v2540
  %v2738 = vpop.f32.mrf.mxu0
  %v2739 = vadd.f32 %v2694, %v2738
  %2740 = vmatmul.f32.gmra.mxu0 %v2544
  %v2741 = vpop.f32.mrf.mxu0
  %v2742 = vadd.f32 %v2697, %v2741
  %2743 = vmatmul.f32.gmra.mxu0 %v2548
  %v2744 = vpop.f32.mrf.mxu0
  %v2745 = vadd.f32 %v2700, %v2744
  %2746 = vmatmul.f32.gmra.mxu0 %v2547
  %v2747 = vpop.f32.mrf.mxu0
  %2748 = vdwg.mxu0
  %v2749 = vadd.f32 %v2321, %v2632
  %v2750 = vadd.f32 %v2411, %v2722
  %v2751 = vadd.f32 %v2324, %v2635
  %v2752 = vadd.f32 %v2414, %v2725
  %v2753 = vadd.f32 %v2327, %v2638
  %v2754 = vadd.f32 %v2417, %v2728
  %v2755 = vadd.f32 %v2330, %v2641
  %v2756 = vadd.f32 %v2420, %v2731
  %v2757 = vadd.f32 %v2335, %v2646
  %v2758 = vadd.f32 %v2425, %v2736
  %v2759 = vadd.f32 %v2338, %v2649
  %v2760 = vadd.f32 %v2428, %v2739
  %v2761 = vadd.f32 %v2341, %v2652
  %v2762 = vadd.f32 %v2431, %v2742
  %v2763 = vadd.f32 %v2344, %v2655
  %v2764 = vadd.f32 %v2434, %v2745
  %v2765 = vld [vmem:[%s8] sm:$0x3]
  %v2767 = vperm.slane %v2765, 0
  %v2768 = vperm.slane %v2765, 1
  %v2771 = vadd.f32 %v2749, %v2767
  %v2772 = vadd.f32 %v2750, %v2768
  %v2773 = vadd.f32 %v2751, %v2767
  %v2774 = vadd.f32 %v2752, %v2768
  %v2775 = vadd.f32 %v2753, %v2767
  %v2776 = vadd.f32 %v2754, %v2768
  %v2777 = vadd.f32 %v2755, %v2767
  %v2778 = vadd.f32 %v2756, %v2768
  %v2779 = vadd.f32 %v2757, %v2767
  %v2780 = vadd.f32 %v2758, %v2768
  %v2781 = vadd.f32 %v2759, %v2767
  %v2782 = vadd.f32 %v2760, %v2768
  %v2783 = vadd.f32 %v2761, %v2767
  %v2784 = vadd.f32 %v2762, %v2768
  %v2785 = vadd.f32 %v2763, %v2767
  %v2786 = vadd.f32 %v2764, %v2768
  %vm2787 = vcmp.ge.f32.partialorder %v2771, 0.0
  %vm2788 = vcmp.ge.f32.partialorder %v2772, 0.0
  %vm2789 = vcmp.ge.f32.partialorder %v2773, 0.0
  %vm2790 = vcmp.ge.f32.partialorder %v2774, 0.0
  %vm2791 = vcmp.ge.f32.partialorder %v2775, 0.0
  %vm2792 = vcmp.ge.f32.partialorder %v2776, 0.0
  %vm2793 = vcmp.ge.f32.partialorder %v2777, 0.0
  %vm2794 = vcmp.ge.f32.partialorder %v2778, 0.0
  %vm2795 = vcmp.ge.f32.partialorder %v2779, 0.0
  %vm2796 = vcmp.ge.f32.partialorder %v2780, 0.0
  %vm2797 = vcmp.ge.f32.partialorder %v2781, 0.0
  %vm2798 = vcmp.ge.f32.partialorder %v2782, 0.0
  %vm2799 = vcmp.ge.f32.partialorder %v2783, 0.0
  %vm2800 = vcmp.ge.f32.partialorder %v2784, 0.0
  %vm2801 = vcmp.ge.f32.partialorder %v2785, 0.0
  %vm2802 = vcmp.ge.f32.partialorder %v2786, 0.0
  %v2803 = vld [vmem:[%s9] sm:$0x3]
  %v2805 = vperm.slane %v2803, 0
  %v2806 = vperm.slane %v2803, 1
  %v2809 = vmul.f32 %v2771, %v2805
  %v2810 = vmul.f32 %v2772, %v2806
  %v2811 = vmul.f32 %v2773, %v2805
  %v2812 = vmul.f32 %v2774, %v2806
  %v2813 = vmul.f32 %v2775, %v2805
  %v2814 = vmul.f32 %v2776, %v2806
  %v2815 = vmul.f32 %v2777, %v2805
  %v2816 = vmul.f32 %v2778, %v2806
  %v2817 = vmul.f32 %v2779, %v2805
  %v2818 = vmul.f32 %v2780, %v2806
  %v2819 = vmul.f32 %v2781, %v2805
  %v2820 = vmul.f32 %v2782, %v2806
  %v2821 = vmul.f32 %v2783, %v2805
  %v2822 = vmul.f32 %v2784, %v2806
  %v2823 = vmul.f32 %v2785, %v2805
  %v2824 = vmul.f32 %v2786, %v2806
  %v2825 = vsel %vm2787, %v2771, %v2809
  %v2826 = vsel %vm2788, %v2772, %v2810
  %v2827 = vsel %vm2789, %v2773, %v2811
  %v2828 = vsel %vm2790, %v2774, %v2812
  %v2829 = vsel %vm2791, %v2775, %v2813
  %v2830 = vsel %vm2792, %v2776, %v2814
  %v2831 = vsel %vm2793, %v2777, %v2815
  %v2832 = vsel %vm2794, %v2778, %v2816
  %v2833 = vsel %vm2795, %v2779, %v2817
  %v2834 = vsel %vm2796, %v2780, %v2818
  %v2835 = vsel %vm2797, %v2781, %v2819
  %v2836 = vsel %vm2798, %v2782, %v2820
  %v2837 = vsel %vm2799, %v2783, %v2821
  %v2838 = vsel %vm2800, %v2784, %v2822
  %v2839 = vsel %vm2801, %v2785, %v2823
  %v2840 = vsel %vm2802, %v2786, %v2824
  %v2849 = vrot.slane %v2825, 7
  %v2850 = vrot.slane %v2826, 7
  %v2851 = vrot.slane %v2827, 7
  %v2852 = vsel %vm1662, %v2849, %v2851
  %v2853 = vrot.slane %v2828, 7
  %v2854 = vsel %vm1662, %v2850, %v2853
  %v2855 = vrot.slane %v2829, 7
  %v2856 = vsel %vm1662, %v2851, %v2855
  %v2857 = vrot.slane %v2830, 7
  %v2858 = vsel %vm1662, %v2853, %v2857
  %v2859 = vrot.slane %v2831, 7
  %v2860 = vsel %vm1662, %v2855, %v2859
  %v2861 = vrot.slane %v2832, 7
  %v2862 = vsel %vm1662, %v2857, %v2861
  %2873 = vst [vmem:[#allocation4] sm:$0xfe] %v2849
  %2874 = vst [vmem:[#allocation4 + $0x8] sm:$0xfe] %v2850
  %2875 = vst [vmem:[#allocation4 + $0x10] sm:$0xff] %v2852
  %2876 = vst [vmem:[#allocation4 + $0x18] sm:$0xff] %v2854
  %2877 = vst [vmem:[#allocation4 + $0x20] sm:$0xff] %v2856
  %2878 = vst [vmem:[#allocation4 + $0x28] sm:$0xff] %v2858
  %2879 = vst [vmem:[#allocation4 + $0x30] sm:$0xff] %v2860
  %2880 = vst [vmem:[#allocation4 + $0x38] sm:$0xff] %v2862
  %2881 = vst [vmem:[#allocation4 + $0x40] sm:$0x1] %v2859
  %2882 = vst [vmem:[#allocation4 + $0x48] sm:$0x1] %v2861
  %v2891 = vrot.slane %v2833, 7
  %v2892 = vrot.slane %v2834, 7
  %v2893 = vrot.slane %v2835, 7
  %v2894 = vsel %vm1662, %v2891, %v2893
  %v2895 = vrot.slane %v2836, 7
  %v2896 = vsel %vm1662, %v2892, %v2895
  %v2897 = vrot.slane %v2837, 7
  %v2898 = vsel %vm1662, %v2893, %v2897
  %v2899 = vrot.slane %v2838, 7
  %v2900 = vsel %vm1662, %v2895, %v2899
  %v2901 = vrot.slane %v2839, 7
  %v2902 = vsel %vm1662, %v2897, %v2901
  %v2903 = vrot.slane %v2840, 7
  %v2904 = vsel %vm1662, %v2899, %v2903
  %2915 = vst [vmem:[#allocation4 + $0x50] sm:$0xfe] %v2891
  %2916 = vst [vmem:[#allocation4 + $0x58] sm:$0xfe] %v2892
  %2917 = vst [vmem:[#allocation4 + $0x60] sm:$0xff] %v2894
  %2918 = vst [vmem:[#allocation4 + $0x68] sm:$0xff] %v2896
  %2919 = vst [vmem:[#allocation4 + $0x70] sm:$0xff] %v2898
  %2920 = vst [vmem:[#allocation4 + $0x78] sm:$0xff] %v2900
  %2921 = vst [vmem:[#allocation4 + $0x80] sm:$0xff] %v2902
  %2922 = vst [vmem:[#allocation4 + $0x88] sm:$0xff] %v2904
  %2923 = vst [vmem:[#allocation4 + $0x90] sm:$0x1] %v2901
  %2924 = vst [vmem:[#allocation4 + $0x98] sm:$0x1] %v2903
  %v2925 = vld [vmem:[#allocation4] sm:$0xff]
  %v2926 = vld [vmem:[#allocation4 + $0x8] sm:$0xff]
  %v2927 = vld [vmem:[#allocation4 + $0x10] sm:$0xff]
  %v2928 = vld [vmem:[#allocation4 + $0x18] sm:$0xff]
  %v2929 = vld [vmem:[#allocation4 + $0x20] sm:$0xff]
  %v2930 = vld [vmem:[#allocation4 + $0x28] sm:$0xff]
  %v2931 = vld [vmem:[#allocation4 + $0x30] sm:$0xff]
  %v2932 = vld [vmem:[#allocation4 + $0x38] sm:$0xff]
  %v2933 = vld [vmem:[#allocation4 + $0x40] sm:$0xff]
  %v2934 = vld [vmem:[#allocation4 + $0x48] sm:$0xff]
  %v2935 = vld [vmem:[#allocation4 + $0x50] sm:$0xff]
  %v2936 = vld [vmem:[#allocation4 + $0x58] sm:$0xff]
  %v2937 = vld [vmem:[#allocation4 + $0x60] sm:$0xff]
  %v2938 = vld [vmem:[#allocation4 + $0x68] sm:$0xff]
  %v2939 = vld [vmem:[#allocation4 + $0x70] sm:$0xff]
  %v2940 = vld [vmem:[#allocation4 + $0x78] sm:$0xff]
  %v2941 = vld [vmem:[#allocation4 + $0x80] sm:$0xff]
  %v2942 = vld [vmem:[#allocation4 + $0x88] sm:$0xff]
  %v2943 = vld [vmem:[#allocation4 + $0x90] sm:$0x3f]
  %v2944 = vld [vmem:[#allocation4 + $0x98] sm:$0x3f]
  %v2945 = vld [vmem:[%s10] sm:$0xff]
  %v2946 = vld [vmem:[%s10 + $0x8] sm:$0xff]
  %v2947 = vld [vmem:[%s10 + $0x10] sm:$0xff]
  %v2948 = vld [vmem:[%s10 + $0x18] sm:$0xff]
  %v2949 = vld [vmem:[%s10 + $0x20] sm:$0xff]
  %v2950 = vld [vmem:[%s10 + $0x28] sm:$0xff]
  %v2951 = vld [vmem:[%s10 + $0x30] sm:$0xff]
  %v2952 = vld [vmem:[%s10 + $0x38] sm:$0xff]
  %v2953 = vld [vmem:[%s10 + $0x40] sm:$0xff]
  %v2954 = vld [vmem:[%s10 + $0x48] sm:$0xff]
  %v2955 = vld [vmem:[%s10 + $0x50] sm:$0xff]
  %v2956 = vld [vmem:[%s10 + $0x58] sm:$0xff]
  %v2957 = vld [vmem:[%s10 + $0x60] sm:$0xff]
  %v2958 = vld [vmem:[%s10 + $0x68] sm:$0xff]
  %v2959 = vld [vmem:[%s10 + $0x70] sm:$0xff]
  %v2960 = vld [vmem:[%s10 + $0x78] sm:$0xff]
  %v2961 = vld [vmem:[%s10 + $0x80] sm:$0xff]
  %v2962 = vld [vmem:[%s10 + $0x88] sm:$0xff]
  %v2963 = vld [vmem:[%s10 + $0x90] sm:$0xff]
  %v2964 = vld [vmem:[%s10 + $0x98] sm:$0xff]
  %v2965 = vld [vmem:[%s10 + $0xa0] sm:$0xff]
  %v2966 = vld [vmem:[%s10 + $0xa8] sm:$0xff]
  %v2967 = vld [vmem:[%s10 + $0xb0] sm:$0xff]
  %v2968 = vld [vmem:[%s10 + $0xb8] sm:$0xff]
  %v2969 = vld [vmem:[%s10 + $0xc0] sm:$0xff]
  %v2970 = vld [vmem:[%s10 + $0xc8] sm:$0xff]
  %v2971 = vld [vmem:[%s10 + $0xd0] sm:$0xff]
  %v2972 = vld [vmem:[%s10 + $0xd8] sm:$0xff]
  %v2973 = vld [vmem:[%s10 + $0xe0] sm:$0xff]
  %v2974 = vld [vmem:[%s10 + $0xe8] sm:$0xff]
  %v2975 = vld [vmem:[%s10 + $0xf0] sm:$0xff]
  %v2976 = vld [vmem:[%s10 + $0xf8] sm:$0xff]
  %v2977 = vld [vmem:[#allocation4] sm:$0xfe]
  %v2978 = vld [vmem:[#allocation4 + $0x8] sm:$0xfe]
  %v2979 = vld [vmem:[#allocation4 + $0x90] sm:$0x7f]
  %v2980 = vld [vmem:[#allocation4 + $0x98] sm:$0x7f]
  %s2981 = scalar_lea.vmem %s10, 256
  %v2982 = vld [vmem:[%s2981] sm:$0xff]
  %v2983 = vld [vmem:[%s2981 + $0x8] sm:$0xff]
  %v2984 = vld [vmem:[%s2981 + $0x10] sm:$0xff]
  %v2985 = vld [vmem:[%s2981 + $0x18] sm:$0xff]
  %v2986 = vld [vmem:[%s2981 + $0x20] sm:$0xff]
  %v2987 = vld [vmem:[%s2981 + $0x28] sm:$0xff]
  %v2988 = vld [vmem:[%s2981 + $0x30] sm:$0xff]
  %v2989 = vld [vmem:[%s2981 + $0x38] sm:$0xff]
  %v2990 = vld [vmem:[%s2981 + $0x40] sm:$0xff]
  %v2991 = vld [vmem:[%s2981 + $0x48] sm:$0xff]
  %v2992 = vld [vmem:[%s2981 + $0x50] sm:$0xff]
  %v2993 = vld [vmem:[%s2981 + $0x58] sm:$0xff]
  %v2994 = vld [vmem:[%s2981 + $0x60] sm:$0xff]
  %v2995 = vld [vmem:[%s2981 + $0x68] sm:$0xff]
  %v2996 = vld [vmem:[%s2981 + $0x70] sm:$0xff]
  %v2997 = vld [vmem:[%s2981 + $0x78] sm:$0xff]
  %v2998 = vld [vmem:[%s2981 + $0x80] sm:$0xff]
  %v2999 = vld [vmem:[%s2981 + $0x88] sm:$0xff]
  %v3000 = vld [vmem:[%s2981 + $0x90] sm:$0xff]
  %v3001 = vld [vmem:[%s2981 + $0x98] sm:$0xff]
  %v3002 = vld [vmem:[%s2981 + $0xa0] sm:$0xff]
  %v3003 = vld [vmem:[%s2981 + $0xa8] sm:$0xff]
  %v3004 = vld [vmem:[%s2981 + $0xb0] sm:$0xff]
  %v3005 = vld [vmem:[%s2981 + $0xb8] sm:$0xff]
  %v3006 = vld [vmem:[%s2981 + $0xc0] sm:$0xff]
  %v3007 = vld [vmem:[%s2981 + $0xc8] sm:$0xff]
  %v3008 = vld [vmem:[%s2981 + $0xd0] sm:$0xff]
  %v3009 = vld [vmem:[%s2981 + $0xd8] sm:$0xff]
  %v3010 = vld [vmem:[%s2981 + $0xe0] sm:$0xff]
  %v3011 = vld [vmem:[%s2981 + $0xe8] sm:$0xff]
  %v3012 = vld [vmem:[%s2981 + $0xf0] sm:$0xff]
  %v3013 = vld [vmem:[%s2981 + $0xf8] sm:$0xff]
  %v3034 = vrot.slane %v2977, 1
  %v3035 = vrot.slane %v2927, 1
  %v3036 = vsel %vm2019, %v3034, %v3035
  %v3037 = vrot.slane %v2978, 1
  %v3038 = vrot.slane %v2928, 1
  %v3039 = vsel %vm2019, %v3037, %v3038
  %v3040 = vrot.slane %v2929, 1
  %v3041 = vsel %vm2019, %v3035, %v3040
  %v3042 = vrot.slane %v2930, 1
  %v3043 = vsel %vm2019, %v3038, %v3042
  %v3044 = vrot.slane %v2931, 1
  %v3045 = vsel %vm2019, %v3040, %v3044
  %v3046 = vrot.slane %v2932, 1
  %v3047 = vsel %vm2019, %v3042, %v3046
  %v3048 = vrot.slane %v2933, 1
  %v3049 = vsel %vm2019, %v3044, %v3048
  %v3050 = vrot.slane %v2934, 1
  %v3051 = vsel %vm2019, %v3046, %v3050
  %v3052 = vrot.slane %v2935, 1
  %v3053 = vsel %vm2019, %v3048, %v3052
  %v3054 = vrot.slane %v2936, 1
  %v3055 = vsel %vm2019, %v3050, %v3054
  %v3056 = vrot.slane %v2937, 1
  %v3057 = vsel %vm2019, %v3052, %v3056
  %v3058 = vrot.slane %v2938, 1
  %v3059 = vsel %vm2019, %v3054, %v3058
  %v3060 = vrot.slane %v2939, 1
  %v3061 = vsel %vm2019, %v3056, %v3060
  %v3062 = vrot.slane %v2940, 1
  %v3063 = vsel %vm2019, %v3058, %v3062
  %v3064 = vrot.slane %v2941, 1
  %v3065 = vsel %vm2019, %v3060, %v3064
  %v3066 = vrot.slane %v2942, 1
  %v3067 = vsel %vm2019, %v3062, %v3066
  %v3068 = vrot.slane %v2979, 1
  %v3069 = vsel %vm2019, %v3064, %v3068
  %v3070 = vrot.slane %v2980, 1
  %v3071 = vsel %vm2019, %v3066, %v3070
  %3092 = vmatpush.msra.mxu0 %v2997
  %3093 = vmatpush.msra.mxu0 %v2996
  %3094 = vmatpush.msra.mxu0 %v2995
  %3095 = vmatpush.msra.mxu0 %v2994
  %3096 = vmatpush.msra.mxu0 %v2993
  %3097 = vmatpush.msra.mxu0 %v2992
  %3098 = vmatpush.msra.mxu0 %v2991
  %3099 = vmatpush.msra.mxu0 %v2990
  %3100 = vmatpush.msra.mxu0 %v2989
  %3101 = vmatpush.msra.mxu0 %v2988
  %3102 = vmatpush.msra.mxu0 %v2987
  %3103 = vmatpush.msra.mxu0 %v2986
  %3104 = vmatpush.msra.mxu0 %v2985
  %3105 = vmatpush.msra.mxu0 %v2984
  %3106 = vmatpush.msra.mxu0 %v2983
  %3107 = vmatpush.msra.mxu0 %v2982
  %3108 = vmatmul.f32.gmra.mxu0 %v3036
  %v3109 = vpop.f32.mrf.mxu0
  %v3110 = vadd.f32 0.0, %v3109
  %3111 = vmatmul.f32.gmra.mxu0 %v3041
  %v3112 = vpop.f32.mrf.mxu0
  %v3113 = vadd.f32 0.0, %v3112
  %3114 = vmatmul.f32.gmra.mxu0 %v3045
  %v3115 = vpop.f32.mrf.mxu0
  %v3116 = vadd.f32 0.0, %v3115
  %3117 = vmatmul.f32.gmra.mxu0 %v3049
  %v3118 = vpop.f32.mrf.mxu0
  %v3119 = vadd.f32 0.0, %v3118
  %3120 = vmatmul.f32.gmra.mxu0 %v3053
  %v3121 = vpop.f32.mrf.mxu0
  %3122 = vmatmul.f32.gmra.mxu0 %v3057
  %v3123 = vpop.f32.mrf.mxu0
  %v3124 = vadd.f32 0.0, %v3123
  %3125 = vmatmul.f32.gmra.mxu0 %v3061
  %v3126 = vpop.f32.mrf.mxu0
  %v3127 = vadd.f32 0.0, %v3126
  %3128 = vmatmul.f32.gmra.mxu0 %v3065
  %v3129 = vpop.f32.mrf.mxu0
  %v3130 = vadd.f32 0.0, %v3129
  %3131 = vmatmul.f32.gmra.mxu0 %v3069
  %v3132 = vpop.f32.mrf.mxu0
  %v3133 = vadd.f32 0.0, %v3132
  %3134 = vmatmul.f32.gmra.mxu0 %v3068
  %v3135 = vpop.f32.mrf.mxu0
  %3136 = vdwg.mxu0
  %3137 = vmatpush.msra.mxu0 %v3013
  %3138 = vmatpush.msra.mxu0 %v3012
  %3139 = vmatpush.msra.mxu0 %v3011
  %3140 = vmatpush.msra.mxu0 %v3010
  %3141 = vmatpush.msra.mxu0 %v3009
  %3142 = vmatpush.msra.mxu0 %v3008
  %3143 = vmatpush.msra.mxu0 %v3007
  %3144 = vmatpush.msra.mxu0 %v3006
  %3145 = vmatpush.msra.mxu0 %v3005
  %3146 = vmatpush.msra.mxu0 %v3004
  %3147 = vmatpush.msra.mxu0 %v3003
  %3148 = vmatpush.msra.mxu0 %v3002
  %3149 = vmatpush.msra.mxu0 %v3001
  %3150 = vmatpush.msra.mxu0 %v3000
  %3151 = vmatpush.msra.mxu0 %v2999
  %3152 = vmatpush.msra.mxu0 %v2998
  %3153 = vmatmul.f32.gmra.mxu0 %v3039
  %v3154 = vpop.f32.mrf.mxu0
  %v3155 = vadd.f32 %v3110, %v3154
  %3156 = vmatmul.f32.gmra.mxu0 %v3043
  %v3157 = vpop.f32.mrf.mxu0
  %v3158 = vadd.f32 %v3113, %v3157
  %3159 = vmatmul.f32.gmra.mxu0 %v3047
  %v3160 = vpop.f32.mrf.mxu0
  %v3161 = vadd.f32 %v3116, %v3160
  %3162 = vmatmul.f32.gmra.mxu0 %v3051
  %v3163 = vpop.f32.mrf.mxu0
  %v3164 = vadd.f32 %v3119, %v3163
  %3165 = vmatmul.f32.gmra.mxu0 %v3055
  %v3166 = vpop.f32.mrf.mxu0
  %3167 = vmatmul.f32.gmra.mxu0 %v3059
  %v3168 = vpop.f32.mrf.mxu0
  %v3169 = vadd.f32 %v3124, %v3168
  %3170 = vmatmul.f32.gmra.mxu0 %v3063
  %v3171 = vpop.f32.mrf.mxu0
  %v3172 = vadd.f32 %v3127, %v3171
  %3173 = vmatmul.f32.gmra.mxu0 %v3067
  %v3174 = vpop.f32.mrf.mxu0
  %v3175 = vadd.f32 %v3130, %v3174
  %3176 = vmatmul.f32.gmra.mxu0 %v3071
  %v3177 = vpop.f32.mrf.mxu0
  %v3178 = vadd.f32 %v3133, %v3177
  %3179 = vmatmul.f32.gmra.mxu0 %v3070
  %v3180 = vpop.f32.mrf.mxu0
  %3181 = vdwg.mxu0
  %3182 = vmatpush.msra.mxu0 %v2960
  %3183 = vmatpush.msra.mxu0 %v2959
  %3184 = vmatpush.msra.mxu0 %v2958
  %3185 = vmatpush.msra.mxu0 %v2957
  %3186 = vmatpush.msra.mxu0 %v2956
  %3187 = vmatpush.msra.mxu0 %v2955
  %3188 = vmatpush.msra.mxu0 %v2954
  %3189 = vmatpush.msra.mxu0 %v2953
  %3190 = vmatpush.msra.mxu0 %v2952
  %3191 = vmatpush.msra.mxu0 %v2951
  %3192 = vmatpush.msra.mxu0 %v2950
  %3193 = vmatpush.msra.mxu0 %v2949
  %3194 = vmatpush.msra.mxu0 %v2948
  %3195 = vmatpush.msra.mxu0 %v2947
  %3196 = vmatpush.msra.mxu0 %v2946
  %3197 = vmatpush.msra.mxu0 %v2945
  %3198 = vmatmul.f32.gmra.mxu0 %v2925
  %v3199 = vpop.f32.mrf.mxu0
  %v3200 = vadd.f32 %v3155, %v3199
  %3201 = vmatmul.f32.gmra.mxu0 %v2927
  %v3202 = vpop.f32.mrf.mxu0
  %v3203 = vadd.f32 %v3158, %v3202
  %3204 = vmatmul.f32.gmra.mxu0 %v2929
  %v3205 = vpop.f32.mrf.mxu0
  %v3206 = vadd.f32 %v3161, %v3205
  %3207 = vmatmul.f32.gmra.mxu0 %v2931
  %v3208 = vpop.f32.mrf.mxu0
  %v3209 = vadd.f32 %v3164, %v3208
  %3210 = vmatmul.f32.gmra.mxu0 %v2933
  %v3211 = vpop.f32.mrf.mxu0
  %3212 = vmatmul.f32.gmra.mxu0 %v2935
  %v3213 = vpop.f32.mrf.mxu0
  %v3214 = vadd.f32 %v3169, %v3213
  %3215 = vmatmul.f32.gmra.mxu0 %v2937
  %v3216 = vpop.f32.mrf.mxu0
  %v3217 = vadd.f32 %v3172, %v3216
  %3218 = vmatmul.f32.gmra.mxu0 %v2939
  %v3219 = vpop.f32.mrf.mxu0
  %v3220 = vadd.f32 %v3175, %v3219
  %3221 = vmatmul.f32.gmra.mxu0 %v2941
  %v3222 = vpop.f32.mrf.mxu0
  %v3223 = vadd.f32 %v3178, %v3222
  %3224 = vmatmul.f32.gmra.mxu0 %v2943
  %v3225 = vpop.f32.mrf.mxu0
  %3226 = vdwg.mxu0
  %3227 = vmatpush.msra.mxu0 %v2976
  %3228 = vmatpush.msra.mxu0 %v2975
  %3229 = vmatpush.msra.mxu0 %v2974
  %3230 = vmatpush.msra.mxu0 %v2973
  %3231 = vmatpush.msra.mxu0 %v2972
  %3232 = vmatpush.msra.mxu0 %v2971
  %3233 = vmatpush.msra.mxu0 %v2970
  %3234 = vmatpush.msra.mxu0 %v2969
  %3235 = vmatpush.msra.mxu0 %v2968
  %3236 = vmatpush.msra.mxu0 %v2967
  %3237 = vmatpush.msra.mxu0 %v2966
  %3238 = vmatpush.msra.mxu0 %v2965
  %3239 = vmatpush.msra.mxu0 %v2964
  %3240 = vmatpush.msra.mxu0 %v2963
  %3241 = vmatpush.msra.mxu0 %v2962
  %3242 = vmatpush.msra.mxu0 %v2961
  %3243 = vmatmul.f32.gmra.mxu0 %v2926
  %v3244 = vpop.f32.mrf.mxu0
  %v3245 = vadd.f32 %v3200, %v3244
  %3246 = vmatmul.f32.gmra.mxu0 %v2928
  %v3247 = vpop.f32.mrf.mxu0
  %v3248 = vadd.f32 %v3203, %v3247
  %3249 = vmatmul.f32.gmra.mxu0 %v2930
  %v3250 = vpop.f32.mrf.mxu0
  %v3251 = vadd.f32 %v3206, %v3250
  %3252 = vmatmul.f32.gmra.mxu0 %v2932
  %v3253 = vpop.f32.mrf.mxu0
  %v3254 = vadd.f32 %v3209, %v3253
  %3255 = vmatmul.f32.gmra.mxu0 %v2934
  %v3256 = vpop.f32.mrf.mxu0
  %3257 = vmatmul.f32.gmra.mxu0 %v2936
  %v3258 = vpop.f32.mrf.mxu0
  %v3259 = vadd.f32 %v3214, %v3258
  %3260 = vmatmul.f32.gmra.mxu0 %v2938
  %v3261 = vpop.f32.mrf.mxu0
  %v3262 = vadd.f32 %v3217, %v3261
  %3263 = vmatmul.f32.gmra.mxu0 %v2940
  %v3264 = vpop.f32.mrf.mxu0
  %v3265 = vadd.f32 %v3220, %v3264
  %3266 = vmatmul.f32.gmra.mxu0 %v2942
  %v3267 = vpop.f32.mrf.mxu0
  %v3268 = vadd.f32 %v3223, %v3267
  %3269 = vmatmul.f32.gmra.mxu0 %v2944
  %v3270 = vpop.f32.mrf.mxu0
  %3271 = vdwg.mxu0
  %v3272 = vld [vmem:[#allocation4] sm:$0xfc]
  %v3273 = vld [vmem:[#allocation4 + $0x8] sm:$0xfc]
  %v3274 = vld [vmem:[#allocation4 + $0x90] sm:$0xff]
  %v3275 = vld [vmem:[#allocation4 + $0x98] sm:$0xff]
  %s3276 = scalar_lea.vmem %s10, 512
  %v3277 = vld [vmem:[%s3276] sm:$0xff]
  %v3278 = vld [vmem:[%s3276 + $0x8] sm:$0xff]
  %v3279 = vld [vmem:[%s3276 + $0x10] sm:$0xff]
  %v3280 = vld [vmem:[%s3276 + $0x18] sm:$0xff]
  %v3281 = vld [vmem:[%s3276 + $0x20] sm:$0xff]
  %v3282 = vld [vmem:[%s3276 + $0x28] sm:$0xff]
  %v3283 = vld [vmem:[%s3276 + $0x30] sm:$0xff]
  %v3284 = vld [vmem:[%s3276 + $0x38] sm:$0xff]
  %v3285 = vld [vmem:[%s3276 + $0x40] sm:$0xff]
  %v3286 = vld [vmem:[%s3276 + $0x48] sm:$0xff]
  %v3287 = vld [vmem:[%s3276 + $0x50] sm:$0xff]
  %v3288 = vld [vmem:[%s3276 + $0x58] sm:$0xff]
  %v3289 = vld [vmem:[%s3276 + $0x60] sm:$0xff]
  %v3290 = vld [vmem:[%s3276 + $0x68] sm:$0xff]
  %v3291 = vld [vmem:[%s3276 + $0x70] sm:$0xff]
  %v3292 = vld [vmem:[%s3276 + $0x78] sm:$0xff]
  %v3293 = vld [vmem:[%s3276 + $0x80] sm:$0xff]
  %v3294 = vld [vmem:[%s3276 + $0x88] sm:$0xff]
  %v3295 = vld [vmem:[%s3276 + $0x90] sm:$0xff]
  %v3296 = vld [vmem:[%s3276 + $0x98] sm:$0xff]
  %v3297 = vld [vmem:[%s3276 + $0xa0] sm:$0xff]
  %v3298 = vld [vmem:[%s3276 + $0xa8] sm:$0xff]
  %v3299 = vld [vmem:[%s3276 + $0xb0] sm:$0xff]
  %v3300 = vld [vmem:[%s3276 + $0xb8] sm:$0xff]
  %v3301 = vld [vmem:[%s3276 + $0xc0] sm:$0xff]
  %v3302 = vld [vmem:[%s3276 + $0xc8] sm:$0xff]
  %v3303 = vld [vmem:[%s3276 + $0xd0] sm:$0xff]
  %v3304 = vld [vmem:[%s3276 + $0xd8] sm:$0xff]
  %v3305 = vld [vmem:[%s3276 + $0xe0] sm:$0xff]
  %v3306 = vld [vmem:[%s3276 + $0xe8] sm:$0xff]
  %v3307 = vld [vmem:[%s3276 + $0xf0] sm:$0xff]
  %v3308 = vld [vmem:[%s3276 + $0xf8] sm:$0xff]
  %v3313 = vrot.slane %v3272, 2
  %v3314 = vrot.slane %v2927, 2
  %v3315 = vsel %vm1563, %v3313, %v3314
  %v3316 = vrot.slane %v3273, 2
  %v3317 = vrot.slane %v2928, 2
  %v3318 = vsel %vm1563, %v3316, %v3317
  %v3319 = vrot.slane %v2929, 2
  %v3320 = vsel %vm1563, %v3314, %v3319
  %v3321 = vrot.slane %v2930, 2
  %v3322 = vsel %vm1563, %v3317, %v3321
  %v3323 = vrot.slane %v2931, 2
  %v3324 = vsel %vm1563, %v3319, %v3323
  %v3325 = vrot.slane %v2932, 2
  %v3326 = vsel %vm1563, %v3321, %v3325
  %v3327 = vrot.slane %v2933, 2
  %v3328 = vsel %vm1563, %v3323, %v3327
  %v3329 = vrot.slane %v2934, 2
  %v3330 = vsel %vm1563, %v3325, %v3329
  %v3331 = vrot.slane %v2935, 2
  %v3332 = vsel %vm1563, %v3327, %v3331
  %v3333 = vrot.slane %v2936, 2
  %v3334 = vsel %vm1563, %v3329, %v3333
  %v3335 = vrot.slane %v2937, 2
  %v3336 = vsel %vm1563, %v3331, %v3335
  %v3337 = vrot.slane %v2938, 2
  %v3338 = vsel %vm1563, %v3333, %v3337
  %v3339 = vrot.slane %v2939, 2
  %v3340 = vsel %vm1563, %v3335, %v3339
  %v3341 = vrot.slane %v2940, 2
  %v3342 = vsel %vm1563, %v3337, %v3341
  %v3343 = vrot.slane %v2941, 2
  %v3344 = vsel %vm1563, %v3339, %v3343
  %v3345 = vrot.slane %v2942, 2
  %v3346 = vsel %vm1563, %v3341, %v3345
  %v3347 = vrot.slane %v3274, 2
  %v3348 = vsel %vm1563, %v3343, %v3347
  %v3349 = vrot.slane %v3275, 2
  %v3350 = vsel %vm1563, %v3345, %v3349
  %3371 = vmatpush.msra.mxu0 %v3292
  %3372 = vmatpush.msra.mxu0 %v3291
  %3373 = vmatpush.msra.mxu0 %v3290
  %3374 = vmatpush.msra.mxu0 %v3289
  %3375 = vmatpush.msra.mxu0 %v3288
  %3376 = vmatpush.msra.mxu0 %v3287
  %3377 = vmatpush.msra.mxu0 %v3286
  %3378 = vmatpush.msra.mxu0 %v3285
  %3379 = vmatpush.msra.mxu0 %v3284
  %3380 = vmatpush.msra.mxu0 %v3283
  %3381 = vmatpush.msra.mxu0 %v3282
  %3382 = vmatpush.msra.mxu0 %v3281
  %3383 = vmatpush.msra.mxu0 %v3280
  %3384 = vmatpush.msra.mxu0 %v3279
  %3385 = vmatpush.msra.mxu0 %v3278
  %3386 = vmatpush.msra.mxu0 %v3277
  %3387 = vmatmul.f32.gmra.mxu0 %v3315
  %v3388 = vpop.f32.mrf.mxu0
  %v3389 = vadd.f32 0.0, %v3388
  %3390 = vmatmul.f32.gmra.mxu0 %v3320
  %v3391 = vpop.f32.mrf.mxu0
  %v3392 = vadd.f32 0.0, %v3391
  %3393 = vmatmul.f32.gmra.mxu0 %v3324
  %v3394 = vpop.f32.mrf.mxu0
  %v3395 = vadd.f32 0.0, %v3394
  %3396 = vmatmul.f32.gmra.mxu0 %v3328
  %v3397 = vpop.f32.mrf.mxu0
  %v3398 = vadd.f32 0.0, %v3397
  %3399 = vmatmul.f32.gmra.mxu0 %v3332
  %v3400 = vpop.f32.mrf.mxu0
  %3401 = vmatmul.f32.gmra.mxu0 %v3336
  %v3402 = vpop.f32.mrf.mxu0
  %v3403 = vadd.f32 0.0, %v3402
  %3404 = vmatmul.f32.gmra.mxu0 %v3340
  %v3405 = vpop.f32.mrf.mxu0
  %v3406 = vadd.f32 0.0, %v3405
  %3407 = vmatmul.f32.gmra.mxu0 %v3344
  %v3408 = vpop.f32.mrf.mxu0
  %v3409 = vadd.f32 0.0, %v3408
  %3410 = vmatmul.f32.gmra.mxu0 %v3348
  %v3411 = vpop.f32.mrf.mxu0
  %v3412 = vadd.f32 0.0, %v3411
  %3413 = vmatmul.f32.gmra.mxu0 %v3347
  %v3414 = vpop.f32.mrf.mxu0
  %3415 = vdwg.mxu0
  %3416 = vmatpush.msra.mxu0 %v3308
  %3417 = vmatpush.msra.mxu0 %v3307
  %3418 = vmatpush.msra.mxu0 %v3306
  %3419 = vmatpush.msra.mxu0 %v3305
  %3420 = vmatpush.msra.mxu0 %v3304
  %3421 = vmatpush.msra.mxu0 %v3303
  %3422 = vmatpush.msra.mxu0 %v3302
  %3423 = vmatpush.msra.mxu0 %v3301
  %3424 = vmatpush.msra.mxu0 %v3300
  %3425 = vmatpush.msra.mxu0 %v3299
  %3426 = vmatpush.msra.mxu0 %v3298
  %3427 = vmatpush.msra.mxu0 %v3297
  %3428 = vmatpush.msra.mxu0 %v3296
  %3429 = vmatpush.msra.mxu0 %v3295
  %3430 = vmatpush.msra.mxu0 %v3294
  %3431 = vmatpush.msra.mxu0 %v3293
  %3432 = vmatmul.f32.gmra.mxu0 %v3318
  %v3433 = vpop.f32.mrf.mxu0
  %v3434 = vadd.f32 %v3389, %v3433
  %3435 = vmatmul.f32.gmra.mxu0 %v3322
  %v3436 = vpop.f32.mrf.mxu0
  %v3437 = vadd.f32 %v3392, %v3436
  %3438 = vmatmul.f32.gmra.mxu0 %v3326
  %v3439 = vpop.f32.mrf.mxu0
  %v3440 = vadd.f32 %v3395, %v3439
  %3441 = vmatmul.f32.gmra.mxu0 %v3330
  %v3442 = vpop.f32.mrf.mxu0
  %v3443 = vadd.f32 %v3398, %v3442
  %3444 = vmatmul.f32.gmra.mxu0 %v3334
  %v3445 = vpop.f32.mrf.mxu0
  %3446 = vmatmul.f32.gmra.mxu0 %v3338
  %v3447 = vpop.f32.mrf.mxu0
  %v3448 = vadd.f32 %v3403, %v3447
  %3449 = vmatmul.f32.gmra.mxu0 %v3342
  %v3450 = vpop.f32.mrf.mxu0
  %v3451 = vadd.f32 %v3406, %v3450
  %3452 = vmatmul.f32.gmra.mxu0 %v3346
  %v3453 = vpop.f32.mrf.mxu0
  %v3454 = vadd.f32 %v3409, %v3453
  %3455 = vmatmul.f32.gmra.mxu0 %v3350
  %v3456 = vpop.f32.mrf.mxu0
  %v3457 = vadd.f32 %v3412, %v3456
  %3458 = vmatmul.f32.gmra.mxu0 %v3349
  %v3459 = vpop.f32.mrf.mxu0
  %3460 = vdwg.mxu0
  %v3461 = vadd.f32 %v3245, %v3434
  %v3462 = vadd.f32 %v3248, %v3437
  %v3463 = vadd.f32 %v3251, %v3440
  %v3464 = vadd.f32 %v3254, %v3443
  %v3465 = vadd.f32 %v3259, %v3448
  %v3466 = vadd.f32 %v3262, %v3451
  %v3467 = vadd.f32 %v3265, %v3454
  %v3468 = vadd.f32 %v3268, %v3457
  %v3469 = vld [vmem:[%s11] sm:$0x1]
  %v3471 = vperm.slane %v3469, 0
  %v3473 = vadd.f32 %v3461, %v3471
  %v3474 = vadd.f32 %v3462, %v3471
  %v3475 = vadd.f32 %v3463, %v3471
  %v3476 = vadd.f32 %v3464, %v3471
  %v3477 = vadd.f32 %v3465, %v3471
  %v3478 = vadd.f32 %v3466, %v3471
  %v3479 = vadd.f32 %v3467, %v3471
  %v3480 = vadd.f32 %v3468, %v3471
  %v3481 = vld [vmem:[%s1] sm:$0xff]
  %v3482 = vld [vmem:[%s1 + $0x8] sm:$0xff]
  %v3483 = vld [vmem:[%s1 + $0x10] sm:$0xff]
  %v3484 = vld [vmem:[%s1 + $0x18] sm:$0xff]
  %v3485 = vadd.f32 %v3473, %v3481
  %v3486 = vadd.f32 %v3474, %v3482
  %v3487 = vadd.f32 %v3475, %v3483
  %v3488 = vadd.f32 %v3476, %v3484
  %v3489 = vmax.f32 %v3485, 0.0
  %v3490 = vmax.f32 %v3486, 0.0
  %v3491 = vmax.f32 %v3487, 0.0
  %v3492 = vmax.f32 %v3488, 0.0
  %v3493 = vmin.f32 %v3489, 1.0
  %v3494 = vmin.f32 %v3490, 1.0
  %v3495 = vmin.f32 %v3491, 1.0
  %v3496 = vmin.f32 %v3492, 1.0
  %3497 = vst [vmem:[%s12] sm:$0xff] %v3493
  %3498 = vst [vmem:[%s12 + $0x8] sm:$0xff] %v3494
  %3499 = vst [vmem:[%s12 + $0x10] sm:$0xff] %v3495
  %3500 = vst [vmem:[%s12 + $0x18] sm:$0xff] %v3496
  %s3501 = scalar_lea.vmem %s1, 32
  %v3502 = vld [vmem:[%s3501] sm:$0xff]
  %v3503 = vld [vmem:[%s3501 + $0x8] sm:$0xff]
  %v3504 = vld [vmem:[%s3501 + $0x10] sm:$0xff]
  %v3505 = vld [vmem:[%s3501 + $0x18] sm:$0xff]
  %v3506 = vadd.f32 %v3477, %v3502
  %v3507 = vadd.f32 %v3478, %v3503
  %v3508 = vadd.f32 %v3479, %v3504
  %v3509 = vadd.f32 %v3480, %v3505
  %v3510 = vmax.f32 %v3506, 0.0
  %v3511 = vmax.f32 %v3507, 0.0
  %v3512 = vmax.f32 %v3508, 0.0
  %v3513 = vmax.f32 %v3509, 0.0
  %v3514 = vmin.f32 %v3510, 1.0
  %v3515 = vmin.f32 %v3511, 1.0
  %v3516 = vmin.f32 %v3512, 1.0
  %v3517 = vmin.f32 %v3513, 1.0
  %s3518 = scalar_lea.vmem %s12, 32
  %3519 = vst [vmem:[%s3518] sm:$0xff] %v3514
  %3520 = vst [vmem:[%s3518 + $0x8] sm:$0xff] %v3515
  %3521 = vst [vmem:[%s3518 + $0x10] sm:$0xff] %v3516
  %3522 = vst [vmem:[%s3518 + $0x18] sm:$0xff] %v3517
  // Predicated region
  $region50: #{generator_forward.1} parent=0 // pred_check
    _
  $region51: #{generator_forward.1} parent=0 // pred_check_branch
    %3524 = sbr.rel (0) target = $region53
  $region52: #{generator_forward.1} parent=0 // pred_region
    _
  $region53: #{generator_forward.1} parent=0 // pred_fallthru
    _
  // Predicated region
  $region54: #{generator_forward.1} parent=0 // pred_check
    _
  $region55: #{generator_forward.1} parent=0 // pred_check_branch
    %3526 = sbr.rel (0) target = $region57
  $region56: #{generator_forward.1} parent=0 // pred_region
    _
  $region57: #{generator_forward.1} parent=0 // pred_fallthru
    _

</llo_original>
